<compile_context>
chip_gen: v7x
topology: tpu7x:2x2x1
jax: 0.10.0
libtpu: 0.0.40
codegen_flags: <defaults>
</compile_context>

<pallas_src>
import jax
import jax.numpy as jnp
from jax.experimental import pallas as pl
from jax.experimental.pallas import tpu as pltpu

MEL_DIM = 40
NEG_INF = -1e30
LN_EPS = 1e-5
BN_EPS = 1e-5


# -----------------------------------------------------------------------------
# Shared math helpers (used both inside the Pallas kernel and by the pure-JAX
# reference so both paths perform comparable arithmetic).
# -----------------------------------------------------------------------------

def _mm(a, b):
    """MXU matmul: bf16 operands, f32 accumulation."""
    return jnp.dot(a.astype(jnp.bfloat16), b.astype(jnp.bfloat16),
                   preferred_element_type=jnp.float32)


def _layer_norm(x, g, b):
    mu = jnp.mean(x, axis=-1, keepdims=True)
    var = jnp.mean((x - mu) ** 2, axis=-1, keepdims=True)
    return (x - mu) * jax.lax.rsqrt(var + LN_EPS) * g + b


def _sigmoid(x):
    return 1.0 / (1.0 + jnp.exp(-x))


def _silu(x):
    return x * _sigmoid(x)


# -----------------------------------------------------------------------------
# Fused Pallas kernel
# -----------------------------------------------------------------------------

_WKEYS = (
    "prenet_w", "prenet_b",
    "ffn1_ln_g", "ffn1_ln_b", "ffn1_w1", "ffn1_b1", "ffn1_w2", "ffn1_b2",
    "attn_ln_g", "attn_ln_b", "wqkv", "bqkv", "wo_h", "bo",
    "conv_ln_g", "conv_ln_b", "pw1_w", "pw1_b", "dw_w", "dw_b",
    "bn_scale", "bn_shift", "pw2_w", "pw2_b",
    "ffn2_ln_g", "ffn2_ln_b", "ffn2_w1", "ffn2_b1", "ffn2_w2", "ffn2_b2",
    "final_ln_g", "final_ln_b",
    "pool_w", "pool_b",
    "pred_w", "pred_b",
)


def _conformer_attnpool_kernel(lens_ref, mels_ref, *args):
    """One batch element per grid step: prenet -> nlayers Conformer layers ->
    attention pooling -> classifier, all resident in VMEM."""
    w = dict(zip(_WKEYS, args[:len(_WKEYS)]))
    out_ref = args[len(_WKEYS)]

    mels = mels_ref[0]                                    # (T, MEL) f32
    T = mels.shape[0]
    D = w["prenet_b"].shape[-1]
    nlayers = w["ffn1_w1"].shape[0]
    nhead = w["wo_h"].shape[1]
    ksize = w["dw_w"].shape[1]
    hd = D // nhead
    scale = hd ** -0.5
    pad = (ksize - 1) // 2

    # key-padding mask from the prefetched lengths (True = valid key position)
    length = lens_ref[pl.program_id(0)]
    key_valid = jax.lax.broadcasted_iota(jnp.int32, (1, 1, T), 2) < length

    # --- prenet: Linear(MEL -> D) ------------------------------------------
    x = _mm(mels, w["prenet_w"][...]) + w["prenet_b"][...]          # (T, D) f32

    for l in range(nlayers):   # static unroll; weights indexed on the stacked layer axis
        # --- feed-forward module 1 (half-step residual) ---------------------
        y = _layer_norm(x, w["ffn1_ln_g"][l], w["ffn1_ln_b"][l])
        y = _silu(_mm(y, w["ffn1_w1"][l]) + w["ffn1_b1"][l])
        y = _mm(y, w["ffn1_w2"][l]) + w["ffn1_b2"][l]
        x = x + 0.5 * y

        # --- multi-head self-attention --------------------------------------
        xa = _layer_norm(x, w["attn_ln_g"][l], w["attn_ln_b"][l])
        qkv = _mm(xa, w["wqkv"][l]) + w["bqkv"][l]                  # (T, 3D)
        # head axis as a leading batch dim -> batched MXU einsums
        q = jnp.stack([qkv[:, h * hd:(h + 1) * hd] for h in range(nhead)], axis=0)
        k = jnp.stack([qkv[:, D + h * hd:D + (h + 1) * hd] for h in range(nhead)], axis=0)
        v = jnp.stack([qkv[:, 2 * D + h * hd:2 * D + (h + 1) * hd] for h in range(nhead)], axis=0)
        s = jnp.einsum("hqd,hkd->hqk", q.astype(jnp.bfloat16), k.astype(jnp.bfloat16),
                       preferred_element_type=jnp.float32) * scale  # (nhead, T, T)
        s = jnp.where(key_valid, s, NEG_INF)
        s = s - jnp.max(s, axis=-1, keepdims=True)
        p = jnp.exp(s)
        p = p * pl.reciprocal(jnp.sum(p, axis=-1, keepdims=True), approx=True)
        ctx = jnp.einsum("hqk,hkd->hqd", p.astype(jnp.bfloat16), v.astype(jnp.bfloat16),
                         preferred_element_type=jnp.float32)        # (nhead, T, hd)
        wo_h = w["wo_h"][l]                                         # (nhead, hd, D)
        attn = w["bo"][l]                                           # (1, D)
        for h in range(nhead):   # accumulate the out-projection per head: no lane-dim concat
            attn = attn + _mm(ctx[h], wo_h[h])
        x = x + attn

        # --- convolution module ----------------------------------------------
        y = _layer_norm(x, w["conv_ln_g"][l], w["conv_ln_b"][l])
        y = _mm(y, w["pw1_w"][l]) + w["pw1_b"][l]                   # pointwise conv -> (T, 2D)
        y = y[:, :D] * _sigmoid(y[:, D:])                           # GLU over channels
        ypad = jnp.concatenate(
            [jnp.zeros((pad, D), jnp.float32), y, jnp.zeros((pad, D), jnp.float32)],
            axis=0)
        dw = w["dw_w"][l]                                           # (K, D)
        acc = jnp.zeros((T, D), jnp.float32)
        for j in range(ksize):   # depthwise conv = K shifted VPU multiply-adds
            acc = acc + ypad[j:j + T, :] * dw[j:j + 1, :]
        y = acc + w["dw_b"][l]
        y = y * w["bn_scale"][l] + w["bn_shift"][l]                 # BatchNorm1d (eval, running stats folded)
        y = _silu(y)
        y = _mm(y, w["pw2_w"][l]) + w["pw2_b"][l]                   # pointwise conv
        x = x + y

        # --- feed-forward module 2 (half-step residual) ----------------------
        y = _layer_norm(x, w["ffn2_ln_g"][l], w["ffn2_ln_b"][l])
        y = _silu(_mm(y, w["ffn2_w1"][l]) + w["ffn2_b1"][l])
        y = _mm(y, w["ffn2_w2"][l]) + w["ffn2_b2"][l]
        x = x + 0.5 * y

        # --- final layer norm of the conformer block --------------------------
        x = _layer_norm(x, w["final_ln_g"][l], w["final_ln_b"][l])

    # --- attention pooling over time (Linear(D,1) -> softmax over T) ----------
    logit = jnp.sum(x * w["pool_w"][...], axis=-1, keepdims=True) + w["pool_b"][...]  # (T, 1)
    logit = logit - jnp.max(logit, axis=0, keepdims=True)
    e = jnp.exp(logit)
    aw = e * pl.reciprocal(jnp.sum(e, axis=0, keepdims=True), approx=True)
    pooled = jnp.sum(aw * x, axis=0, keepdims=True)                                   # (1, D)

    # --- classifier (lane dim padded to a multiple of 128 for unmasked stores) -
    out_ref[0] = _mm(pooled, w["pred_w"][...]) + w["pred_b"][...]


def _full_block_spec(arr):
    nd = arr.ndim

    def idx(*_):  # index_map also receives the scalar-prefetch ref; ignore everything
        return (0,) * nd

    return pl.BlockSpec(arr.shape, idx)


def conformer_attn_pool_forward(prep, mels, lens, n_spks):
    """Fused forward pass: one pallas_call, grid over the batch."""
    B, T, mel = mels.shape
    weights = [prep[k] for k in _WKEYS]
    n_pad = prep["pred_w"].shape[-1]
    din = prep["prenet_w"].shape[-1]
    dfc = prep["ffn1_b1"].shape[-1]
    nlayers = prep["ffn1_w1"].shape[0]
    nhead = prep["wo_h"].shape[1]
    ksize = prep["dw_w"].shape[1]

    in_specs = [pl.BlockSpec((1, T, mel), lambda b, lens_ref: (b, 0, 0))]
    in_specs += [_full_block_spec(a) for a in weights]
    out_spec = pl.BlockSpec((1, 1, n_pad), lambda b, lens_ref: (b, 0, 0))

    # advisory cost hint so XLA schedules surrounding ops around the custom call
    matmul_w = sum(int(prep[k].size) for k in
                   ("prenet_w", "wqkv", "wo_h", "pw1_w", "pw2_w",
                    "ffn1_w1", "ffn1_w2", "ffn2_w1", "ffn2_w2"))
    flops = B * (2 * T * matmul_w
                 + nlayers * (4 * T * T * din + 2 * T * din * ksize)
                 + 2 * din * n_pad)
    transcendentals = B * (nlayers * (nhead * T * T + 3 * T * din + 2 * T * dfc) + T)
    bytes_accessed = (sum(int(a.size) * a.dtype.itemsize for a in weights)
                      + int(mels.size) * 4 + int(lens.size) * 4 + B * n_pad * 4)

    out = pl.pallas_call(
        _conformer_attnpool_kernel,
        out_shape=jax.ShapeDtypeStruct((B, 1, n_pad), jnp.float32),
        grid_spec=pltpu.PrefetchScalarGridSpec(
            num_scalar_prefetch=1,
            grid=(B,),
            in_specs=in_specs,
            out_specs=out_spec,
        ),
        compiler_params=pltpu.CompilerParams(
            dimension_semantics=("parallel",),
        ),
        cost_estimate=pl.CostEstimate(flops=int(flops),
                                      transcendentals=int(transcendentals),
                                      bytes_accessed=int(bytes_accessed)),
    )(lens, mels, *weights)
    return out[:, 0, :n_spks]


# -----------------------------------------------------------------------------
# Parameter construction (PyTorch layout) and host-side layout plumbing
# -----------------------------------------------------------------------------

def init_torch_params(key, din, dfc, nhead, nlayers, ksize, n_spks, mel_dim=MEL_DIM):
    """Random parameters in PyTorch layout: Linear/Conv weights are (out, in)."""
    keys = iter(jax.random.split(key, 256))
    s = 0.08

    def rnd(*shape):
        return s * jax.random.normal(next(keys), shape, dtype=jnp.float32)

    p = {
        "prenet_w": rnd(din, mel_dim), "prenet_b": rnd(din),
        "pool_w": rnd(1, din), "pool_b": rnd(1),
        "pred_w": rnd(n_spks, din), "pred_b": rnd(n_spks),
        "layers": [],
    }
    for _ in range(nlayers):
        p["layers"].append(dict(
            ffn1_ln_g=1.0 + rnd(din), ffn1_ln_b=rnd(din),
            ffn1_w1=rnd(dfc, din), ffn1_b1=rnd(dfc),
            ffn1_w2=rnd(din, dfc), ffn1_b2=rnd(din),
            attn_ln_g=1.0 + rnd(din), attn_ln_b=rnd(din),
            attn_in_w=rnd(3 * din, din), attn_in_b=rnd(3 * din),
            attn_out_w=rnd(din, din), attn_out_b=rnd(din),
            conv_ln_g=1.0 + rnd(din), conv_ln_b=rnd(din),
            pw1_w=rnd(2 * din, din), pw1_b=rnd(2 * din),
            dw_w=rnd(din, ksize), dw_b=rnd(din),   # depthwise Conv1d weight (din,1,K) squeezed
            bn_g=1.0 + rnd(din), bn_b=rnd(din),
            bn_rm=rnd(din), bn_rv=1.0 + jnp.abs(rnd(din)),
            pw2_w=rnd(din, din), pw2_b=rnd(din),
            ffn2_ln_g=1.0 + rnd(din), ffn2_ln_b=rnd(din),
            ffn2_w1=rnd(dfc, din), ffn2_b1=rnd(dfc),
            ffn2_w2=rnd(din, dfc), ffn2_b2=rnd(din),
            final_ln_g=1.0 + rnd(din), final_ln_b=rnd(din),
        ))
    return p


def prepare_params(p, *, nhead, n_pad):
    """Host-side layout plumbing: transpose weights to (in, out), reshape the
    attention out-projection per head, fold eval-mode BatchNorm into a per-channel
    scale/shift, pad the classifier lane dim, stack per-layer weights on a leading
    layer axis, and cast MXU operands to bf16."""
    bf16, f32 = jnp.bfloat16, jnp.float32
    din = p["prenet_w"].shape[0]
    n_spks = p["pred_w"].shape[0]
    hd = din // nhead

    def row(v):
        return v.reshape(1, -1).astype(f32)

    def stack(fn, dtype=f32):
        return jnp.stack([fn(lp) for lp in p["layers"]], axis=0).astype(dtype)

    rsq = lambda lp: jax.lax.rsqrt(lp["bn_rv"] + BN_EPS)

    return {
        "prenet_w": p["prenet_w"].T.astype(bf16),
        "prenet_b": row(p["prenet_b"]),
        "pool_w": p["pool_w"].astype(f32),                       # (1, D), VPU operand -> f32
        "pool_b": p["pool_b"].reshape(1, 1).astype(f32),
        "pred_w": jnp.pad(p["pred_w"].T, ((0, 0), (0, n_pad - n_spks))).astype(bf16),
        "pred_b": jnp.pad(row(p["pred_b"]), ((0, 0), (0, n_pad - n_spks))),
        "ffn1_ln_g": stack(lambda lp: row(lp["ffn1_ln_g"])),
        "ffn1_ln_b": stack(lambda lp: row(lp["ffn1_ln_b"])),
        "ffn1_w1": stack(lambda lp: lp["ffn1_w1"].T, bf16),
        "ffn1_b1": stack(lambda lp: row(lp["ffn1_b1"])),
        "ffn1_w2": stack(lambda lp: lp["ffn1_w2"].T, bf16),
        "ffn1_b2": stack(lambda lp: row(lp["ffn1_b2"])),
        "attn_ln_g": stack(lambda lp: row(lp["attn_ln_g"])),
        "attn_ln_b": stack(lambda lp: row(lp["attn_ln_b"])),
        "wqkv": stack(lambda lp: lp["attn_in_w"].T, bf16),        # (L, D, 3D)
        "bqkv": stack(lambda lp: row(lp["attn_in_b"])),
        "wo_h": stack(lambda lp: lp["attn_out_w"].T.reshape(nhead, hd, din), bf16),
        "bo": stack(lambda lp: row(lp["attn_out_b"])),
        "conv_ln_g": stack(lambda lp: row(lp["conv_ln_g"])),
        "conv_ln_b": stack(lambda lp: row(lp["conv_ln_b"])),
        "pw1_w": stack(lambda lp: lp["pw1_w"].T, bf16),           # (L, D, 2D)
        "pw1_b": stack(lambda lp: row(lp["pw1_b"])),
        "dw_w": stack(lambda lp: lp["dw_w"].T),                   # (L, K, D), VPU operand -> f32
        "dw_b": stack(lambda lp: row(lp["dw_b"])),
        "bn_scale": stack(lambda lp: row(lp["bn_g"] * rsq(lp))),
        "bn_shift": stack(lambda lp: row(lp["bn_b"] - lp["bn_rm"] * lp["bn_g"] * rsq(lp))),
        "pw2_w": stack(lambda lp: lp["pw2_w"].T, bf16),
        "pw2_b": stack(lambda lp: row(lp["pw2_b"])),
        "ffn2_ln_g": stack(lambda lp: row(lp["ffn2_ln_g"])),
        "ffn2_ln_b": stack(lambda lp: row(lp["ffn2_ln_b"])),
        "ffn2_w1": stack(lambda lp: lp["ffn2_w1"].T, bf16),
        "ffn2_b1": stack(lambda lp: row(lp["ffn2_b1"])),
        "ffn2_w2": stack(lambda lp: lp["ffn2_w2"].T, bf16),
        "ffn2_b2": stack(lambda lp: row(lp["ffn2_b2"])),
        "final_ln_g": stack(lambda lp: row(lp["final_ln_g"])),
        "final_ln_b": stack(lambda lp: row(lp["final_ln_b"])),
    }


# -----------------------------------------------------------------------------
# Pure-JAX reference (PyTorch / torchaudio eval-mode op ordering, torch-layout
# weights; MXU matmuls mirror the kernel's bf16-in / f32-acc behavior).
# -----------------------------------------------------------------------------

def reference_forward(p, mels, lens, *, nhead, ksize):
    B, T, _ = mels.shape
    din = p["prenet_w"].shape[0]
    hd = din // nhead
    scale = hd ** -0.5
    pad = (ksize - 1) // 2

    x = _mm(mels, p["prenet_w"].T) + p["prenet_b"]
    key_valid = (jnp.arange(T)[None, :] < lens[:, None])[:, None, None, :]   # (B,1,1,T)

    for lp in p["layers"]:
        # FFN module 1
        y = _layer_norm(x, lp["ffn1_ln_g"], lp["ffn1_ln_b"])
        y = _silu(_mm(y, lp["ffn1_w1"].T) + lp["ffn1_b1"])
        y = _mm(y, lp["ffn1_w2"].T) + lp["ffn1_b2"]
        x = x + 0.5 * y
        # multi-head self-attention (key padding mask from lens)
        xa = _layer_norm(x, lp["attn_ln_g"], lp["attn_ln_b"])
        qkv = _mm(xa, lp["attn_in_w"].T) + lp["attn_in_b"]
        q, k, v = jnp.split(qkv, 3, axis=-1)
        q = q.reshape(B, T, nhead, hd).transpose(0, 2, 1, 3)
        k = k.reshape(B, T, nhead, hd).transpose(0, 2, 1, 3)
        v = v.reshape(B, T, nhead, hd).transpose(0, 2, 1, 3)
        s = jnp.einsum("bhqd,bhkd->bhqk", q.astype(jnp.bfloat16), k.astype(jnp.bfloat16),
                       preferred_element_type=jnp.float32) * scale
        s = jnp.where(key_valid, s, NEG_INF)
        s = s - jnp.max(s, axis=-1, keepdims=True)
        pr = jnp.exp(s)
        pr = pr / jnp.sum(pr, axis=-1, keepdims=True)
        ctx = jnp.einsum("bhqk,bhkd->bhqd", pr.astype(jnp.bfloat16), v.astype(jnp.bfloat16),
                         preferred_element_type=jnp.float32)
        ctx = ctx.transpose(0, 2, 1, 3).reshape(B, T, din)
        x = x + _mm(ctx, lp["attn_out_w"].T) + lp["attn_out_b"]
        # convolution module
        y = _layer_norm(x, lp["conv_ln_g"], lp["conv_ln_b"])
        y = _mm(y, lp["pw1_w"].T) + lp["pw1_b"]
        y = y[..., :din] * _sigmoid(y[..., din:])                 # GLU
        ypad = jnp.pad(y, ((0, 0), (pad, pad), (0, 0)))
        acc = jnp.zeros_like(y)
        for j in range(ksize):
            acc = acc + ypad[:, j:j + T, :] * lp["dw_w"][:, j][None, None, :]
        y = acc + lp["dw_b"]
        y = (y - lp["bn_rm"]) * jax.lax.rsqrt(lp["bn_rv"] + BN_EPS) * lp["bn_g"] + lp["bn_b"]
        y = _silu(y)
        y = _mm(y, lp["pw2_w"].T) + lp["pw2_b"]
        x = x + y
        # FFN module 2
        y = _layer_norm(x, lp["ffn2_ln_g"], lp["ffn2_ln_b"])
        y = _silu(_mm(y, lp["ffn2_w1"].T) + lp["ffn2_b1"])
        y = _mm(y, lp["ffn2_w2"].T) + lp["ffn2_b2"]
        x = x + 0.5 * y
        # final layer norm
        x = _layer_norm(x, lp["final_ln_g"], lp["final_ln_b"])

    logit = jnp.sum(x * p["pool_w"][0], axis=-1, keepdims=True) + p["pool_b"]  # (B,T,1)
    aw = jax.nn.softmax(logit, axis=1)
    pooled = jnp.sum(aw * x, axis=1)                                           # (B, din)
    return _mm(pooled, p["pred_w"].T) + p["pred_b"]


# -----------------------------------------------------------------------------

if __name__ == "__main__":
    B, T = 2, 8
    din, dfc, nhead, nlayers, ksize, n_spks = 32, 64, 2, 2, 3, 600

    key = jax.random.PRNGKey(0)
    k_param, k_mels = jax.random.split(key)
    torch_params = init_torch_params(k_param, din, dfc, nhead, nlayers, ksize, n_spks)
    n_pad = ((n_spks + 127) // 128) * 128            # 600 -> 640 lane padding
    prep = prepare_params(torch_params, nhead=nhead, n_pad=n_pad)

    mels = jax.random.normal(k_mels, (B, T, MEL_DIM), dtype=jnp.float32)
    lens = jnp.array([T, T - 2], dtype=jnp.int32)

    out = conformer_attn_pool_forward(prep, mels, lens, n_spks)
    out = jax.block_until_ready(out)
    assert out.shape == (B, n_spks), out.shape

    ref = reference_forward(torch_params, mels, lens, nhead=nhead, ksize=ksize)
    err = float(jnp.max(jnp.abs(out - ref)))
    # bf16 MXU inputs are mirrored in the reference; the remaining delta comes from
    # the approximate EUP reciprocal used for the softmax denominators.
    assert jnp.allclose(out, ref, rtol=2e-2, atol=2e-2), err

    print("KERNEL_OK")
</pallas_src>

<mosaic_0001>
module attributes {stable_mosaic.version = 11 : i64} {
  func.func @_conformer_attnpool_kernel(%arg0: i32, %arg1: memref<2xi32, #tpu.memory_space<smem>>, %arg2: memref<1x8x40xf32, #tpu.memory_space<vmem>>, %arg3: memref<40x32xbf16, #tpu.memory_space<vmem>>, %arg4: memref<1x32xf32, #tpu.memory_space<vmem>>, %arg5: memref<2x1x32xf32, #tpu.memory_space<vmem>>, %arg6: memref<2x1x32xf32, #tpu.memory_space<vmem>>, %arg7: memref<2x32x64xbf16, #tpu.memory_space<vmem>>, %arg8: memref<2x1x64xf32, #tpu.memory_space<vmem>>, %arg9: memref<2x64x32xbf16, #tpu.memory_space<vmem>>, %arg10: memref<2x1x32xf32, #tpu.memory_space<vmem>>, %arg11: memref<2x1x32xf32, #tpu.memory_space<vmem>>, %arg12: memref<2x1x32xf32, #tpu.memory_space<vmem>>, %arg13: memref<2x32x96xbf16, #tpu.memory_space<vmem>>, %arg14: memref<2x1x96xf32, #tpu.memory_space<vmem>>, %arg15: memref<2x2x16x32xbf16, #tpu.memory_space<vmem>>, %arg16: memref<2x1x32xf32, #tpu.memory_space<vmem>>, %arg17: memref<2x1x32xf32, #tpu.memory_space<vmem>>, %arg18: memref<2x1x32xf32, #tpu.memory_space<vmem>>, %arg19: memref<2x32x64xbf16, #tpu.memory_space<vmem>>, %arg20: memref<2x1x64xf32, #tpu.memory_space<vmem>>, %arg21: memref<2x3x32xf32, #tpu.memory_space<vmem>>, %arg22: memref<2x1x32xf32, #tpu.memory_space<vmem>>, %arg23: memref<2x1x32xf32, #tpu.memory_space<vmem>>, %arg24: memref<2x1x32xf32, #tpu.memory_space<vmem>>, %arg25: memref<2x32x32xbf16, #tpu.memory_space<vmem>>, %arg26: memref<2x1x32xf32, #tpu.memory_space<vmem>>, %arg27: memref<2x1x32xf32, #tpu.memory_space<vmem>>, %arg28: memref<2x1x32xf32, #tpu.memory_space<vmem>>, %arg29: memref<2x32x64xbf16, #tpu.memory_space<vmem>>, %arg30: memref<2x1x64xf32, #tpu.memory_space<vmem>>, %arg31: memref<2x64x32xbf16, #tpu.memory_space<vmem>>, %arg32: memref<2x1x32xf32, #tpu.memory_space<vmem>>, %arg33: memref<2x1x32xf32, #tpu.memory_space<vmem>>, %arg34: memref<2x1x32xf32, #tpu.memory_space<vmem>>, %arg35: memref<1x32xf32, #tpu.memory_space<vmem>>, %arg36: memref<1x1xf32, #tpu.memory_space<vmem>>, %arg37: memref<32x640xbf16, #tpu.memory_space<vmem>>, %arg38: memref<1x640xf32, #tpu.memory_space<vmem>>, %arg39: memref<1x1x640xf32, #tpu.memory_space<vmem>>) attributes {dimension_semantics = [#tpu.dimension_semantics<parallel>], iteration_bounds = array<i64: 2>, scalar_prefetch = 1 : i64, scratch_operands = 0 : i64, tpu.core_type = #tpu.core_type<tc>, window_params = [{transform_indices = @transform_0, window_bounds = array<i64: 1, 8, 40>}, {pipeline_mode = #tpu.pipeline_mode<synchronous>, transform_indices = @transform_1, window_bounds = array<i64: 40, 32>}, {pipeline_mode = #tpu.pipeline_mode<synchronous>, transform_indices = @transform_2, window_bounds = array<i64: 1, 32>}, {pipeline_mode = #tpu.pipeline_mode<synchronous>, transform_indices = @transform_3, window_bounds = array<i64: 2, 1, 32>}, {pipeline_mode = #tpu.pipeline_mode<synchronous>, transform_indices = @transform_4, window_bounds = array<i64: 2, 1, 32>}, {pipeline_mode = #tpu.pipeline_mode<synchronous>, transform_indices = @transform_5, window_bounds = array<i64: 2, 32, 64>}, {pipeline_mode = #tpu.pipeline_mode<synchronous>, transform_indices = @transform_6, window_bounds = array<i64: 2, 1, 64>}, {pipeline_mode = #tpu.pipeline_mode<synchronous>, transform_indices = @transform_7, window_bounds = array<i64: 2, 64, 32>}, {pipeline_mode = #tpu.pipeline_mode<synchronous>, transform_indices = @transform_8, window_bounds = array<i64: 2, 1, 32>}, {pipeline_mode = #tpu.pipeline_mode<synchronous>, transform_indices = @transform_9, window_bounds = array<i64: 2, 1, 32>}, {pipeline_mode = #tpu.pipeline_mode<synchronous>, transform_indices = @transform_10, window_bounds = array<i64: 2, 1, 32>}, {pipeline_mode = #tpu.pipeline_mode<synchronous>, transform_indices = @transform_11, window_bounds = array<i64: 2, 32, 96>}, {pipeline_mode = #tpu.pipeline_mode<synchronous>, transform_indices = @transform_12, window_bounds = array<i64: 2, 1, 96>}, {pipeline_mode = #tpu.pipeline_mode<synchronous>, transform_indices = @transform_13, window_bounds = array<i64: 2, 2, 16, 32>}, {pipeline_mode = #tpu.pipeline_mode<synchronous>, transform_indices = @transform_14, window_bounds = array<i64: 2, 1, 32>}, {pipeline_mode = #tpu.pipeline_mode<synchronous>, transform_indices = @transform_15, window_bounds = array<i64: 2, 1, 32>}, {pipeline_mode = #tpu.pipeline_mode<synchronous>, transform_indices = @transform_16, window_bounds = array<i64: 2, 1, 32>}, {pipeline_mode = #tpu.pipeline_mode<synchronous>, transform_indices = @transform_17, window_bounds = array<i64: 2, 32, 64>}, {pipeline_mode = #tpu.pipeline_mode<synchronous>, transform_indices = @transform_18, window_bounds = array<i64: 2, 1, 64>}, {pipeline_mode = #tpu.pipeline_mode<synchronous>, transform_indices = @transform_19, window_bounds = array<i64: 2, 3, 32>}, {pipeline_mode = #tpu.pipeline_mode<synchronous>, transform_indices = @transform_20, window_bounds = array<i64: 2, 1, 32>}, {pipeline_mode = #tpu.pipeline_mode<synchronous>, transform_indices = @transform_21, window_bounds = array<i64: 2, 1, 32>}, {pipeline_mode = #tpu.pipeline_mode<synchronous>, transform_indices = @transform_22, window_bounds = array<i64: 2, 1, 32>}, {pipeline_mode = #tpu.pipeline_mode<synchronous>, transform_indices = @transform_23, window_bounds = array<i64: 2, 32, 32>}, {pipeline_mode = #tpu.pipeline_mode<synchronous>, transform_indices = @transform_24, window_bounds = array<i64: 2, 1, 32>}, {pipeline_mode = #tpu.pipeline_mode<synchronous>, transform_indices = @transform_25, window_bounds = array<i64: 2, 1, 32>}, {pipeline_mode = #tpu.pipeline_mode<synchronous>, transform_indices = @transform_26, window_bounds = array<i64: 2, 1, 32>}, {pipeline_mode = #tpu.pipeline_mode<synchronous>, transform_indices = @transform_27, window_bounds = array<i64: 2, 32, 64>}, {pipeline_mode = #tpu.pipeline_mode<synchronous>, transform_indices = @transform_28, window_bounds = array<i64: 2, 1, 64>}, {pipeline_mode = #tpu.pipeline_mode<synchronous>, transform_indices = @transform_29, window_bounds = array<i64: 2, 64, 32>}, {pipeline_mode = #tpu.pipeline_mode<synchronous>, transform_indices = @transform_30, window_bounds = array<i64: 2, 1, 32>}, {pipeline_mode = #tpu.pipeline_mode<synchronous>, transform_indices = @transform_31, window_bounds = array<i64: 2, 1, 32>}, {pipeline_mode = #tpu.pipeline_mode<synchronous>, transform_indices = @transform_32, window_bounds = array<i64: 2, 1, 32>}, {pipeline_mode = #tpu.pipeline_mode<synchronous>, transform_indices = @transform_33, window_bounds = array<i64: 1, 32>}, {pipeline_mode = #tpu.pipeline_mode<synchronous>, transform_indices = @transform_34, window_bounds = array<i64: 1, 1>}, {pipeline_mode = #tpu.pipeline_mode<synchronous>, transform_indices = @transform_35, window_bounds = array<i64: 32, 640>}, {pipeline_mode = #tpu.pipeline_mode<synchronous>, transform_indices = @transform_36, window_bounds = array<i64: 1, 640>}, {transform_indices = @transform_37, window_bounds = array<i64: 1, 1, 640>}]} {
    %c0 = arith.constant 0 : index
    %c0_0 = arith.constant 0 : index
    %c0_1 = arith.constant 0 : index
    %0 = vector.load %arg2[%c0, %c0_0, %c0_1] : memref<1x8x40xf32, #tpu.memory_space<vmem>>, vector<1x8x40xf32>
    %1 = vector.shape_cast %0 : vector<1x8x40xf32> to vector<8x40xf32>
    %2 = arith.index_cast %arg0 : i32 to index
    %3 = memref.load %arg1[%2] : memref<2xi32, #tpu.memory_space<smem>>
    %4 = tpu.iota {dimensions = array<i32: 2>} : vector<1x1x8xi32>
    %5 = vector.broadcast %3 : i32 to vector<1x1x8xi32>
    %6 = arith.cmpi slt, %4, %5 : vector<1x1x8xi32>
    %c0_2 = arith.constant 0 : index
    %c0_3 = arith.constant 0 : index
    %7 = vector.load %arg3[%c0_2, %c0_3] : memref<40x32xbf16, #tpu.memory_space<vmem>>, vector<40x32xbf16>
    %8 = arith.truncf %1 : vector<8x40xf32> to vector<8x40xbf16>
    %cst = arith.constant dense<0.000000e+00> : vector<8x32xf32>
    %9 = tpu.matmul %8, %7, %cst {dimension_numbers = #tpu.dot_dimension_numbers<[1], [0], [0], [1], [0, 0, 1, 1], [], []>} : vector<8x40xbf16>, vector<40x32xbf16>, vector<8x32xf32> -> vector<8x32xf32>
    %c0_4 = arith.constant 0 : index
    %c0_5 = arith.constant 0 : index
    %10 = vector.load %arg4[%c0_4, %c0_5] : memref<1x32xf32, #tpu.memory_space<vmem>>, vector<1x32xf32>
    %11 = vector.broadcast %10 : vector<1x32xf32> to vector<8x32xf32>
    %12 = arith.addf %9, %11 : vector<8x32xf32>
    %c0_6 = arith.constant 0 : index
    %c0_7 = arith.constant 0 : index
    %c0_8 = arith.constant 0 : index
    %13 = vector.load %arg5[%c0_6, %c0_7, %c0_8] : memref<2x1x32xf32, #tpu.memory_space<vmem>>, vector<1x1x32xf32>
    %14 = vector.shape_cast %13 : vector<1x1x32xf32> to vector<1x32xf32>
    %c0_9 = arith.constant 0 : index
    %c0_10 = arith.constant 0 : index
    %c0_11 = arith.constant 0 : index
    %15 = vector.load %arg6[%c0_9, %c0_10, %c0_11] : memref<2x1x32xf32, #tpu.memory_space<vmem>>, vector<1x1x32xf32>
    %16 = vector.shape_cast %15 : vector<1x1x32xf32> to vector<1x32xf32>
    %cst_12 = arith.constant dense<0.000000e+00> : vector<8xf32>
    %17 = vector.multi_reduction <add>, %12, %cst_12 [1] : vector<8x32xf32> to vector<8xf32>
    %18 = vector.shape_cast %17 : vector<8xf32> to vector<8x1xf32>
    %cst_13 = arith.constant 3.200000e+01 : f32
    %19 = vector.broadcast %cst_13 : f32 to vector<8x1xf32>
    %20 = arith.divf %18, %19 : vector<8x1xf32>
    %21 = vector.broadcast %20 : vector<8x1xf32> to vector<8x32xf32>
    %22 = arith.subf %12, %21 : vector<8x32xf32>
    %23 = arith.mulf %22, %22 : vector<8x32xf32>
    %cst_14 = arith.constant dense<0.000000e+00> : vector<8xf32>
    %24 = vector.multi_reduction <add>, %23, %cst_14 [1] : vector<8x32xf32> to vector<8xf32>
    %25 = vector.shape_cast %24 : vector<8xf32> to vector<8x1xf32>
    %cst_15 = arith.constant 3.200000e+01 : f32
    %26 = vector.broadcast %cst_15 : f32 to vector<8x1xf32>
    %27 = arith.divf %25, %26 : vector<8x1xf32>
    %28 = vector.broadcast %20 : vector<8x1xf32> to vector<8x32xf32>
    %29 = arith.subf %12, %28 : vector<8x32xf32>
    %cst_16 = arith.constant 9.99999974E-6 : f32
    %30 = vector.broadcast %cst_16 : f32 to vector<8x1xf32>
    %31 = arith.addf %27, %30 : vector<8x1xf32>
    %32 = math.rsqrt %31 : vector<8x1xf32>
    %33 = vector.broadcast %32 : vector<8x1xf32> to vector<8x32xf32>
    %34 = arith.mulf %29, %33 : vector<8x32xf32>
    %35 = vector.broadcast %14 : vector<1x32xf32> to vector<8x32xf32>
    %36 = arith.mulf %34, %35 : vector<8x32xf32>
    %37 = vector.broadcast %16 : vector<1x32xf32> to vector<8x32xf32>
    %38 = arith.addf %36, %37 : vector<8x32xf32>
    %c0_17 = arith.constant 0 : index
    %c0_18 = arith.constant 0 : index
    %c0_19 = arith.constant 0 : index
    %39 = vector.load %arg7[%c0_17, %c0_18, %c0_19] : memref<2x32x64xbf16, #tpu.memory_space<vmem>>, vector<1x32x64xbf16>
    %40 = vector.shape_cast %39 : vector<1x32x64xbf16> to vector<32x64xbf16>
    %41 = arith.truncf %38 : vector<8x32xf32> to vector<8x32xbf16>
    %cst_20 = arith.constant dense<0.000000e+00> : vector<8x64xf32>
    %42 = tpu.matmul %41, %40, %cst_20 {dimension_numbers = #tpu.dot_dimension_numbers<[1], [0], [0], [1], [0, 0, 1, 1], [], []>} : vector<8x32xbf16>, vector<32x64xbf16>, vector<8x64xf32> -> vector<8x64xf32>
    %c0_21 = arith.constant 0 : index
    %c0_22 = arith.constant 0 : index
    %c0_23 = arith.constant 0 : index
    %43 = vector.load %arg8[%c0_21, %c0_22, %c0_23] : memref<2x1x64xf32, #tpu.memory_space<vmem>>, vector<1x1x64xf32>
    %44 = vector.shape_cast %43 : vector<1x1x64xf32> to vector<1x64xf32>
    %45 = vector.broadcast %44 : vector<1x64xf32> to vector<8x64xf32>
    %46 = arith.addf %42, %45 : vector<8x64xf32>
    %cst_24 = arith.constant 0.000000e+00 : f32
    %47 = vector.broadcast %cst_24 : f32 to vector<8x64xf32>
    %48 = arith.subf %47, %46 : vector<8x64xf32>
    %49 = math.exp %48 : vector<8x64xf32>
    %cst_25 = arith.constant 1.000000e+00 : f32
    %50 = vector.broadcast %cst_25 : f32 to vector<8x64xf32>
    %51 = arith.addf %50, %49 : vector<8x64xf32>
    %cst_26 = arith.constant 1.000000e+00 : f32
    %52 = vector.broadcast %cst_26 : f32 to vector<8x64xf32>
    %53 = arith.divf %52, %51 : vector<8x64xf32>
    %54 = arith.mulf %46, %53 : vector<8x64xf32>
    %c0_27 = arith.constant 0 : index
    %c0_28 = arith.constant 0 : index
    %c0_29 = arith.constant 0 : index
    %55 = vector.load %arg9[%c0_27, %c0_28, %c0_29] : memref<2x64x32xbf16, #tpu.memory_space<vmem>>, vector<1x64x32xbf16>
    %56 = vector.shape_cast %55 : vector<1x64x32xbf16> to vector<64x32xbf16>
    %57 = arith.truncf %54 : vector<8x64xf32> to vector<8x64xbf16>
    %cst_30 = arith.constant dense<0.000000e+00> : vector<8x32xf32>
    %58 = tpu.matmul %57, %56, %cst_30 {dimension_numbers = #tpu.dot_dimension_numbers<[1], [0], [0], [1], [0, 0, 1, 1], [], []>} : vector<8x64xbf16>, vector<64x32xbf16>, vector<8x32xf32> -> vector<8x32xf32>
    %c0_31 = arith.constant 0 : index
    %c0_32 = arith.constant 0 : index
    %c0_33 = arith.constant 0 : index
    %59 = vector.load %arg10[%c0_31, %c0_32, %c0_33] : memref<2x1x32xf32, #tpu.memory_space<vmem>>, vector<1x1x32xf32>
    %60 = vector.shape_cast %59 : vector<1x1x32xf32> to vector<1x32xf32>
    %61 = vector.broadcast %60 : vector<1x32xf32> to vector<8x32xf32>
    %62 = arith.addf %58, %61 : vector<8x32xf32>
    %cst_34 = arith.constant 5.000000e-01 : f32
    %63 = vector.broadcast %cst_34 : f32 to vector<8x32xf32>
    %64 = arith.mulf %63, %62 : vector<8x32xf32>
    %65 = arith.addf %12, %64 : vector<8x32xf32>
    %c0_35 = arith.constant 0 : index
    %c0_36 = arith.constant 0 : index
    %c0_37 = arith.constant 0 : index
    %66 = vector.load %arg11[%c0_35, %c0_36, %c0_37] : memref<2x1x32xf32, #tpu.memory_space<vmem>>, vector<1x1x32xf32>
    %67 = vector.shape_cast %66 : vector<1x1x32xf32> to vector<1x32xf32>
    %c0_38 = arith.constant 0 : index
    %c0_39 = arith.constant 0 : index
    %c0_40 = arith.constant 0 : index
    %68 = vector.load %arg12[%c0_38, %c0_39, %c0_40] : memref<2x1x32xf32, #tpu.memory_space<vmem>>, vector<1x1x32xf32>
    %69 = vector.shape_cast %68 : vector<1x1x32xf32> to vector<1x32xf32>
    %cst_41 = arith.constant dense<0.000000e+00> : vector<8xf32>
    %70 = vector.multi_reduction <add>, %65, %cst_41 [1] : vector<8x32xf32> to vector<8xf32>
    %71 = vector.shape_cast %70 : vector<8xf32> to vector<8x1xf32>
    %cst_42 = arith.constant 3.200000e+01 : f32
    %72 = vector.broadcast %cst_42 : f32 to vector<8x1xf32>
    %73 = arith.divf %71, %72 : vector<8x1xf32>
    %74 = vector.broadcast %73 : vector<8x1xf32> to vector<8x32xf32>
    %75 = arith.subf %65, %74 : vector<8x32xf32>
    %76 = arith.mulf %75, %75 : vector<8x32xf32>
    %cst_43 = arith.constant dense<0.000000e+00> : vector<8xf32>
    %77 = vector.multi_reduction <add>, %76, %cst_43 [1] : vector<8x32xf32> to vector<8xf32>
    %78 = vector.shape_cast %77 : vector<8xf32> to vector<8x1xf32>
    %cst_44 = arith.constant 3.200000e+01 : f32
    %79 = vector.broadcast %cst_44 : f32 to vector<8x1xf32>
    %80 = arith.divf %78, %79 : vector<8x1xf32>
    %81 = vector.broadcast %73 : vector<8x1xf32> to vector<8x32xf32>
    %82 = arith.subf %65, %81 : vector<8x32xf32>
    %cst_45 = arith.constant 9.99999974E-6 : f32
    %83 = vector.broadcast %cst_45 : f32 to vector<8x1xf32>
    %84 = arith.addf %80, %83 : vector<8x1xf32>
    %85 = math.rsqrt %84 : vector<8x1xf32>
    %86 = vector.broadcast %85 : vector<8x1xf32> to vector<8x32xf32>
    %87 = arith.mulf %82, %86 : vector<8x32xf32>
    %88 = vector.broadcast %67 : vector<1x32xf32> to vector<8x32xf32>
    %89 = arith.mulf %87, %88 : vector<8x32xf32>
    %90 = vector.broadcast %69 : vector<1x32xf32> to vector<8x32xf32>
    %91 = arith.addf %89, %90 : vector<8x32xf32>
    %c0_46 = arith.constant 0 : index
    %c0_47 = arith.constant 0 : index
    %c0_48 = arith.constant 0 : index
    %92 = vector.load %arg13[%c0_46, %c0_47, %c0_48] : memref<2x32x96xbf16, #tpu.memory_space<vmem>>, vector<1x32x96xbf16>
    %93 = vector.shape_cast %92 : vector<1x32x96xbf16> to vector<32x96xbf16>
    %94 = arith.truncf %91 : vector<8x32xf32> to vector<8x32xbf16>
    %cst_49 = arith.constant dense<0.000000e+00> : vector<8x96xf32>
    %95 = tpu.matmul %94, %93, %cst_49 {dimension_numbers = #tpu.dot_dimension_numbers<[1], [0], [0], [1], [0, 0, 1, 1], [], []>} : vector<8x32xbf16>, vector<32x96xbf16>, vector<8x96xf32> -> vector<8x96xf32>
    %c0_50 = arith.constant 0 : index
    %c0_51 = arith.constant 0 : index
    %c0_52 = arith.constant 0 : index
    %96 = vector.load %arg14[%c0_50, %c0_51, %c0_52] : memref<2x1x96xf32, #tpu.memory_space<vmem>>, vector<1x1x96xf32>
    %97 = vector.shape_cast %96 : vector<1x1x96xf32> to vector<1x96xf32>
    %98 = vector.broadcast %97 : vector<1x96xf32> to vector<8x96xf32>
    %99 = arith.addf %95, %98 : vector<8x96xf32>
    %100 = vector.extract_strided_slice %99 {offsets = [0, 0], sizes = [8, 16], strides = [1, 1]} : vector<8x96xf32> to vector<8x16xf32>
    %101 = vector.extract_strided_slice %99 {offsets = [0, 16], sizes = [8, 16], strides = [1, 1]} : vector<8x96xf32> to vector<8x16xf32>
    %102 = vector.shape_cast %100 : vector<8x16xf32> to vector<1x8x16xf32>
    %103 = vector.shape_cast %101 : vector<8x16xf32> to vector<1x8x16xf32>
    %104 = tpu.concatenate %102, %103 in 0 : vector<1x8x16xf32>, vector<1x8x16xf32> -> vector<2x8x16xf32>
    %105 = vector.extract_strided_slice %99 {offsets = [0, 32], sizes = [8, 16], strides = [1, 1]} : vector<8x96xf32> to vector<8x16xf32>
    %106 = vector.extract_strided_slice %99 {offsets = [0, 48], sizes = [8, 16], strides = [1, 1]} : vector<8x96xf32> to vector<8x16xf32>
    %107 = vector.shape_cast %105 : vector<8x16xf32> to vector<1x8x16xf32>
    %108 = vector.shape_cast %106 : vector<8x16xf32> to vector<1x8x16xf32>
    %109 = tpu.concatenate %107, %108 in 0 : vector<1x8x16xf32>, vector<1x8x16xf32> -> vector<2x8x16xf32>
    %110 = vector.extract_strided_slice %99 {offsets = [0, 64], sizes = [8, 16], strides = [1, 1]} : vector<8x96xf32> to vector<8x16xf32>
    %111 = vector.extract_strided_slice %99 {offsets = [0, 80], sizes = [8, 16], strides = [1, 1]} : vector<8x96xf32> to vector<8x16xf32>
    %112 = vector.shape_cast %110 : vector<8x16xf32> to vector<1x8x16xf32>
    %113 = vector.shape_cast %111 : vector<8x16xf32> to vector<1x8x16xf32>
    %114 = tpu.concatenate %112, %113 in 0 : vector<1x8x16xf32>, vector<1x8x16xf32> -> vector<2x8x16xf32>
    %115 = arith.truncf %104 : vector<2x8x16xf32> to vector<2x8x16xbf16>
    %116 = arith.truncf %109 : vector<2x8x16xf32> to vector<2x8x16xbf16>
    "tpu.trace_start"() <{level = 10 : i32, message = "hqd,hkd->hqk"}> : () -> ()
    %cst_53 = arith.constant dense<0.000000e+00> : vector<2x8x8xf32>
    %117 = tpu.matmul %115, %116, %cst_53 {dimension_numbers = #tpu.dot_dimension_numbers<[2], [2], [1], [1], [0, 0, 0, 1, 1, 1], [0], [0]>} : vector<2x8x16xbf16>, vector<2x8x16xbf16>, vector<2x8x8xf32> -> vector<2x8x8xf32>
    "tpu.trace_stop"() : () -> ()
    %cst_54 = arith.constant 2.500000e-01 : f32
    %118 = vector.broadcast %cst_54 : f32 to vector<2x8x8xf32>
    %119 = arith.mulf %117, %118 : vector<2x8x8xf32>
    %cst_55 = arith.constant -1.000000e+30 : f32
    %120 = vector.shape_cast %6 : vector<1x1x8xi1> to vector<1x1x8xi1>
    %121 = vector.broadcast %120 : vector<1x1x8xi1> to vector<2x8x8xi1>
    %122 = vector.broadcast %cst_55 : f32 to vector<2x8x8xf32>
    %123 = arith.select %121, %119, %122 : vector<2x8x8xi1>, vector<2x8x8xf32>
    %cst_56 = arith.constant dense<0xFF800000> : vector<2x8xf32>
    %124 = vector.multi_reduction <maximumf>, %123, %cst_56 [2] : vector<2x8x8xf32> to vector<2x8xf32>
    %125 = vector.shape_cast %124 : vector<2x8xf32> to vector<2x8x1xf32>
    %126 = vector.broadcast %125 : vector<2x8x1xf32> to vector<2x8x8xf32>
    %127 = arith.subf %123, %126 : vector<2x8x8xf32>
    %128 = math.exp %127 : vector<2x8x8xf32>
    %cst_57 = arith.constant dense<0.000000e+00> : vector<2x8xf32>
    %129 = vector.multi_reduction <add>, %128, %cst_57 [2] : vector<2x8x8xf32> to vector<2x8xf32>
    %130 = vector.shape_cast %129 : vector<2x8xf32> to vector<2x8x1xf32>
    %131 = tpu.reciprocal %130 {approx = true} : vector<2x8x1xf32> -> vector<2x8x1xf32>
    %132 = vector.broadcast %131 : vector<2x8x1xf32> to vector<2x8x8xf32>
    %133 = arith.mulf %128, %132 : vector<2x8x8xf32>
    %134 = arith.truncf %133 : vector<2x8x8xf32> to vector<2x8x8xbf16>
    %135 = arith.truncf %114 : vector<2x8x16xf32> to vector<2x8x16xbf16>
    "tpu.trace_start"() <{level = 10 : i32, message = "hqk,hkd->hqd"}> : () -> ()
    %cst_58 = arith.constant dense<0.000000e+00> : vector<2x8x16xf32>
    %136 = tpu.matmul %134, %135, %cst_58 {dimension_numbers = #tpu.dot_dimension_numbers<[2], [1], [1], [2], [0, 0, 0, 1, 1, 2], [0], [0]>} : vector<2x8x8xbf16>, vector<2x8x16xbf16>, vector<2x8x16xf32> -> vector<2x8x16xf32>
    "tpu.trace_stop"() : () -> ()
    %c0_59 = arith.constant 0 : index
    %c0_60 = arith.constant 0 : index
    %c0_61 = arith.constant 0 : index
    %c0_62 = arith.constant 0 : index
    %137 = vector.load %arg15[%c0_59, %c0_60, %c0_61, %c0_62] : memref<2x2x16x32xbf16, #tpu.memory_space<vmem>>, vector<1x2x16x32xbf16>
    %138 = vector.shape_cast %137 : vector<1x2x16x32xbf16> to vector<2x16x32xbf16>
    %c0_63 = arith.constant 0 : index
    %c0_64 = arith.constant 0 : index
    %c0_65 = arith.constant 0 : index
    %139 = vector.load %arg16[%c0_63, %c0_64, %c0_65] : memref<2x1x32xf32, #tpu.memory_space<vmem>>, vector<1x1x32xf32>
    %140 = vector.shape_cast %139 : vector<1x1x32xf32> to vector<1x32xf32>
    %141 = vector.extract_strided_slice %136 {offsets = [0, 0, 0], sizes = [1, 8, 16], strides = [1, 1, 1]} : vector<2x8x16xf32> to vector<1x8x16xf32>
    %142 = vector.shape_cast %141 : vector<1x8x16xf32> to vector<8x16xf32>
    %143 = vector.extract_strided_slice %138 {offsets = [0, 0, 0], sizes = [1, 16, 32], strides = [1, 1, 1]} : vector<2x16x32xbf16> to vector<1x16x32xbf16>
    %144 = vector.shape_cast %143 : vector<1x16x32xbf16> to vector<16x32xbf16>
    %145 = arith.truncf %142 : vector<8x16xf32> to vector<8x16xbf16>
    %cst_66 = arith.constant dense<0.000000e+00> : vector<8x32xf32>
    %146 = tpu.matmul %145, %144, %cst_66 {dimension_numbers = #tpu.dot_dimension_numbers<[1], [0], [0], [1], [0, 0, 1, 1], [], []>} : vector<8x16xbf16>, vector<16x32xbf16>, vector<8x32xf32> -> vector<8x32xf32>
    %147 = vector.broadcast %140 : vector<1x32xf32> to vector<8x32xf32>
    %148 = arith.addf %147, %146 : vector<8x32xf32>
    %149 = vector.extract_strided_slice %136 {offsets = [1, 0, 0], sizes = [1, 8, 16], strides = [1, 1, 1]} : vector<2x8x16xf32> to vector<1x8x16xf32>
    %150 = vector.shape_cast %149 : vector<1x8x16xf32> to vector<8x16xf32>
    %151 = vector.extract_strided_slice %138 {offsets = [1, 0, 0], sizes = [1, 16, 32], strides = [1, 1, 1]} : vector<2x16x32xbf16> to vector<1x16x32xbf16>
    %152 = vector.shape_cast %151 : vector<1x16x32xbf16> to vector<16x32xbf16>
    %153 = arith.truncf %150 : vector<8x16xf32> to vector<8x16xbf16>
    %cst_67 = arith.constant dense<0.000000e+00> : vector<8x32xf32>
    %154 = tpu.matmul %153, %152, %cst_67 {dimension_numbers = #tpu.dot_dimension_numbers<[1], [0], [0], [1], [0, 0, 1, 1], [], []>} : vector<8x16xbf16>, vector<16x32xbf16>, vector<8x32xf32> -> vector<8x32xf32>
    %155 = arith.addf %148, %154 : vector<8x32xf32>
    %156 = arith.addf %65, %155 : vector<8x32xf32>
    %c0_68 = arith.constant 0 : index
    %c0_69 = arith.constant 0 : index
    %c0_70 = arith.constant 0 : index
    %157 = vector.load %arg17[%c0_68, %c0_69, %c0_70] : memref<2x1x32xf32, #tpu.memory_space<vmem>>, vector<1x1x32xf32>
    %158 = vector.shape_cast %157 : vector<1x1x32xf32> to vector<1x32xf32>
    %c0_71 = arith.constant 0 : index
    %c0_72 = arith.constant 0 : index
    %c0_73 = arith.constant 0 : index
    %159 = vector.load %arg18[%c0_71, %c0_72, %c0_73] : memref<2x1x32xf32, #tpu.memory_space<vmem>>, vector<1x1x32xf32>
    %160 = vector.shape_cast %159 : vector<1x1x32xf32> to vector<1x32xf32>
    %cst_74 = arith.constant dense<0.000000e+00> : vector<8xf32>
    %161 = vector.multi_reduction <add>, %156, %cst_74 [1] : vector<8x32xf32> to vector<8xf32>
    %162 = vector.shape_cast %161 : vector<8xf32> to vector<8x1xf32>
    %cst_75 = arith.constant 3.200000e+01 : f32
    %163 = vector.broadcast %cst_75 : f32 to vector<8x1xf32>
    %164 = arith.divf %162, %163 : vector<8x1xf32>
    %165 = vector.broadcast %164 : vector<8x1xf32> to vector<8x32xf32>
    %166 = arith.subf %156, %165 : vector<8x32xf32>
    %167 = arith.mulf %166, %166 : vector<8x32xf32>
    %cst_76 = arith.constant dense<0.000000e+00> : vector<8xf32>
    %168 = vector.multi_reduction <add>, %167, %cst_76 [1] : vector<8x32xf32> to vector<8xf32>
    %169 = vector.shape_cast %168 : vector<8xf32> to vector<8x1xf32>
    %cst_77 = arith.constant 3.200000e+01 : f32
    %170 = vector.broadcast %cst_77 : f32 to vector<8x1xf32>
    %171 = arith.divf %169, %170 : vector<8x1xf32>
    %172 = vector.broadcast %164 : vector<8x1xf32> to vector<8x32xf32>
    %173 = arith.subf %156, %172 : vector<8x32xf32>
    %cst_78 = arith.constant 9.99999974E-6 : f32
    %174 = vector.broadcast %cst_78 : f32 to vector<8x1xf32>
    %175 = arith.addf %171, %174 : vector<8x1xf32>
    %176 = math.rsqrt %175 : vector<8x1xf32>
    %177 = vector.broadcast %176 : vector<8x1xf32> to vector<8x32xf32>
    %178 = arith.mulf %173, %177 : vector<8x32xf32>
    %179 = vector.broadcast %158 : vector<1x32xf32> to vector<8x32xf32>
    %180 = arith.mulf %178, %179 : vector<8x32xf32>
    %181 = vector.broadcast %160 : vector<1x32xf32> to vector<8x32xf32>
    %182 = arith.addf %180, %181 : vector<8x32xf32>
    %c0_79 = arith.constant 0 : index
    %c0_80 = arith.constant 0 : index
    %c0_81 = arith.constant 0 : index
    %183 = vector.load %arg19[%c0_79, %c0_80, %c0_81] : memref<2x32x64xbf16, #tpu.memory_space<vmem>>, vector<1x32x64xbf16>
    %184 = vector.shape_cast %183 : vector<1x32x64xbf16> to vector<32x64xbf16>
    %185 = arith.truncf %182 : vector<8x32xf32> to vector<8x32xbf16>
    %cst_82 = arith.constant dense<0.000000e+00> : vector<8x64xf32>
    %186 = tpu.matmul %185, %184, %cst_82 {dimension_numbers = #tpu.dot_dimension_numbers<[1], [0], [0], [1], [0, 0, 1, 1], [], []>} : vector<8x32xbf16>, vector<32x64xbf16>, vector<8x64xf32> -> vector<8x64xf32>
    %c0_83 = arith.constant 0 : index
    %c0_84 = arith.constant 0 : index
    %c0_85 = arith.constant 0 : index
    %187 = vector.load %arg20[%c0_83, %c0_84, %c0_85] : memref<2x1x64xf32, #tpu.memory_space<vmem>>, vector<1x1x64xf32>
    %188 = vector.shape_cast %187 : vector<1x1x64xf32> to vector<1x64xf32>
    %189 = vector.broadcast %188 : vector<1x64xf32> to vector<8x64xf32>
    %190 = arith.addf %186, %189 : vector<8x64xf32>
    %191 = vector.extract_strided_slice %190 {offsets = [0, 0], sizes = [8, 32], strides = [1, 1]} : vector<8x64xf32> to vector<8x32xf32>
    %192 = vector.extract_strided_slice %190 {offsets = [0, 32], sizes = [8, 32], strides = [1, 1]} : vector<8x64xf32> to vector<8x32xf32>
    %cst_86 = arith.constant 0.000000e+00 : f32
    %193 = vector.broadcast %cst_86 : f32 to vector<8x32xf32>
    %194 = arith.subf %193, %192 : vector<8x32xf32>
    %195 = math.exp %194 : vector<8x32xf32>
    %cst_87 = arith.constant 1.000000e+00 : f32
    %196 = vector.broadcast %cst_87 : f32 to vector<8x32xf32>
    %197 = arith.addf %196, %195 : vector<8x32xf32>
    %cst_88 = arith.constant 1.000000e+00 : f32
    %198 = vector.broadcast %cst_88 : f32 to vector<8x32xf32>
    %199 = arith.divf %198, %197 : vector<8x32xf32>
    %200 = arith.mulf %191, %199 : vector<8x32xf32>
    %cst_89 = arith.constant 0.000000e+00 : f32
    %201 = vector.broadcast %cst_89 : f32 to vector<1x32xf32>
    %cst_90 = arith.constant 0.000000e+00 : f32
    %202 = vector.broadcast %cst_90 : f32 to vector<1x32xf32>
    %203 = tpu.concatenate %201, %200, %202 in 0 : vector<1x32xf32>, vector<8x32xf32>, vector<1x32xf32> -> vector<10x32xf32>
    %c0_91 = arith.constant 0 : index
    %c0_92 = arith.constant 0 : index
    %c0_93 = arith.constant 0 : index
    %204 = vector.load %arg21[%c0_91, %c0_92, %c0_93] : memref<2x3x32xf32, #tpu.memory_space<vmem>>, vector<1x3x32xf32>
    %205 = vector.shape_cast %204 : vector<1x3x32xf32> to vector<3x32xf32>
    %cst_94 = arith.constant 0.000000e+00 : f32
    %206 = vector.broadcast %cst_94 : f32 to vector<8x32xf32>
    %207 = vector.extract_strided_slice %203 {offsets = [0, 0], sizes = [8, 32], strides = [1, 1]} : vector<10x32xf32> to vector<8x32xf32>
    %208 = vector.extract_strided_slice %205 {offsets = [0, 0], sizes = [1, 32], strides = [1, 1]} : vector<3x32xf32> to vector<1x32xf32>
    %209 = vector.broadcast %208 : vector<1x32xf32> to vector<8x32xf32>
    %210 = arith.mulf %207, %209 : vector<8x32xf32>
    %211 = arith.addf %206, %210 : vector<8x32xf32>
    %212 = vector.extract_strided_slice %203 {offsets = [1, 0], sizes = [8, 32], strides = [1, 1]} : vector<10x32xf32> to vector<8x32xf32>
    %213 = vector.extract_strided_slice %205 {offsets = [1, 0], sizes = [1, 32], strides = [1, 1]} : vector<3x32xf32> to vector<1x32xf32>
    %214 = vector.broadcast %213 : vector<1x32xf32> to vector<8x32xf32>
    %215 = arith.mulf %212, %214 : vector<8x32xf32>
    %216 = arith.addf %211, %215 : vector<8x32xf32>
    %217 = vector.extract_strided_slice %203 {offsets = [2, 0], sizes = [8, 32], strides = [1, 1]} : vector<10x32xf32> to vector<8x32xf32>
    %218 = vector.extract_strided_slice %205 {offsets = [2, 0], sizes = [1, 32], strides = [1, 1]} : vector<3x32xf32> to vector<1x32xf32>
    %219 = vector.broadcast %218 : vector<1x32xf32> to vector<8x32xf32>
    %220 = arith.mulf %217, %219 : vector<8x32xf32>
    %221 = arith.addf %216, %220 : vector<8x32xf32>
    %c0_95 = arith.constant 0 : index
    %c0_96 = arith.constant 0 : index
    %c0_97 = arith.constant 0 : index
    %222 = vector.load %arg22[%c0_95, %c0_96, %c0_97] : memref<2x1x32xf32, #tpu.memory_space<vmem>>, vector<1x1x32xf32>
    %223 = vector.shape_cast %222 : vector<1x1x32xf32> to vector<1x32xf32>
    %224 = vector.broadcast %223 : vector<1x32xf32> to vector<8x32xf32>
    %225 = arith.addf %221, %224 : vector<8x32xf32>
    %c0_98 = arith.constant 0 : index
    %c0_99 = arith.constant 0 : index
    %c0_100 = arith.constant 0 : index
    %226 = vector.load %arg23[%c0_98, %c0_99, %c0_100] : memref<2x1x32xf32, #tpu.memory_space<vmem>>, vector<1x1x32xf32>
    %227 = vector.shape_cast %226 : vector<1x1x32xf32> to vector<1x32xf32>
    %228 = vector.broadcast %227 : vector<1x32xf32> to vector<8x32xf32>
    %229 = arith.mulf %225, %228 : vector<8x32xf32>
    %c0_101 = arith.constant 0 : index
    %c0_102 = arith.constant 0 : index
    %c0_103 = arith.constant 0 : index
    %230 = vector.load %arg24[%c0_101, %c0_102, %c0_103] : memref<2x1x32xf32, #tpu.memory_space<vmem>>, vector<1x1x32xf32>
    %231 = vector.shape_cast %230 : vector<1x1x32xf32> to vector<1x32xf32>
    %232 = vector.broadcast %231 : vector<1x32xf32> to vector<8x32xf32>
    %233 = arith.addf %229, %232 : vector<8x32xf32>
    %cst_104 = arith.constant 0.000000e+00 : f32
    %234 = vector.broadcast %cst_104 : f32 to vector<8x32xf32>
    %235 = arith.subf %234, %233 : vector<8x32xf32>
    %236 = math.exp %235 : vector<8x32xf32>
    %cst_105 = arith.constant 1.000000e+00 : f32
    %237 = vector.broadcast %cst_105 : f32 to vector<8x32xf32>
    %238 = arith.addf %237, %236 : vector<8x32xf32>
    %cst_106 = arith.constant 1.000000e+00 : f32
    %239 = vector.broadcast %cst_106 : f32 to vector<8x32xf32>
    %240 = arith.divf %239, %238 : vector<8x32xf32>
    %241 = arith.mulf %233, %240 : vector<8x32xf32>
    %c0_107 = arith.constant 0 : index
    %c0_108 = arith.constant 0 : index
    %c0_109 = arith.constant 0 : index
    %242 = vector.load %arg25[%c0_107, %c0_108, %c0_109] : memref<2x32x32xbf16, #tpu.memory_space<vmem>>, vector<1x32x32xbf16>
    %243 = vector.shape_cast %242 : vector<1x32x32xbf16> to vector<32x32xbf16>
    %244 = arith.truncf %241 : vector<8x32xf32> to vector<8x32xbf16>
    %cst_110 = arith.constant dense<0.000000e+00> : vector<8x32xf32>
    %245 = tpu.matmul %244, %243, %cst_110 {dimension_numbers = #tpu.dot_dimension_numbers<[1], [0], [0], [1], [0, 0, 1, 1], [], []>} : vector<8x32xbf16>, vector<32x32xbf16>, vector<8x32xf32> -> vector<8x32xf32>
    %c0_111 = arith.constant 0 : index
    %c0_112 = arith.constant 0 : index
    %c0_113 = arith.constant 0 : index
    %246 = vector.load %arg26[%c0_111, %c0_112, %c0_113] : memref<2x1x32xf32, #tpu.memory_space<vmem>>, vector<1x1x32xf32>
    %247 = vector.shape_cast %246 : vector<1x1x32xf32> to vector<1x32xf32>
    %248 = vector.broadcast %247 : vector<1x32xf32> to vector<8x32xf32>
    %249 = arith.addf %245, %248 : vector<8x32xf32>
    %250 = arith.addf %156, %249 : vector<8x32xf32>
    %c0_114 = arith.constant 0 : index
    %c0_115 = arith.constant 0 : index
    %c0_116 = arith.constant 0 : index
    %251 = vector.load %arg27[%c0_114, %c0_115, %c0_116] : memref<2x1x32xf32, #tpu.memory_space<vmem>>, vector<1x1x32xf32>
    %252 = vector.shape_cast %251 : vector<1x1x32xf32> to vector<1x32xf32>
    %c0_117 = arith.constant 0 : index
    %c0_118 = arith.constant 0 : index
    %c0_119 = arith.constant 0 : index
    %253 = vector.load %arg28[%c0_117, %c0_118, %c0_119] : memref<2x1x32xf32, #tpu.memory_space<vmem>>, vector<1x1x32xf32>
    %254 = vector.shape_cast %253 : vector<1x1x32xf32> to vector<1x32xf32>
    %cst_120 = arith.constant dense<0.000000e+00> : vector<8xf32>
    %255 = vector.multi_reduction <add>, %250, %cst_120 [1] : vector<8x32xf32> to vector<8xf32>
    %256 = vector.shape_cast %255 : vector<8xf32> to vector<8x1xf32>
    %cst_121 = arith.constant 3.200000e+01 : f32
    %257 = vector.broadcast %cst_121 : f32 to vector<8x1xf32>
    %258 = arith.divf %256, %257 : vector<8x1xf32>
    %259 = vector.broadcast %258 : vector<8x1xf32> to vector<8x32xf32>
    %260 = arith.subf %250, %259 : vector<8x32xf32>
    %261 = arith.mulf %260, %260 : vector<8x32xf32>
    %cst_122 = arith.constant dense<0.000000e+00> : vector<8xf32>
    %262 = vector.multi_reduction <add>, %261, %cst_122 [1] : vector<8x32xf32> to vector<8xf32>
    %263 = vector.shape_cast %262 : vector<8xf32> to vector<8x1xf32>
    %cst_123 = arith.constant 3.200000e+01 : f32
    %264 = vector.broadcast %cst_123 : f32 to vector<8x1xf32>
    %265 = arith.divf %263, %264 : vector<8x1xf32>
    %266 = vector.broadcast %258 : vector<8x1xf32> to vector<8x32xf32>
    %267 = arith.subf %250, %266 : vector<8x32xf32>
    %cst_124 = arith.constant 9.99999974E-6 : f32
    %268 = vector.broadcast %cst_124 : f32 to vector<8x1xf32>
    %269 = arith.addf %265, %268 : vector<8x1xf32>
    %270 = math.rsqrt %269 : vector<8x1xf32>
    %271 = vector.broadcast %270 : vector<8x1xf32> to vector<8x32xf32>
    %272 = arith.mulf %267, %271 : vector<8x32xf32>
    %273 = vector.broadcast %252 : vector<1x32xf32> to vector<8x32xf32>
    %274 = arith.mulf %272, %273 : vector<8x32xf32>
    %275 = vector.broadcast %254 : vector<1x32xf32> to vector<8x32xf32>
    %276 = arith.addf %274, %275 : vector<8x32xf32>
    %c0_125 = arith.constant 0 : index
    %c0_126 = arith.constant 0 : index
    %c0_127 = arith.constant 0 : index
    %277 = vector.load %arg29[%c0_125, %c0_126, %c0_127] : memref<2x32x64xbf16, #tpu.memory_space<vmem>>, vector<1x32x64xbf16>
    %278 = vector.shape_cast %277 : vector<1x32x64xbf16> to vector<32x64xbf16>
    %279 = arith.truncf %276 : vector<8x32xf32> to vector<8x32xbf16>
    %cst_128 = arith.constant dense<0.000000e+00> : vector<8x64xf32>
    %280 = tpu.matmul %279, %278, %cst_128 {dimension_numbers = #tpu.dot_dimension_numbers<[1], [0], [0], [1], [0, 0, 1, 1], [], []>} : vector<8x32xbf16>, vector<32x64xbf16>, vector<8x64xf32> -> vector<8x64xf32>
    %c0_129 = arith.constant 0 : index
    %c0_130 = arith.constant 0 : index
    %c0_131 = arith.constant 0 : index
    %281 = vector.load %arg30[%c0_129, %c0_130, %c0_131] : memref<2x1x64xf32, #tpu.memory_space<vmem>>, vector<1x1x64xf32>
    %282 = vector.shape_cast %281 : vector<1x1x64xf32> to vector<1x64xf32>
    %283 = vector.broadcast %282 : vector<1x64xf32> to vector<8x64xf32>
    %284 = arith.addf %280, %283 : vector<8x64xf32>
    %cst_132 = arith.constant 0.000000e+00 : f32
    %285 = vector.broadcast %cst_132 : f32 to vector<8x64xf32>
    %286 = arith.subf %285, %284 : vector<8x64xf32>
    %287 = math.exp %286 : vector<8x64xf32>
    %cst_133 = arith.constant 1.000000e+00 : f32
    %288 = vector.broadcast %cst_133 : f32 to vector<8x64xf32>
    %289 = arith.addf %288, %287 : vector<8x64xf32>
    %cst_134 = arith.constant 1.000000e+00 : f32
    %290 = vector.broadcast %cst_134 : f32 to vector<8x64xf32>
    %291 = arith.divf %290, %289 : vector<8x64xf32>
    %292 = arith.mulf %284, %291 : vector<8x64xf32>
    %c0_135 = arith.constant 0 : index
    %c0_136 = arith.constant 0 : index
    %c0_137 = arith.constant 0 : index
    %293 = vector.load %arg31[%c0_135, %c0_136, %c0_137] : memref<2x64x32xbf16, #tpu.memory_space<vmem>>, vector<1x64x32xbf16>
    %294 = vector.shape_cast %293 : vector<1x64x32xbf16> to vector<64x32xbf16>
    %295 = arith.truncf %292 : vector<8x64xf32> to vector<8x64xbf16>
    %cst_138 = arith.constant dense<0.000000e+00> : vector<8x32xf32>
    %296 = tpu.matmul %295, %294, %cst_138 {dimension_numbers = #tpu.dot_dimension_numbers<[1], [0], [0], [1], [0, 0, 1, 1], [], []>} : vector<8x64xbf16>, vector<64x32xbf16>, vector<8x32xf32> -> vector<8x32xf32>
    %c0_139 = arith.constant 0 : index
    %c0_140 = arith.constant 0 : index
    %c0_141 = arith.constant 0 : index
    %297 = vector.load %arg32[%c0_139, %c0_140, %c0_141] : memref<2x1x32xf32, #tpu.memory_space<vmem>>, vector<1x1x32xf32>
    %298 = vector.shape_cast %297 : vector<1x1x32xf32> to vector<1x32xf32>
    %299 = vector.broadcast %298 : vector<1x32xf32> to vector<8x32xf32>
    %300 = arith.addf %296, %299 : vector<8x32xf32>
    %cst_142 = arith.constant 5.000000e-01 : f32
    %301 = vector.broadcast %cst_142 : f32 to vector<8x32xf32>
    %302 = arith.mulf %301, %300 : vector<8x32xf32>
    %303 = arith.addf %250, %302 : vector<8x32xf32>
    %c0_143 = arith.constant 0 : index
    %c0_144 = arith.constant 0 : index
    %c0_145 = arith.constant 0 : index
    %304 = vector.load %arg33[%c0_143, %c0_144, %c0_145] : memref<2x1x32xf32, #tpu.memory_space<vmem>>, vector<1x1x32xf32>
    %305 = vector.shape_cast %304 : vector<1x1x32xf32> to vector<1x32xf32>
    %c0_146 = arith.constant 0 : index
    %c0_147 = arith.constant 0 : index
    %c0_148 = arith.constant 0 : index
    %306 = vector.load %arg34[%c0_146, %c0_147, %c0_148] : memref<2x1x32xf32, #tpu.memory_space<vmem>>, vector<1x1x32xf32>
    %307 = vector.shape_cast %306 : vector<1x1x32xf32> to vector<1x32xf32>
    %cst_149 = arith.constant dense<0.000000e+00> : vector<8xf32>
    %308 = vector.multi_reduction <add>, %303, %cst_149 [1] : vector<8x32xf32> to vector<8xf32>
    %309 = vector.shape_cast %308 : vector<8xf32> to vector<8x1xf32>
    %cst_150 = arith.constant 3.200000e+01 : f32
    %310 = vector.broadcast %cst_150 : f32 to vector<8x1xf32>
    %311 = arith.divf %309, %310 : vector<8x1xf32>
    %312 = vector.broadcast %311 : vector<8x1xf32> to vector<8x32xf32>
    %313 = arith.subf %303, %312 : vector<8x32xf32>
    %314 = arith.mulf %313, %313 : vector<8x32xf32>
    %cst_151 = arith.constant dense<0.000000e+00> : vector<8xf32>
    %315 = vector.multi_reduction <add>, %314, %cst_151 [1] : vector<8x32xf32> to vector<8xf32>
    %316 = vector.shape_cast %315 : vector<8xf32> to vector<8x1xf32>
    %cst_152 = arith.constant 3.200000e+01 : f32
    %317 = vector.broadcast %cst_152 : f32 to vector<8x1xf32>
    %318 = arith.divf %316, %317 : vector<8x1xf32>
    %319 = vector.broadcast %311 : vector<8x1xf32> to vector<8x32xf32>
    %320 = arith.subf %303, %319 : vector<8x32xf32>
    %cst_153 = arith.constant 9.99999974E-6 : f32
    %321 = vector.broadcast %cst_153 : f32 to vector<8x1xf32>
    %322 = arith.addf %318, %321 : vector<8x1xf32>
    %323 = math.rsqrt %322 : vector<8x1xf32>
    %324 = vector.broadcast %323 : vector<8x1xf32> to vector<8x32xf32>
    %325 = arith.mulf %320, %324 : vector<8x32xf32>
    %326 = vector.broadcast %305 : vector<1x32xf32> to vector<8x32xf32>
    %327 = arith.mulf %325, %326 : vector<8x32xf32>
    %328 = vector.broadcast %307 : vector<1x32xf32> to vector<8x32xf32>
    %329 = arith.addf %327, %328 : vector<8x32xf32>
    %c1 = arith.constant 1 : index
    %c0_154 = arith.constant 0 : index
    %c0_155 = arith.constant 0 : index
    %330 = vector.load %arg5[%c1, %c0_154, %c0_155] : memref<2x1x32xf32, #tpu.memory_space<vmem>>, vector<1x1x32xf32>
    %331 = vector.shape_cast %330 : vector<1x1x32xf32> to vector<1x32xf32>
    %c1_156 = arith.constant 1 : index
    %c0_157 = arith.constant 0 : index
    %c0_158 = arith.constant 0 : index
    %332 = vector.load %arg6[%c1_156, %c0_157, %c0_158] : memref<2x1x32xf32, #tpu.memory_space<vmem>>, vector<1x1x32xf32>
    %333 = vector.shape_cast %332 : vector<1x1x32xf32> to vector<1x32xf32>
    %cst_159 = arith.constant dense<0.000000e+00> : vector<8xf32>
    %334 = vector.multi_reduction <add>, %329, %cst_159 [1] : vector<8x32xf32> to vector<8xf32>
    %335 = vector.shape_cast %334 : vector<8xf32> to vector<8x1xf32>
    %cst_160 = arith.constant 3.200000e+01 : f32
    %336 = vector.broadcast %cst_160 : f32 to vector<8x1xf32>
    %337 = arith.divf %335, %336 : vector<8x1xf32>
    %338 = vector.broadcast %337 : vector<8x1xf32> to vector<8x32xf32>
    %339 = arith.subf %329, %338 : vector<8x32xf32>
    %340 = arith.mulf %339, %339 : vector<8x32xf32>
    %cst_161 = arith.constant dense<0.000000e+00> : vector<8xf32>
    %341 = vector.multi_reduction <add>, %340, %cst_161 [1] : vector<8x32xf32> to vector<8xf32>
    %342 = vector.shape_cast %341 : vector<8xf32> to vector<8x1xf32>
    %cst_162 = arith.constant 3.200000e+01 : f32
    %343 = vector.broadcast %cst_162 : f32 to vector<8x1xf32>
    %344 = arith.divf %342, %343 : vector<8x1xf32>
    %345 = vector.broadcast %337 : vector<8x1xf32> to vector<8x32xf32>
    %346 = arith.subf %329, %345 : vector<8x32xf32>
    %cst_163 = arith.constant 9.99999974E-6 : f32
    %347 = vector.broadcast %cst_163 : f32 to vector<8x1xf32>
    %348 = arith.addf %344, %347 : vector<8x1xf32>
    %349 = math.rsqrt %348 : vector<8x1xf32>
    %350 = vector.broadcast %349 : vector<8x1xf32> to vector<8x32xf32>
    %351 = arith.mulf %346, %350 : vector<8x32xf32>
    %352 = vector.broadcast %331 : vector<1x32xf32> to vector<8x32xf32>
    %353 = arith.mulf %351, %352 : vector<8x32xf32>
    %354 = vector.broadcast %333 : vector<1x32xf32> to vector<8x32xf32>
    %355 = arith.addf %353, %354 : vector<8x32xf32>
    %c1_164 = arith.constant 1 : index
    %c0_165 = arith.constant 0 : index
    %c0_166 = arith.constant 0 : index
    %356 = vector.load %arg7[%c1_164, %c0_165, %c0_166] : memref<2x32x64xbf16, #tpu.memory_space<vmem>>, vector<1x32x64xbf16>
    %357 = vector.shape_cast %356 : vector<1x32x64xbf16> to vector<32x64xbf16>
    %358 = arith.truncf %355 : vector<8x32xf32> to vector<8x32xbf16>
    %cst_167 = arith.constant dense<0.000000e+00> : vector<8x64xf32>
    %359 = tpu.matmul %358, %357, %cst_167 {dimension_numbers = #tpu.dot_dimension_numbers<[1], [0], [0], [1], [0, 0, 1, 1], [], []>} : vector<8x32xbf16>, vector<32x64xbf16>, vector<8x64xf32> -> vector<8x64xf32>
    %c1_168 = arith.constant 1 : index
    %c0_169 = arith.constant 0 : index
    %c0_170 = arith.constant 0 : index
    %360 = vector.load %arg8[%c1_168, %c0_169, %c0_170] : memref<2x1x64xf32, #tpu.memory_space<vmem>>, vector<1x1x64xf32>
    %361 = vector.shape_cast %360 : vector<1x1x64xf32> to vector<1x64xf32>
    %362 = vector.broadcast %361 : vector<1x64xf32> to vector<8x64xf32>
    %363 = arith.addf %359, %362 : vector<8x64xf32>
    %cst_171 = arith.constant 0.000000e+00 : f32
    %364 = vector.broadcast %cst_171 : f32 to vector<8x64xf32>
    %365 = arith.subf %364, %363 : vector<8x64xf32>
    %366 = math.exp %365 : vector<8x64xf32>
    %cst_172 = arith.constant 1.000000e+00 : f32
    %367 = vector.broadcast %cst_172 : f32 to vector<8x64xf32>
    %368 = arith.addf %367, %366 : vector<8x64xf32>
    %cst_173 = arith.constant 1.000000e+00 : f32
    %369 = vector.broadcast %cst_173 : f32 to vector<8x64xf32>
    %370 = arith.divf %369, %368 : vector<8x64xf32>
    %371 = arith.mulf %363, %370 : vector<8x64xf32>
    %c1_174 = arith.constant 1 : index
    %c0_175 = arith.constant 0 : index
    %c0_176 = arith.constant 0 : index
    %372 = vector.load %arg9[%c1_174, %c0_175, %c0_176] : memref<2x64x32xbf16, #tpu.memory_space<vmem>>, vector<1x64x32xbf16>
    %373 = vector.shape_cast %372 : vector<1x64x32xbf16> to vector<64x32xbf16>
    %374 = arith.truncf %371 : vector<8x64xf32> to vector<8x64xbf16>
    %cst_177 = arith.constant dense<0.000000e+00> : vector<8x32xf32>
    %375 = tpu.matmul %374, %373, %cst_177 {dimension_numbers = #tpu.dot_dimension_numbers<[1], [0], [0], [1], [0, 0, 1, 1], [], []>} : vector<8x64xbf16>, vector<64x32xbf16>, vector<8x32xf32> -> vector<8x32xf32>
    %c1_178 = arith.constant 1 : index
    %c0_179 = arith.constant 0 : index
    %c0_180 = arith.constant 0 : index
    %376 = vector.load %arg10[%c1_178, %c0_179, %c0_180] : memref<2x1x32xf32, #tpu.memory_space<vmem>>, vector<1x1x32xf32>
    %377 = vector.shape_cast %376 : vector<1x1x32xf32> to vector<1x32xf32>
    %378 = vector.broadcast %377 : vector<1x32xf32> to vector<8x32xf32>
    %379 = arith.addf %375, %378 : vector<8x32xf32>
    %cst_181 = arith.constant 5.000000e-01 : f32
    %380 = vector.broadcast %cst_181 : f32 to vector<8x32xf32>
    %381 = arith.mulf %380, %379 : vector<8x32xf32>
    %382 = arith.addf %329, %381 : vector<8x32xf32>
    %c1_182 = arith.constant 1 : index
    %c0_183 = arith.constant 0 : index
    %c0_184 = arith.constant 0 : index
    %383 = vector.load %arg11[%c1_182, %c0_183, %c0_184] : memref<2x1x32xf32, #tpu.memory_space<vmem>>, vector<1x1x32xf32>
    %384 = vector.shape_cast %383 : vector<1x1x32xf32> to vector<1x32xf32>
    %c1_185 = arith.constant 1 : index
    %c0_186 = arith.constant 0 : index
    %c0_187 = arith.constant 0 : index
    %385 = vector.load %arg12[%c1_185, %c0_186, %c0_187] : memref<2x1x32xf32, #tpu.memory_space<vmem>>, vector<1x1x32xf32>
    %386 = vector.shape_cast %385 : vector<1x1x32xf32> to vector<1x32xf32>
    %cst_188 = arith.constant dense<0.000000e+00> : vector<8xf32>
    %387 = vector.multi_reduction <add>, %382, %cst_188 [1] : vector<8x32xf32> to vector<8xf32>
    %388 = vector.shape_cast %387 : vector<8xf32> to vector<8x1xf32>
    %cst_189 = arith.constant 3.200000e+01 : f32
    %389 = vector.broadcast %cst_189 : f32 to vector<8x1xf32>
    %390 = arith.divf %388, %389 : vector<8x1xf32>
    %391 = vector.broadcast %390 : vector<8x1xf32> to vector<8x32xf32>
    %392 = arith.subf %382, %391 : vector<8x32xf32>
    %393 = arith.mulf %392, %392 : vector<8x32xf32>
    %cst_190 = arith.constant dense<0.000000e+00> : vector<8xf32>
    %394 = vector.multi_reduction <add>, %393, %cst_190 [1] : vector<8x32xf32> to vector<8xf32>
    %395 = vector.shape_cast %394 : vector<8xf32> to vector<8x1xf32>
    %cst_191 = arith.constant 3.200000e+01 : f32
    %396 = vector.broadcast %cst_191 : f32 to vector<8x1xf32>
    %397 = arith.divf %395, %396 : vector<8x1xf32>
    %398 = vector.broadcast %390 : vector<8x1xf32> to vector<8x32xf32>
    %399 = arith.subf %382, %398 : vector<8x32xf32>
    %cst_192 = arith.constant 9.99999974E-6 : f32
    %400 = vector.broadcast %cst_192 : f32 to vector<8x1xf32>
    %401 = arith.addf %397, %400 : vector<8x1xf32>
    %402 = math.rsqrt %401 : vector<8x1xf32>
    %403 = vector.broadcast %402 : vector<8x1xf32> to vector<8x32xf32>
    %404 = arith.mulf %399, %403 : vector<8x32xf32>
    %405 = vector.broadcast %384 : vector<1x32xf32> to vector<8x32xf32>
    %406 = arith.mulf %404, %405 : vector<8x32xf32>
    %407 = vector.broadcast %386 : vector<1x32xf32> to vector<8x32xf32>
    %408 = arith.addf %406, %407 : vector<8x32xf32>
    %c1_193 = arith.constant 1 : index
    %c0_194 = arith.constant 0 : index
    %c0_195 = arith.constant 0 : index
    %409 = vector.load %arg13[%c1_193, %c0_194, %c0_195] : memref<2x32x96xbf16, #tpu.memory_space<vmem>>, vector<1x32x96xbf16>
    %410 = vector.shape_cast %409 : vector<1x32x96xbf16> to vector<32x96xbf16>
    %411 = arith.truncf %408 : vector<8x32xf32> to vector<8x32xbf16>
    %cst_196 = arith.constant dense<0.000000e+00> : vector<8x96xf32>
    %412 = tpu.matmul %411, %410, %cst_196 {dimension_numbers = #tpu.dot_dimension_numbers<[1], [0], [0], [1], [0, 0, 1, 1], [], []>} : vector<8x32xbf16>, vector<32x96xbf16>, vector<8x96xf32> -> vector<8x96xf32>
    %c1_197 = arith.constant 1 : index
    %c0_198 = arith.constant 0 : index
    %c0_199 = arith.constant 0 : index
    %413 = vector.load %arg14[%c1_197, %c0_198, %c0_199] : memref<2x1x96xf32, #tpu.memory_space<vmem>>, vector<1x1x96xf32>
    %414 = vector.shape_cast %413 : vector<1x1x96xf32> to vector<1x96xf32>
    %415 = vector.broadcast %414 : vector<1x96xf32> to vector<8x96xf32>
    %416 = arith.addf %412, %415 : vector<8x96xf32>
    %417 = vector.extract_strided_slice %416 {offsets = [0, 0], sizes = [8, 16], strides = [1, 1]} : vector<8x96xf32> to vector<8x16xf32>
    %418 = vector.extract_strided_slice %416 {offsets = [0, 16], sizes = [8, 16], strides = [1, 1]} : vector<8x96xf32> to vector<8x16xf32>
    %419 = vector.shape_cast %417 : vector<8x16xf32> to vector<1x8x16xf32>
    %420 = vector.shape_cast %418 : vector<8x16xf32> to vector<1x8x16xf32>
    %421 = tpu.concatenate %419, %420 in 0 : vector<1x8x16xf32>, vector<1x8x16xf32> -> vector<2x8x16xf32>
    %422 = vector.extract_strided_slice %416 {offsets = [0, 32], sizes = [8, 16], strides = [1, 1]} : vector<8x96xf32> to vector<8x16xf32>
    %423 = vector.extract_strided_slice %416 {offsets = [0, 48], sizes = [8, 16], strides = [1, 1]} : vector<8x96xf32> to vector<8x16xf32>
    %424 = vector.shape_cast %422 : vector<8x16xf32> to vector<1x8x16xf32>
    %425 = vector.shape_cast %423 : vector<8x16xf32> to vector<1x8x16xf32>
    %426 = tpu.concatenate %424, %425 in 0 : vector<1x8x16xf32>, vector<1x8x16xf32> -> vector<2x8x16xf32>
    %427 = vector.extract_strided_slice %416 {offsets = [0, 64], sizes = [8, 16], strides = [1, 1]} : vector<8x96xf32> to vector<8x16xf32>
    %428 = vector.extract_strided_slice %416 {offsets = [0, 80], sizes = [8, 16], strides = [1, 1]} : vector<8x96xf32> to vector<8x16xf32>
    %429 = vector.shape_cast %427 : vector<8x16xf32> to vector<1x8x16xf32>
    %430 = vector.shape_cast %428 : vector<8x16xf32> to vector<1x8x16xf32>
    %431 = tpu.concatenate %429, %430 in 0 : vector<1x8x16xf32>, vector<1x8x16xf32> -> vector<2x8x16xf32>
    %432 = arith.truncf %421 : vector<2x8x16xf32> to vector<2x8x16xbf16>
    %433 = arith.truncf %426 : vector<2x8x16xf32> to vector<2x8x16xbf16>
    "tpu.trace_start"() <{level = 10 : i32, message = "hqd,hkd->hqk"}> : () -> ()
    %cst_200 = arith.constant dense<0.000000e+00> : vector<2x8x8xf32>
    %434 = tpu.matmul %432, %433, %cst_200 {dimension_numbers = #tpu.dot_dimension_numbers<[2], [2], [1], [1], [0, 0, 0, 1, 1, 1], [0], [0]>} : vector<2x8x16xbf16>, vector<2x8x16xbf16>, vector<2x8x8xf32> -> vector<2x8x8xf32>
    "tpu.trace_stop"() : () -> ()
    %cst_201 = arith.constant 2.500000e-01 : f32
    %435 = vector.broadcast %cst_201 : f32 to vector<2x8x8xf32>
    %436 = arith.mulf %434, %435 : vector<2x8x8xf32>
    %cst_202 = arith.constant -1.000000e+30 : f32
    %437 = vector.shape_cast %6 : vector<1x1x8xi1> to vector<1x1x8xi1>
    %438 = vector.broadcast %437 : vector<1x1x8xi1> to vector<2x8x8xi1>
    %439 = vector.broadcast %cst_202 : f32 to vector<2x8x8xf32>
    %440 = arith.select %438, %436, %439 : vector<2x8x8xi1>, vector<2x8x8xf32>
    %cst_203 = arith.constant dense<0xFF800000> : vector<2x8xf32>
    %441 = vector.multi_reduction <maximumf>, %440, %cst_203 [2] : vector<2x8x8xf32> to vector<2x8xf32>
    %442 = vector.shape_cast %441 : vector<2x8xf32> to vector<2x8x1xf32>
    %443 = vector.broadcast %442 : vector<2x8x1xf32> to vector<2x8x8xf32>
    %444 = arith.subf %440, %443 : vector<2x8x8xf32>
    %445 = math.exp %444 : vector<2x8x8xf32>
    %cst_204 = arith.constant dense<0.000000e+00> : vector<2x8xf32>
    %446 = vector.multi_reduction <add>, %445, %cst_204 [2] : vector<2x8x8xf32> to vector<2x8xf32>
    %447 = vector.shape_cast %446 : vector<2x8xf32> to vector<2x8x1xf32>
    %448 = tpu.reciprocal %447 {approx = true} : vector<2x8x1xf32> -> vector<2x8x1xf32>
    %449 = vector.broadcast %448 : vector<2x8x1xf32> to vector<2x8x8xf32>
    %450 = arith.mulf %445, %449 : vector<2x8x8xf32>
    %451 = arith.truncf %450 : vector<2x8x8xf32> to vector<2x8x8xbf16>
    %452 = arith.truncf %431 : vector<2x8x16xf32> to vector<2x8x16xbf16>
    "tpu.trace_start"() <{level = 10 : i32, message = "hqk,hkd->hqd"}> : () -> ()
    %cst_205 = arith.constant dense<0.000000e+00> : vector<2x8x16xf32>
    %453 = tpu.matmul %451, %452, %cst_205 {dimension_numbers = #tpu.dot_dimension_numbers<[2], [1], [1], [2], [0, 0, 0, 1, 1, 2], [0], [0]>} : vector<2x8x8xbf16>, vector<2x8x16xbf16>, vector<2x8x16xf32> -> vector<2x8x16xf32>
    "tpu.trace_stop"() : () -> ()
    %c1_206 = arith.constant 1 : index
    %c0_207 = arith.constant 0 : index
    %c0_208 = arith.constant 0 : index
    %c0_209 = arith.constant 0 : index
    %454 = vector.load %arg15[%c1_206, %c0_207, %c0_208, %c0_209] : memref<2x2x16x32xbf16, #tpu.memory_space<vmem>>, vector<1x2x16x32xbf16>
    %455 = vector.shape_cast %454 : vector<1x2x16x32xbf16> to vector<2x16x32xbf16>
    %c1_210 = arith.constant 1 : index
    %c0_211 = arith.constant 0 : index
    %c0_212 = arith.constant 0 : index
    %456 = vector.load %arg16[%c1_210, %c0_211, %c0_212] : memref<2x1x32xf32, #tpu.memory_space<vmem>>, vector<1x1x32xf32>
    %457 = vector.shape_cast %456 : vector<1x1x32xf32> to vector<1x32xf32>
    %458 = vector.extract_strided_slice %453 {offsets = [0, 0, 0], sizes = [1, 8, 16], strides = [1, 1, 1]} : vector<2x8x16xf32> to vector<1x8x16xf32>
    %459 = vector.shape_cast %458 : vector<1x8x16xf32> to vector<8x16xf32>
    %460 = vector.extract_strided_slice %455 {offsets = [0, 0, 0], sizes = [1, 16, 32], strides = [1, 1, 1]} : vector<2x16x32xbf16> to vector<1x16x32xbf16>
    %461 = vector.shape_cast %460 : vector<1x16x32xbf16> to vector<16x32xbf16>
    %462 = arith.truncf %459 : vector<8x16xf32> to vector<8x16xbf16>
    %cst_213 = arith.constant dense<0.000000e+00> : vector<8x32xf32>
    %463 = tpu.matmul %462, %461, %cst_213 {dimension_numbers = #tpu.dot_dimension_numbers<[1], [0], [0], [1], [0, 0, 1, 1], [], []>} : vector<8x16xbf16>, vector<16x32xbf16>, vector<8x32xf32> -> vector<8x32xf32>
    %464 = vector.broadcast %457 : vector<1x32xf32> to vector<8x32xf32>
    %465 = arith.addf %464, %463 : vector<8x32xf32>
    %466 = vector.extract_strided_slice %453 {offsets = [1, 0, 0], sizes = [1, 8, 16], strides = [1, 1, 1]} : vector<2x8x16xf32> to vector<1x8x16xf32>
    %467 = vector.shape_cast %466 : vector<1x8x16xf32> to vector<8x16xf32>
    %468 = vector.extract_strided_slice %455 {offsets = [1, 0, 0], sizes = [1, 16, 32], strides = [1, 1, 1]} : vector<2x16x32xbf16> to vector<1x16x32xbf16>
    %469 = vector.shape_cast %468 : vector<1x16x32xbf16> to vector<16x32xbf16>
    %470 = arith.truncf %467 : vector<8x16xf32> to vector<8x16xbf16>
    %cst_214 = arith.constant dense<0.000000e+00> : vector<8x32xf32>
    %471 = tpu.matmul %470, %469, %cst_214 {dimension_numbers = #tpu.dot_dimension_numbers<[1], [0], [0], [1], [0, 0, 1, 1], [], []>} : vector<8x16xbf16>, vector<16x32xbf16>, vector<8x32xf32> -> vector<8x32xf32>
    %472 = arith.addf %465, %471 : vector<8x32xf32>
    %473 = arith.addf %382, %472 : vector<8x32xf32>
    %c1_215 = arith.constant 1 : index
    %c0_216 = arith.constant 0 : index
    %c0_217 = arith.constant 0 : index
    %474 = vector.load %arg17[%c1_215, %c0_216, %c0_217] : memref<2x1x32xf32, #tpu.memory_space<vmem>>, vector<1x1x32xf32>
    %475 = vector.shape_cast %474 : vector<1x1x32xf32> to vector<1x32xf32>
    %c1_218 = arith.constant 1 : index
    %c0_219 = arith.constant 0 : index
    %c0_220 = arith.constant 0 : index
    %476 = vector.load %arg18[%c1_218, %c0_219, %c0_220] : memref<2x1x32xf32, #tpu.memory_space<vmem>>, vector<1x1x32xf32>
    %477 = vector.shape_cast %476 : vector<1x1x32xf32> to vector<1x32xf32>
    %cst_221 = arith.constant dense<0.000000e+00> : vector<8xf32>
    %478 = vector.multi_reduction <add>, %473, %cst_221 [1] : vector<8x32xf32> to vector<8xf32>
    %479 = vector.shape_cast %478 : vector<8xf32> to vector<8x1xf32>
    %cst_222 = arith.constant 3.200000e+01 : f32
    %480 = vector.broadcast %cst_222 : f32 to vector<8x1xf32>
    %481 = arith.divf %479, %480 : vector<8x1xf32>
    %482 = vector.broadcast %481 : vector<8x1xf32> to vector<8x32xf32>
    %483 = arith.subf %473, %482 : vector<8x32xf32>
    %484 = arith.mulf %483, %483 : vector<8x32xf32>
    %cst_223 = arith.constant dense<0.000000e+00> : vector<8xf32>
    %485 = vector.multi_reduction <add>, %484, %cst_223 [1] : vector<8x32xf32> to vector<8xf32>
    %486 = vector.shape_cast %485 : vector<8xf32> to vector<8x1xf32>
    %cst_224 = arith.constant 3.200000e+01 : f32
    %487 = vector.broadcast %cst_224 : f32 to vector<8x1xf32>
    %488 = arith.divf %486, %487 : vector<8x1xf32>
    %489 = vector.broadcast %481 : vector<8x1xf32> to vector<8x32xf32>
    %490 = arith.subf %473, %489 : vector<8x32xf32>
    %cst_225 = arith.constant 9.99999974E-6 : f32
    %491 = vector.broadcast %cst_225 : f32 to vector<8x1xf32>
    %492 = arith.addf %488, %491 : vector<8x1xf32>
    %493 = math.rsqrt %492 : vector<8x1xf32>
    %494 = vector.broadcast %493 : vector<8x1xf32> to vector<8x32xf32>
    %495 = arith.mulf %490, %494 : vector<8x32xf32>
    %496 = vector.broadcast %475 : vector<1x32xf32> to vector<8x32xf32>
    %497 = arith.mulf %495, %496 : vector<8x32xf32>
    %498 = vector.broadcast %477 : vector<1x32xf32> to vector<8x32xf32>
    %499 = arith.addf %497, %498 : vector<8x32xf32>
    %c1_226 = arith.constant 1 : index
    %c0_227 = arith.constant 0 : index
    %c0_228 = arith.constant 0 : index
    %500 = vector.load %arg19[%c1_226, %c0_227, %c0_228] : memref<2x32x64xbf16, #tpu.memory_space<vmem>>, vector<1x32x64xbf16>
    %501 = vector.shape_cast %500 : vector<1x32x64xbf16> to vector<32x64xbf16>
    %502 = arith.truncf %499 : vector<8x32xf32> to vector<8x32xbf16>
    %cst_229 = arith.constant dense<0.000000e+00> : vector<8x64xf32>
    %503 = tpu.matmul %502, %501, %cst_229 {dimension_numbers = #tpu.dot_dimension_numbers<[1], [0], [0], [1], [0, 0, 1, 1], [], []>} : vector<8x32xbf16>, vector<32x64xbf16>, vector<8x64xf32> -> vector<8x64xf32>
    %c1_230 = arith.constant 1 : index
    %c0_231 = arith.constant 0 : index
    %c0_232 = arith.constant 0 : index
    %504 = vector.load %arg20[%c1_230, %c0_231, %c0_232] : memref<2x1x64xf32, #tpu.memory_space<vmem>>, vector<1x1x64xf32>
    %505 = vector.shape_cast %504 : vector<1x1x64xf32> to vector<1x64xf32>
    %506 = vector.broadcast %505 : vector<1x64xf32> to vector<8x64xf32>
    %507 = arith.addf %503, %506 : vector<8x64xf32>
    %508 = vector.extract_strided_slice %507 {offsets = [0, 0], sizes = [8, 32], strides = [1, 1]} : vector<8x64xf32> to vector<8x32xf32>
    %509 = vector.extract_strided_slice %507 {offsets = [0, 32], sizes = [8, 32], strides = [1, 1]} : vector<8x64xf32> to vector<8x32xf32>
    %cst_233 = arith.constant 0.000000e+00 : f32
    %510 = vector.broadcast %cst_233 : f32 to vector<8x32xf32>
    %511 = arith.subf %510, %509 : vector<8x32xf32>
    %512 = math.exp %511 : vector<8x32xf32>
    %cst_234 = arith.constant 1.000000e+00 : f32
    %513 = vector.broadcast %cst_234 : f32 to vector<8x32xf32>
    %514 = arith.addf %513, %512 : vector<8x32xf32>
    %cst_235 = arith.constant 1.000000e+00 : f32
    %515 = vector.broadcast %cst_235 : f32 to vector<8x32xf32>
    %516 = arith.divf %515, %514 : vector<8x32xf32>
    %517 = arith.mulf %508, %516 : vector<8x32xf32>
    %cst_236 = arith.constant 0.000000e+00 : f32
    %518 = vector.broadcast %cst_236 : f32 to vector<1x32xf32>
    %cst_237 = arith.constant 0.000000e+00 : f32
    %519 = vector.broadcast %cst_237 : f32 to vector<1x32xf32>
    %520 = tpu.concatenate %518, %517, %519 in 0 : vector<1x32xf32>, vector<8x32xf32>, vector<1x32xf32> -> vector<10x32xf32>
    %c1_238 = arith.constant 1 : index
    %c0_239 = arith.constant 0 : index
    %c0_240 = arith.constant 0 : index
    %521 = vector.load %arg21[%c1_238, %c0_239, %c0_240] : memref<2x3x32xf32, #tpu.memory_space<vmem>>, vector<1x3x32xf32>
    %522 = vector.shape_cast %521 : vector<1x3x32xf32> to vector<3x32xf32>
    %cst_241 = arith.constant 0.000000e+00 : f32
    %523 = vector.broadcast %cst_241 : f32 to vector<8x32xf32>
    %524 = vector.extract_strided_slice %520 {offsets = [0, 0], sizes = [8, 32], strides = [1, 1]} : vector<10x32xf32> to vector<8x32xf32>
    %525 = vector.extract_strided_slice %522 {offsets = [0, 0], sizes = [1, 32], strides = [1, 1]} : vector<3x32xf32> to vector<1x32xf32>
    %526 = vector.broadcast %525 : vector<1x32xf32> to vector<8x32xf32>
    %527 = arith.mulf %524, %526 : vector<8x32xf32>
    %528 = arith.addf %523, %527 : vector<8x32xf32>
    %529 = vector.extract_strided_slice %520 {offsets = [1, 0], sizes = [8, 32], strides = [1, 1]} : vector<10x32xf32> to vector<8x32xf32>
    %530 = vector.extract_strided_slice %522 {offsets = [1, 0], sizes = [1, 32], strides = [1, 1]} : vector<3x32xf32> to vector<1x32xf32>
    %531 = vector.broadcast %530 : vector<1x32xf32> to vector<8x32xf32>
    %532 = arith.mulf %529, %531 : vector<8x32xf32>
    %533 = arith.addf %528, %532 : vector<8x32xf32>
    %534 = vector.extract_strided_slice %520 {offsets = [2, 0], sizes = [8, 32], strides = [1, 1]} : vector<10x32xf32> to vector<8x32xf32>
    %535 = vector.extract_strided_slice %522 {offsets = [2, 0], sizes = [1, 32], strides = [1, 1]} : vector<3x32xf32> to vector<1x32xf32>
    %536 = vector.broadcast %535 : vector<1x32xf32> to vector<8x32xf32>
    %537 = arith.mulf %534, %536 : vector<8x32xf32>
    %538 = arith.addf %533, %537 : vector<8x32xf32>
    %c1_242 = arith.constant 1 : index
    %c0_243 = arith.constant 0 : index
    %c0_244 = arith.constant 0 : index
    %539 = vector.load %arg22[%c1_242, %c0_243, %c0_244] : memref<2x1x32xf32, #tpu.memory_space<vmem>>, vector<1x1x32xf32>
    %540 = vector.shape_cast %539 : vector<1x1x32xf32> to vector<1x32xf32>
    %541 = vector.broadcast %540 : vector<1x32xf32> to vector<8x32xf32>
    %542 = arith.addf %538, %541 : vector<8x32xf32>
    %c1_245 = arith.constant 1 : index
    %c0_246 = arith.constant 0 : index
    %c0_247 = arith.constant 0 : index
    %543 = vector.load %arg23[%c1_245, %c0_246, %c0_247] : memref<2x1x32xf32, #tpu.memory_space<vmem>>, vector<1x1x32xf32>
    %544 = vector.shape_cast %543 : vector<1x1x32xf32> to vector<1x32xf32>
    %545 = vector.broadcast %544 : vector<1x32xf32> to vector<8x32xf32>
    %546 = arith.mulf %542, %545 : vector<8x32xf32>
    %c1_248 = arith.constant 1 : index
    %c0_249 = arith.constant 0 : index
    %c0_250 = arith.constant 0 : index
    %547 = vector.load %arg24[%c1_248, %c0_249, %c0_250] : memref<2x1x32xf32, #tpu.memory_space<vmem>>, vector<1x1x32xf32>
    %548 = vector.shape_cast %547 : vector<1x1x32xf32> to vector<1x32xf32>
    %549 = vector.broadcast %548 : vector<1x32xf32> to vector<8x32xf32>
    %550 = arith.addf %546, %549 : vector<8x32xf32>
    %cst_251 = arith.constant 0.000000e+00 : f32
    %551 = vector.broadcast %cst_251 : f32 to vector<8x32xf32>
    %552 = arith.subf %551, %550 : vector<8x32xf32>
    %553 = math.exp %552 : vector<8x32xf32>
    %cst_252 = arith.constant 1.000000e+00 : f32
    %554 = vector.broadcast %cst_252 : f32 to vector<8x32xf32>
    %555 = arith.addf %554, %553 : vector<8x32xf32>
    %cst_253 = arith.constant 1.000000e+00 : f32
    %556 = vector.broadcast %cst_253 : f32 to vector<8x32xf32>
    %557 = arith.divf %556, %555 : vector<8x32xf32>
    %558 = arith.mulf %550, %557 : vector<8x32xf32>
    %c1_254 = arith.constant 1 : index
    %c0_255 = arith.constant 0 : index
    %c0_256 = arith.constant 0 : index
    %559 = vector.load %arg25[%c1_254, %c0_255, %c0_256] : memref<2x32x32xbf16, #tpu.memory_space<vmem>>, vector<1x32x32xbf16>
    %560 = vector.shape_cast %559 : vector<1x32x32xbf16> to vector<32x32xbf16>
    %561 = arith.truncf %558 : vector<8x32xf32> to vector<8x32xbf16>
    %cst_257 = arith.constant dense<0.000000e+00> : vector<8x32xf32>
    %562 = tpu.matmul %561, %560, %cst_257 {dimension_numbers = #tpu.dot_dimension_numbers<[1], [0], [0], [1], [0, 0, 1, 1], [], []>} : vector<8x32xbf16>, vector<32x32xbf16>, vector<8x32xf32> -> vector<8x32xf32>
    %c1_258 = arith.constant 1 : index
    %c0_259 = arith.constant 0 : index
    %c0_260 = arith.constant 0 : index
    %563 = vector.load %arg26[%c1_258, %c0_259, %c0_260] : memref<2x1x32xf32, #tpu.memory_space<vmem>>, vector<1x1x32xf32>
    %564 = vector.shape_cast %563 : vector<1x1x32xf32> to vector<1x32xf32>
    %565 = vector.broadcast %564 : vector<1x32xf32> to vector<8x32xf32>
    %566 = arith.addf %562, %565 : vector<8x32xf32>
    %567 = arith.addf %473, %566 : vector<8x32xf32>
    %c1_261 = arith.constant 1 : index
    %c0_262 = arith.constant 0 : index
    %c0_263 = arith.constant 0 : index
    %568 = vector.load %arg27[%c1_261, %c0_262, %c0_263] : memref<2x1x32xf32, #tpu.memory_space<vmem>>, vector<1x1x32xf32>
    %569 = vector.shape_cast %568 : vector<1x1x32xf32> to vector<1x32xf32>
    %c1_264 = arith.constant 1 : index
    %c0_265 = arith.constant 0 : index
    %c0_266 = arith.constant 0 : index
    %570 = vector.load %arg28[%c1_264, %c0_265, %c0_266] : memref<2x1x32xf32, #tpu.memory_space<vmem>>, vector<1x1x32xf32>
    %571 = vector.shape_cast %570 : vector<1x1x32xf32> to vector<1x32xf32>
    %cst_267 = arith.constant dense<0.000000e+00> : vector<8xf32>
    %572 = vector.multi_reduction <add>, %567, %cst_267 [1] : vector<8x32xf32> to vector<8xf32>
    %573 = vector.shape_cast %572 : vector<8xf32> to vector<8x1xf32>
    %cst_268 = arith.constant 3.200000e+01 : f32
    %574 = vector.broadcast %cst_268 : f32 to vector<8x1xf32>
    %575 = arith.divf %573, %574 : vector<8x1xf32>
    %576 = vector.broadcast %575 : vector<8x1xf32> to vector<8x32xf32>
    %577 = arith.subf %567, %576 : vector<8x32xf32>
    %578 = arith.mulf %577, %577 : vector<8x32xf32>
    %cst_269 = arith.constant dense<0.000000e+00> : vector<8xf32>
    %579 = vector.multi_reduction <add>, %578, %cst_269 [1] : vector<8x32xf32> to vector<8xf32>
    %580 = vector.shape_cast %579 : vector<8xf32> to vector<8x1xf32>
    %cst_270 = arith.constant 3.200000e+01 : f32
    %581 = vector.broadcast %cst_270 : f32 to vector<8x1xf32>
    %582 = arith.divf %580, %581 : vector<8x1xf32>
    %583 = vector.broadcast %575 : vector<8x1xf32> to vector<8x32xf32>
    %584 = arith.subf %567, %583 : vector<8x32xf32>
    %cst_271 = arith.constant 9.99999974E-6 : f32
    %585 = vector.broadcast %cst_271 : f32 to vector<8x1xf32>
    %586 = arith.addf %582, %585 : vector<8x1xf32>
    %587 = math.rsqrt %586 : vector<8x1xf32>
    %588 = vector.broadcast %587 : vector<8x1xf32> to vector<8x32xf32>
    %589 = arith.mulf %584, %588 : vector<8x32xf32>
    %590 = vector.broadcast %569 : vector<1x32xf32> to vector<8x32xf32>
    %591 = arith.mulf %589, %590 : vector<8x32xf32>
    %592 = vector.broadcast %571 : vector<1x32xf32> to vector<8x32xf32>
    %593 = arith.addf %591, %592 : vector<8x32xf32>
    %c1_272 = arith.constant 1 : index
    %c0_273 = arith.constant 0 : index
    %c0_274 = arith.constant 0 : index
    %594 = vector.load %arg29[%c1_272, %c0_273, %c0_274] : memref<2x32x64xbf16, #tpu.memory_space<vmem>>, vector<1x32x64xbf16>
    %595 = vector.shape_cast %594 : vector<1x32x64xbf16> to vector<32x64xbf16>
    %596 = arith.truncf %593 : vector<8x32xf32> to vector<8x32xbf16>
    %cst_275 = arith.constant dense<0.000000e+00> : vector<8x64xf32>
    %597 = tpu.matmul %596, %595, %cst_275 {dimension_numbers = #tpu.dot_dimension_numbers<[1], [0], [0], [1], [0, 0, 1, 1], [], []>} : vector<8x32xbf16>, vector<32x64xbf16>, vector<8x64xf32> -> vector<8x64xf32>
    %c1_276 = arith.constant 1 : index
    %c0_277 = arith.constant 0 : index
    %c0_278 = arith.constant 0 : index
    %598 = vector.load %arg30[%c1_276, %c0_277, %c0_278] : memref<2x1x64xf32, #tpu.memory_space<vmem>>, vector<1x1x64xf32>
    %599 = vector.shape_cast %598 : vector<1x1x64xf32> to vector<1x64xf32>
    %600 = vector.broadcast %599 : vector<1x64xf32> to vector<8x64xf32>
    %601 = arith.addf %597, %600 : vector<8x64xf32>
    %cst_279 = arith.constant 0.000000e+00 : f32
    %602 = vector.broadcast %cst_279 : f32 to vector<8x64xf32>
    %603 = arith.subf %602, %601 : vector<8x64xf32>
    %604 = math.exp %603 : vector<8x64xf32>
    %cst_280 = arith.constant 1.000000e+00 : f32
    %605 = vector.broadcast %cst_280 : f32 to vector<8x64xf32>
    %606 = arith.addf %605, %604 : vector<8x64xf32>
    %cst_281 = arith.constant 1.000000e+00 : f32
    %607 = vector.broadcast %cst_281 : f32 to vector<8x64xf32>
    %608 = arith.divf %607, %606 : vector<8x64xf32>
    %609 = arith.mulf %601, %608 : vector<8x64xf32>
    %c1_282 = arith.constant 1 : index
    %c0_283 = arith.constant 0 : index
    %c0_284 = arith.constant 0 : index
    %610 = vector.load %arg31[%c1_282, %c0_283, %c0_284] : memref<2x64x32xbf16, #tpu.memory_space<vmem>>, vector<1x64x32xbf16>
    %611 = vector.shape_cast %610 : vector<1x64x32xbf16> to vector<64x32xbf16>
    %612 = arith.truncf %609 : vector<8x64xf32> to vector<8x64xbf16>
    %cst_285 = arith.constant dense<0.000000e+00> : vector<8x32xf32>
    %613 = tpu.matmul %612, %611, %cst_285 {dimension_numbers = #tpu.dot_dimension_numbers<[1], [0], [0], [1], [0, 0, 1, 1], [], []>} : vector<8x64xbf16>, vector<64x32xbf16>, vector<8x32xf32> -> vector<8x32xf32>
    %c1_286 = arith.constant 1 : index
    %c0_287 = arith.constant 0 : index
    %c0_288 = arith.constant 0 : index
    %614 = vector.load %arg32[%c1_286, %c0_287, %c0_288] : memref<2x1x32xf32, #tpu.memory_space<vmem>>, vector<1x1x32xf32>
    %615 = vector.shape_cast %614 : vector<1x1x32xf32> to vector<1x32xf32>
    %616 = vector.broadcast %615 : vector<1x32xf32> to vector<8x32xf32>
    %617 = arith.addf %613, %616 : vector<8x32xf32>
    %cst_289 = arith.constant 5.000000e-01 : f32
    %618 = vector.broadcast %cst_289 : f32 to vector<8x32xf32>
    %619 = arith.mulf %618, %617 : vector<8x32xf32>
    %620 = arith.addf %567, %619 : vector<8x32xf32>
    %c1_290 = arith.constant 1 : index
    %c0_291 = arith.constant 0 : index
    %c0_292 = arith.constant 0 : index
    %621 = vector.load %arg33[%c1_290, %c0_291, %c0_292] : memref<2x1x32xf32, #tpu.memory_space<vmem>>, vector<1x1x32xf32>
    %622 = vector.shape_cast %621 : vector<1x1x32xf32> to vector<1x32xf32>
    %c1_293 = arith.constant 1 : index
    %c0_294 = arith.constant 0 : index
    %c0_295 = arith.constant 0 : index
    %623 = vector.load %arg34[%c1_293, %c0_294, %c0_295] : memref<2x1x32xf32, #tpu.memory_space<vmem>>, vector<1x1x32xf32>
    %624 = vector.shape_cast %623 : vector<1x1x32xf32> to vector<1x32xf32>
    %cst_296 = arith.constant dense<0.000000e+00> : vector<8xf32>
    %625 = vector.multi_reduction <add>, %620, %cst_296 [1] : vector<8x32xf32> to vector<8xf32>
    %626 = vector.shape_cast %625 : vector<8xf32> to vector<8x1xf32>
    %cst_297 = arith.constant 3.200000e+01 : f32
    %627 = vector.broadcast %cst_297 : f32 to vector<8x1xf32>
    %628 = arith.divf %626, %627 : vector<8x1xf32>
    %629 = vector.broadcast %628 : vector<8x1xf32> to vector<8x32xf32>
    %630 = arith.subf %620, %629 : vector<8x32xf32>
    %631 = arith.mulf %630, %630 : vector<8x32xf32>
    %cst_298 = arith.constant dense<0.000000e+00> : vector<8xf32>
    %632 = vector.multi_reduction <add>, %631, %cst_298 [1] : vector<8x32xf32> to vector<8xf32>
    %633 = vector.shape_cast %632 : vector<8xf32> to vector<8x1xf32>
    %cst_299 = arith.constant 3.200000e+01 : f32
    %634 = vector.broadcast %cst_299 : f32 to vector<8x1xf32>
    %635 = arith.divf %633, %634 : vector<8x1xf32>
    %636 = vector.broadcast %628 : vector<8x1xf32> to vector<8x32xf32>
    %637 = arith.subf %620, %636 : vector<8x32xf32>
    %cst_300 = arith.constant 9.99999974E-6 : f32
    %638 = vector.broadcast %cst_300 : f32 to vector<8x1xf32>
    %639 = arith.addf %635, %638 : vector<8x1xf32>
    %640 = math.rsqrt %639 : vector<8x1xf32>
    %641 = vector.broadcast %640 : vector<8x1xf32> to vector<8x32xf32>
    %642 = arith.mulf %637, %641 : vector<8x32xf32>
    %643 = vector.broadcast %622 : vector<1x32xf32> to vector<8x32xf32>
    %644 = arith.mulf %642, %643 : vector<8x32xf32>
    %645 = vector.broadcast %624 : vector<1x32xf32> to vector<8x32xf32>
    %646 = arith.addf %644, %645 : vector<8x32xf32>
    %c0_301 = arith.constant 0 : index
    %c0_302 = arith.constant 0 : index
    %647 = vector.load %arg35[%c0_301, %c0_302] : memref<1x32xf32, #tpu.memory_space<vmem>>, vector<1x32xf32>
    %648 = vector.broadcast %647 : vector<1x32xf32> to vector<8x32xf32>
    %649 = arith.mulf %646, %648 : vector<8x32xf32>
    %cst_303 = arith.constant dense<0.000000e+00> : vector<8xf32>
    %650 = vector.multi_reduction <add>, %649, %cst_303 [1] : vector<8x32xf32> to vector<8xf32>
    %651 = vector.shape_cast %650 : vector<8xf32> to vector<8x1xf32>
    %c0_304 = arith.constant 0 : index
    %c0_305 = arith.constant 0 : index
    %652 = vector.load %arg36[%c0_304, %c0_305] : memref<1x1xf32, #tpu.memory_space<vmem>>, vector<1x1xf32>
    %653 = vector.broadcast %652 : vector<1x1xf32> to vector<8x1xf32>
    %654 = arith.addf %651, %653 : vector<8x1xf32>
    %cst_306 = arith.constant dense<0xFF800000> : vector<1xf32>
    %655 = vector.multi_reduction <maximumf>, %654, %cst_306 [0] : vector<8x1xf32> to vector<1xf32>
    %656 = vector.shape_cast %655 : vector<1xf32> to vector<1x1xf32>
    %657 = vector.broadcast %656 : vector<1x1xf32> to vector<8x1xf32>
    %658 = arith.subf %654, %657 : vector<8x1xf32>
    %659 = math.exp %658 : vector<8x1xf32>
    %cst_307 = arith.constant dense<0.000000e+00> : vector<1xf32>
    %660 = vector.multi_reduction <add>, %659, %cst_307 [0] : vector<8x1xf32> to vector<1xf32>
    %661 = vector.shape_cast %660 : vector<1xf32> to vector<1x1xf32>
    %662 = tpu.reciprocal %661 {approx = true} : vector<1x1xf32> -> vector<1x1xf32>
    %663 = vector.broadcast %662 : vector<1x1xf32> to vector<8x1xf32>
    %664 = arith.mulf %659, %663 : vector<8x1xf32>
    %665 = vector.broadcast %664 : vector<8x1xf32> to vector<8x32xf32>
    %666 = arith.mulf %665, %646 : vector<8x32xf32>
    %cst_308 = arith.constant dense<0.000000e+00> : vector<32xf32>
    %667 = vector.multi_reduction <add>, %666, %cst_308 [0] : vector<8x32xf32> to vector<32xf32>
    %668 = vector.shape_cast %667 : vector<32xf32> to vector<1x32xf32>
    %c0_309 = arith.constant 0 : index
    %c0_310 = arith.constant 0 : index
    %669 = vector.load %arg37[%c0_309, %c0_310] : memref<32x640xbf16, #tpu.memory_space<vmem>>, vector<32x640xbf16>
    %670 = arith.truncf %668 : vector<1x32xf32> to vector<1x32xbf16>
    %cst_311 = arith.constant dense<0.000000e+00> : vector<1x640xf32>
    %671 = tpu.matmul %670, %669, %cst_311 {dimension_numbers = #tpu.dot_dimension_numbers<[1], [0], [0], [1], [0, 0, 1, 1], [], []>} : vector<1x32xbf16>, vector<32x640xbf16>, vector<1x640xf32> -> vector<1x640xf32>
    %c0_312 = arith.constant 0 : index
    %c0_313 = arith.constant 0 : index
    %672 = vector.load %arg38[%c0_312, %c0_313] : memref<1x640xf32, #tpu.memory_space<vmem>>, vector<1x640xf32>
    %673 = arith.addf %671, %672 : vector<1x640xf32>
    %c0_314 = arith.constant 0 : index
    %c0_315 = arith.constant 0 : index
    %c0_316 = arith.constant 0 : index
    %674 = vector.load %arg39[%c0_314, %c0_315, %c0_316] : memref<1x1x640xf32, #tpu.memory_space<vmem>>, vector<1x1x640xf32>
    %675 = vector.shape_cast %674 : vector<1x1x640xf32> to vector<1x640xf32>
    %676 = vector.shape_cast %673 : vector<1x640xf32> to vector<1x1x640xf32>
    tpu.vector_store %arg39[%c0_314, %c0_315, %c0_316], %676 {strides = array<i32>} : memref<1x1x640xf32, #tpu.memory_space<vmem>>, vector<1x1x640xf32>,
    return
  }
  func.func @transform_0(%arg0: i32, %arg1: memref<2xi32, #tpu.memory_space<smem>>) -> (i32, i32, i32) {
    %c0_i32 = arith.constant 0 : i32
    %c0_i32_0 = arith.constant 0 : i32
    %c0_i32_1 = arith.constant 0 : i32
    return %arg0, %c0_i32, %c0_i32_0 : i32, i32, i32
  }
  func.func @transform_1(%arg0: i32, %arg1: memref<2xi32, #tpu.memory_space<smem>>) -> (i32, i32) {
    %c0_i32 = arith.constant 0 : i32
    %c0_i32_0 = arith.constant 0 : i32
    %c0_i32_1 = arith.constant 0 : i32
    return %c0_i32, %c0_i32_0 : i32, i32
  }
  func.func @transform_2(%arg0: i32, %arg1: memref<2xi32, #tpu.memory_space<smem>>) -> (i32, i32) {
    %c0_i32 = arith.constant 0 : i32
    %c0_i32_0 = arith.constant 0 : i32
    %c0_i32_1 = arith.constant 0 : i32
    return %c0_i32, %c0_i32_0 : i32, i32
  }
  func.func @transform_3(%arg0: i32, %arg1: memref<2xi32, #tpu.memory_space<smem>>) -> (i32, i32, i32) {
    %c0_i32 = arith.constant 0 : i32
    %c0_i32_0 = arith.constant 0 : i32
    %c0_i32_1 = arith.constant 0 : i32
    %c0_i32_2 = arith.constant 0 : i32
    return %c0_i32, %c0_i32_0, %c0_i32_1 : i32, i32, i32
  }
  func.func @transform_4(%arg0: i32, %arg1: memref<2xi32, #tpu.memory_space<smem>>) -> (i32, i32, i32) {
    %c0_i32 = arith.constant 0 : i32
    %c0_i32_0 = arith.constant 0 : i32
    %c0_i32_1 = arith.constant 0 : i32
    %c0_i32_2 = arith.constant 0 : i32
    return %c0_i32, %c0_i32_0, %c0_i32_1 : i32, i32, i32
  }
  func.func @transform_5(%arg0: i32, %arg1: memref<2xi32, #tpu.memory_space<smem>>) -> (i32, i32, i32) {
    %c0_i32 = arith.constant 0 : i32
    %c0_i32_0 = arith.constant 0 : i32
    %c0_i32_1 = arith.constant 0 : i32
    %c0_i32_2 = arith.constant 0 : i32
    return %c0_i32, %c0_i32_0, %c0_i32_1 : i32, i32, i32
  }
  func.func @transform_6(%arg0: i32, %arg1: memref<2xi32, #tpu.memory_space<smem>>) -> (i32, i32, i32) {
    %c0_i32 = arith.constant 0 : i32
    %c0_i32_0 = arith.constant 0 : i32
    %c0_i32_1 = arith.constant 0 : i32
    %c0_i32_2 = arith.constant 0 : i32
    return %c0_i32, %c0_i32_0, %c0_i32_1 : i32, i32, i32
  }
  func.func @transform_7(%arg0: i32, %arg1: memref<2xi32, #tpu.memory_space<smem>>) -> (i32, i32, i32) {
    %c0_i32 = arith.constant 0 : i32
    %c0_i32_0 = arith.constant 0 : i32
    %c0_i32_1 = arith.constant 0 : i32
    %c0_i32_2 = arith.constant 0 : i32
    return %c0_i32, %c0_i32_0, %c0_i32_1 : i32, i32, i32
  }
  func.func @transform_8(%arg0: i32, %arg1: memref<2xi32, #tpu.memory_space<smem>>) -> (i32, i32, i32) {
    %c0_i32 = arith.constant 0 : i32
    %c0_i32_0 = arith.constant 0 : i32
    %c0_i32_1 = arith.constant 0 : i32
    %c0_i32_2 = arith.constant 0 : i32
    return %c0_i32, %c0_i32_0, %c0_i32_1 : i32, i32, i32
  }
  func.func @transform_9(%arg0: i32, %arg1: memref<2xi32, #tpu.memory_space<smem>>) -> (i32, i32, i32) {
    %c0_i32 = arith.constant 0 : i32
    %c0_i32_0 = arith.constant 0 : i32
    %c0_i32_1 = arith.constant 0 : i32
    %c0_i32_2 = arith.constant 0 : i32
    return %c0_i32, %c0_i32_0, %c0_i32_1 : i32, i32, i32
  }
  func.func @transform_10(%arg0: i32, %arg1: memref<2xi32, #tpu.memory_space<smem>>) -> (i32, i32, i32) {
    %c0_i32 = arith.constant 0 : i32
    %c0_i32_0 = arith.constant 0 : i32
    %c0_i32_1 = arith.constant 0 : i32
    %c0_i32_2 = arith.constant 0 : i32
    return %c0_i32, %c0_i32_0, %c0_i32_1 : i32, i32, i32
  }
  func.func @transform_11(%arg0: i32, %arg1: memref<2xi32, #tpu.memory_space<smem>>) -> (i32, i32, i32) {
    %c0_i32 = arith.constant 0 : i32
    %c0_i32_0 = arith.constant 0 : i32
    %c0_i32_1 = arith.constant 0 : i32
    %c0_i32_2 = arith.constant 0 : i32
    return %c0_i32, %c0_i32_0, %c0_i32_1 : i32, i32, i32
  }
  func.func @transform_12(%arg0: i32, %arg1: memref<2xi32, #tpu.memory_space<smem>>) -> (i32, i32, i32) {
    %c0_i32 = arith.constant 0 : i32
    %c0_i32_0 = arith.constant 0 : i32
    %c0_i32_1 = arith.constant 0 : i32
    %c0_i32_2 = arith.constant 0 : i32
    return %c0_i32, %c0_i32_0, %c0_i32_1 : i32, i32, i32
  }
  func.func @transform_13(%arg0: i32, %arg1: memref<2xi32, #tpu.memory_space<smem>>) -> (i32, i32, i32, i32) {
    %c0_i32 = arith.constant 0 : i32
    %c0_i32_0 = arith.constant 0 : i32
    %c0_i32_1 = arith.constant 0 : i32
    %c0_i32_2 = arith.constant 0 : i32
    %c0_i32_3 = arith.constant 0 : i32
    return %c0_i32, %c0_i32_0, %c0_i32_1, %c0_i32_2 : i32, i32, i32, i32
  }
  func.func @transform_14(%arg0: i32, %arg1: memref<2xi32, #tpu.memory_space<smem>>) -> (i32, i32, i32) {
    %c0_i32 = arith.constant 0 : i32
    %c0_i32_0 = arith.constant 0 : i32
    %c0_i32_1 = arith.constant 0 : i32
    %c0_i32_2 = arith.constant 0 : i32
    return %c0_i32, %c0_i32_0, %c0_i32_1 : i32, i32, i32
  }
  func.func @transform_15(%arg0: i32, %arg1: memref<2xi32, #tpu.memory_space<smem>>) -> (i32, i32, i32) {
    %c0_i32 = arith.constant 0 : i32
    %c0_i32_0 = arith.constant 0 : i32
    %c0_i32_1 = arith.constant 0 : i32
    %c0_i32_2 = arith.constant 0 : i32
    return %c0_i32, %c0_i32_0, %c0_i32_1 : i32, i32, i32
  }
  func.func @transform_16(%arg0: i32, %arg1: memref<2xi32, #tpu.memory_space<smem>>) -> (i32, i32, i32) {
    %c0_i32 = arith.constant 0 : i32
    %c0_i32_0 = arith.constant 0 : i32
    %c0_i32_1 = arith.constant 0 : i32
    %c0_i32_2 = arith.constant 0 : i32
    return %c0_i32, %c0_i32_0, %c0_i32_1 : i32, i32, i32
  }
  func.func @transform_17(%arg0: i32, %arg1: memref<2xi32, #tpu.memory_space<smem>>) -> (i32, i32, i32) {
    %c0_i32 = arith.constant 0 : i32
    %c0_i32_0 = arith.constant 0 : i32
    %c0_i32_1 = arith.constant 0 : i32
    %c0_i32_2 = arith.constant 0 : i32
    return %c0_i32, %c0_i32_0, %c0_i32_1 : i32, i32, i32
  }
  func.func @transform_18(%arg0: i32, %arg1: memref<2xi32, #tpu.memory_space<smem>>) -> (i32, i32, i32) {
    %c0_i32 = arith.constant 0 : i32
    %c0_i32_0 = arith.constant 0 : i32
    %c0_i32_1 = arith.constant 0 : i32
    %c0_i32_2 = arith.constant 0 : i32
    return %c0_i32, %c0_i32_0, %c0_i32_1 : i32, i32, i32
  }
  func.func @transform_19(%arg0: i32, %arg1: memref<2xi32, #tpu.memory_space<smem>>) -> (i32, i32, i32) {
    %c0_i32 = arith.constant 0 : i32
    %c0_i32_0 = arith.constant 0 : i32
    %c0_i32_1 = arith.constant 0 : i32
    %c0_i32_2 = arith.constant 0 : i32
    return %c0_i32, %c0_i32_0, %c0_i32_1 : i32, i32, i32
  }
  func.func @transform_20(%arg0: i32, %arg1: memref<2xi32, #tpu.memory_space<smem>>) -> (i32, i32, i32) {
    %c0_i32 = arith.constant 0 : i32
    %c0_i32_0 = arith.constant 0 : i32
    %c0_i32_1 = arith.constant 0 : i32
    %c0_i32_2 = arith.constant 0 : i32
    return %c0_i32, %c0_i32_0, %c0_i32_1 : i32, i32, i32
  }
  func.func @transform_21(%arg0: i32, %arg1: memref<2xi32, #tpu.memory_space<smem>>) -> (i32, i32, i32) {
    %c0_i32 = arith.constant 0 : i32
    %c0_i32_0 = arith.constant 0 : i32
    %c0_i32_1 = arith.constant 0 : i32
    %c0_i32_2 = arith.constant 0 : i32
    return %c0_i32, %c0_i32_0, %c0_i32_1 : i32, i32, i32
  }
  func.func @transform_22(%arg0: i32, %arg1: memref<2xi32, #tpu.memory_space<smem>>) -> (i32, i32, i32) {
    %c0_i32 = arith.constant 0 : i32
    %c0_i32_0 = arith.constant 0 : i32
    %c0_i32_1 = arith.constant 0 : i32
    %c0_i32_2 = arith.constant 0 : i32
    return %c0_i32, %c0_i32_0, %c0_i32_1 : i32, i32, i32
  }
  func.func @transform_23(%arg0: i32, %arg1: memref<2xi32, #tpu.memory_space<smem>>) -> (i32, i32, i32) {
    %c0_i32 = arith.constant 0 : i32
    %c0_i32_0 = arith.constant 0 : i32
    %c0_i32_1 = arith.constant 0 : i32
    %c0_i32_2 = arith.constant 0 : i32
    return %c0_i32, %c0_i32_0, %c0_i32_1 : i32, i32, i32
  }
  func.func @transform_24(%arg0: i32, %arg1: memref<2xi32, #tpu.memory_space<smem>>) -> (i32, i32, i32) {
    %c0_i32 = arith.constant 0 : i32
    %c0_i32_0 = arith.constant 0 : i32
    %c0_i32_1 = arith.constant 0 : i32
    %c0_i32_2 = arith.constant 0 : i32
    return %c0_i32, %c0_i32_0, %c0_i32_1 : i32, i32, i32
  }
  func.func @transform_25(%arg0: i32, %arg1: memref<2xi32, #tpu.memory_space<smem>>) -> (i32, i32, i32) {
    %c0_i32 = arith.constant 0 : i32
    %c0_i32_0 = arith.constant 0 : i32
    %c0_i32_1 = arith.constant 0 : i32
    %c0_i32_2 = arith.constant 0 : i32
    return %c0_i32, %c0_i32_0, %c0_i32_1 : i32, i32, i32
  }
  func.func @transform_26(%arg0: i32, %arg1: memref<2xi32, #tpu.memory_space<smem>>) -> (i32, i32, i32) {
    %c0_i32 = arith.constant 0 : i32
    %c0_i32_0 = arith.constant 0 : i32
    %c0_i32_1 = arith.constant 0 : i32
    %c0_i32_2 = arith.constant 0 : i32
    return %c0_i32, %c0_i32_0, %c0_i32_1 : i32, i32, i32
  }
  func.func @transform_27(%arg0: i32, %arg1: memref<2xi32, #tpu.memory_space<smem>>) -> (i32, i32, i32) {
    %c0_i32 = arith.constant 0 : i32
    %c0_i32_0 = arith.constant 0 : i32
    %c0_i32_1 = arith.constant 0 : i32
    %c0_i32_2 = arith.constant 0 : i32
    return %c0_i32, %c0_i32_0, %c0_i32_1 : i32, i32, i32
  }
  func.func @transform_28(%arg0: i32, %arg1: memref<2xi32, #tpu.memory_space<smem>>) -> (i32, i32, i32) {
    %c0_i32 = arith.constant 0 : i32
    %c0_i32_0 = arith.constant 0 : i32
    %c0_i32_1 = arith.constant 0 : i32
    %c0_i32_2 = arith.constant 0 : i32
    return %c0_i32, %c0_i32_0, %c0_i32_1 : i32, i32, i32
  }
  func.func @transform_29(%arg0: i32, %arg1: memref<2xi32, #tpu.memory_space<smem>>) -> (i32, i32, i32) {
    %c0_i32 = arith.constant 0 : i32
    %c0_i32_0 = arith.constant 0 : i32
    %c0_i32_1 = arith.constant 0 : i32
    %c0_i32_2 = arith.constant 0 : i32
    return %c0_i32, %c0_i32_0, %c0_i32_1 : i32, i32, i32
  }
  func.func @transform_30(%arg0: i32, %arg1: memref<2xi32, #tpu.memory_space<smem>>) -> (i32, i32, i32) {
    %c0_i32 = arith.constant 0 : i32
    %c0_i32_0 = arith.constant 0 : i32
    %c0_i32_1 = arith.constant 0 : i32
    %c0_i32_2 = arith.constant 0 : i32
    return %c0_i32, %c0_i32_0, %c0_i32_1 : i32, i32, i32
  }
  func.func @transform_31(%arg0: i32, %arg1: memref<2xi32, #tpu.memory_space<smem>>) -> (i32, i32, i32) {
    %c0_i32 = arith.constant 0 : i32
    %c0_i32_0 = arith.constant 0 : i32
    %c0_i32_1 = arith.constant 0 : i32
    %c0_i32_2 = arith.constant 0 : i32
    return %c0_i32, %c0_i32_0, %c0_i32_1 : i32, i32, i32
  }
  func.func @transform_32(%arg0: i32, %arg1: memref<2xi32, #tpu.memory_space<smem>>) -> (i32, i32, i32) {
    %c0_i32 = arith.constant 0 : i32
    %c0_i32_0 = arith.constant 0 : i32
    %c0_i32_1 = arith.constant 0 : i32
    %c0_i32_2 = arith.constant 0 : i32
    return %c0_i32, %c0_i32_0, %c0_i32_1 : i32, i32, i32
  }
  func.func @transform_33(%arg0: i32, %arg1: memref<2xi32, #tpu.memory_space<smem>>) -> (i32, i32) {
    %c0_i32 = arith.constant 0 : i32
    %c0_i32_0 = arith.constant 0 : i32
    %c0_i32_1 = arith.constant 0 : i32
    return %c0_i32, %c0_i32_0 : i32, i32
  }
  func.func @transform_34(%arg0: i32, %arg1: memref<2xi32, #tpu.memory_space<smem>>) -> (i32, i32) {
    %c0_i32 = arith.constant 0 : i32
    %c0_i32_0 = arith.constant 0 : i32
    %c0_i32_1 = arith.constant 0 : i32
    return %c0_i32, %c0_i32_0 : i32, i32
  }
  func.func @transform_35(%arg0: i32, %arg1: memref<2xi32, #tpu.memory_space<smem>>) -> (i32, i32) {
    %c0_i32 = arith.constant 0 : i32
    %c0_i32_0 = arith.constant 0 : i32
    %c0_i32_1 = arith.constant 0 : i32
    return %c0_i32, %c0_i32_0 : i32, i32
  }
  func.func @transform_36(%arg0: i32, %arg1: memref<2xi32, #tpu.memory_space<smem>>) -> (i32, i32) {
    %c0_i32 = arith.constant 0 : i32
    %c0_i32_0 = arith.constant 0 : i32
    %c0_i32_1 = arith.constant 0 : i32
    return %c0_i32, %c0_i32_0 : i32, i32
  }
  func.func @transform_37(%arg0: i32, %arg1: memref<2xi32, #tpu.memory_space<smem>>) -> (i32, i32, i32) {
    %c0_i32 = arith.constant 0 : i32
    %c0_i32_0 = arith.constant 0 : i32
    %c0_i32_1 = arith.constant 0 : i32
    return %arg0, %c0_i32, %c0_i32_0 : i32, i32, i32
  }
}

</mosaic_0001>

<llo_original>
// kernel: tpu_custom_call.1
$region0: #{tpu_custom_call.1}
  #allocation0 [shape = 'u32[]', space=smem, size = 0x4, offset = 0x4, fixed_abs, tag = 'smem constant byte address 0x4 - core index']
  #allocation1 [shape = 'u32[144,128]{1,0:T(1,128)}', space=vmem, size = 0x12000, scoped, tag = 'internal scratch']
  #allocation2 [shape = 's32[1]{0}', space=sflag, size = 0x4, scoped, tag = 'scoped memory for tpu_custom_call.1']
  #allocation3 [shape = 'u8[512]{0}', space=smem, size = 0x200, scoped, tag = 'prefetched SMEM operand 0']
  #allocation4 [shape = 'f32[1,1]{1,0:T(1,128)S(1)}', space=vmem, size = 0x200, scoped, tag = 'scoped memory for tpu_custom_call.1']
  %s0 = inlined_call_operand.smem [shape: u32[39], index: -1, kind: input, shape index: {}]
  %s1 = sld [smem:[%s0]]
  %s2 = scalar_lea.smem %s0, 1
  %s3 = sld [smem:[%s2]]
  %s4 = scalar_lea.smem %s0, 2
  %s5 = sld [smem:[%s4]]
  %s6 = scalar_lea.smem %s0, 3
  %s7 = sld [smem:[%s6]]
  %s8 = scalar_lea.smem %s0, 4
  %s9 = sld [smem:[%s8]]
  %s10 = scalar_lea.smem %s0, 5
  %s11 = sld [smem:[%s10]]
  %s12 = scalar_lea.smem %s0, 6
  %s13 = sld [smem:[%s12]]
  %s14 = scalar_lea.smem %s0, 7
  %s15 = sld [smem:[%s14]]
  %s16 = scalar_lea.smem %s0, 8
  %s17 = sld [smem:[%s16]]
  %s18 = scalar_lea.smem %s0, 9
  %s19 = sld [smem:[%s18]]
  %s20 = scalar_lea.smem %s0, 10
  %s21 = sld [smem:[%s20]]
  %s22 = scalar_lea.smem %s0, 11
  %s23 = sld [smem:[%s22]]
  %s24 = scalar_lea.smem %s0, 12
  %s25 = sld [smem:[%s24]]
  %s26 = scalar_lea.smem %s0, 13
  %s27 = sld [smem:[%s26]]
  %s28 = scalar_lea.smem %s0, 14
  %s29 = sld [smem:[%s28]]
  %s30 = scalar_lea.smem %s0, 15
  %s31 = sld [smem:[%s30]]
  %s32 = scalar_lea.smem %s0, 16
  %s33 = sld [smem:[%s32]]
  %s34 = scalar_lea.smem %s0, 17
  %s35 = sld [smem:[%s34]]
  %s36 = scalar_lea.smem %s0, 18
  %s37 = sld [smem:[%s36]]
  %s38 = scalar_lea.smem %s0, 19
  %s39 = sld [smem:[%s38]]
  %s40 = scalar_lea.smem %s0, 20
  %s41 = sld [smem:[%s40]]
  %s42 = scalar_lea.smem %s0, 21
  %s43 = sld [smem:[%s42]]
  %s44 = scalar_lea.smem %s0, 22
  %s45 = sld [smem:[%s44]]
  %s46 = scalar_lea.smem %s0, 23
  %s47 = sld [smem:[%s46]]
  %s48 = scalar_lea.smem %s0, 24
  %s49 = sld [smem:[%s48]]
  %s50 = scalar_lea.smem %s0, 25
  %s51 = sld [smem:[%s50]]
  %s52 = scalar_lea.smem %s0, 26
  %s53 = sld [smem:[%s52]]
  %s54 = scalar_lea.smem %s0, 27
  %s55 = sld [smem:[%s54]]
  %s56 = scalar_lea.smem %s0, 28
  %s57 = sld [smem:[%s56]]
  %s58 = scalar_lea.smem %s0, 29
  %s59 = sld [smem:[%s58]]
  %s60 = scalar_lea.smem %s0, 30
  %s61 = sld [smem:[%s60]]
  %s62 = scalar_lea.smem %s0, 31
  %s63 = sld [smem:[%s62]]
  %s64 = scalar_lea.smem %s0, 32
  %s65 = sld [smem:[%s64]]
  %s66 = scalar_lea.smem %s0, 33
  %s67 = sld [smem:[%s66]]
  %s68 = scalar_lea.smem %s0, 34
  %s69 = sld [smem:[%s68]]
  %s70 = scalar_lea.smem %s0, 35
  %s71 = sld [smem:[%s70]]
  %s72 = scalar_lea.smem %s0, 36
  %s73 = sld [smem:[%s72]]
  %s74 = scalar_lea.smem %s0, 37
  %s75 = sld [smem:[%s74]]
  %s76 = scalar_lea.smem %s0, 38
  %s77 = sld [smem:[%s76]]
  %s78 = sld [smem:[#allocation0]]
  $region245: #{tpu_custom_call.1} parent=0
    _
  %s80 = ssub.s32 1, %s78
  %s81 = scalar_select 0, %s80, %s78
  %83 = dma.hbm_to_smem %s1, 16, [#allocation3], [#allocation2]
  %v84 = vstv %s71
  %85 = vst [vmem:[#allocation4] sm:$0x1] %v84
  %86 = dma.done [#allocation2], 16
  %87 = sfence
  $region1: #{tpu_custom_call.1} parent=0
    #allocation5 [shape = 'u8[8192]{0}', space=vmem, size = 0x2000, scoped, tag = 'input window, operand 1']
    #allocation6 [shape = 's32[2]{0}', space=sflag, size = 0x8, scoped, tag = 'scoped memory for tpu_custom_call.1']
    #allocation7 [shape = 's32[2]{0}', space=sflag, size = 0x8, scoped, tag = 'scoped memory for tpu_custom_call.1']
    #allocation8 [shape = 'u8[512]{0}', space=vmem, size = 0x400, scoped, tag = 'input window, operand 3, single buffered']
    #allocation9 [shape = 's32[1]{0}', space=sflag, size = 0x4, scoped, tag = 'scoped memory for tpu_custom_call.1']
    #allocation10 [shape = 'u8[1024]{0}', space=vmem, size = 0x400, scoped, tag = 'input window, operand 4, single buffered']
    #allocation11 [shape = 'u8[1024]{0}', space=vmem, size = 0x400, scoped, tag = 'input window, operand 5, single buffered']
    #allocation12 [shape = 's32[1]{0}', space=sflag, size = 0x4, scoped, tag = 'scoped memory for tpu_custom_call.1']
    #allocation13 [shape = 'u8[1024]{0}', space=vmem, size = 0x400, scoped, tag = 'input window, operand 7, single buffered']
    #allocation14 [shape = 'u8[1024]{0}', space=vmem, size = 0x400, scoped, tag = 'input window, operand 9, single buffered']
    #allocation15 [shape = 's32[1]{0}', space=sflag, size = 0x4, scoped, tag = 'scoped memory for tpu_custom_call.1']
    #allocation16 [shape = 'u8[1024]{0}', space=vmem, size = 0x400, scoped, tag = 'input window, operand 10, single buffered']
    #allocation17 [shape = 'u8[1024]{0}', space=vmem, size = 0x400, scoped, tag = 'input window, operand 11, single buffered']
    #allocation18 [shape = 's32[1]{0}', space=sflag, size = 0x4, scoped, tag = 'scoped memory for tpu_custom_call.1']
    #allocation19 [shape = 'u8[1024]{0}', space=vmem, size = 0x400, scoped, tag = 'input window, operand 13, single buffered']
    #allocation20 [shape = 'u8[1024]{0}', space=vmem, size = 0x400, scoped, tag = 'input window, operand 15, single buffered']
    #allocation21 [shape = 's32[1]{0}', space=sflag, size = 0x4, scoped, tag = 'scoped memory for tpu_custom_call.1']
    #allocation22 [shape = 'u8[1024]{0}', space=vmem, size = 0x400, scoped, tag = 'input window, operand 16, single buffered']
    #allocation23 [shape = 'u8[1024]{0}', space=vmem, size = 0x400, scoped, tag = 'input window, operand 17, single buffered']
    #allocation24 [shape = 's32[1]{0}', space=sflag, size = 0x4, scoped, tag = 'scoped memory for tpu_custom_call.1']
    #allocation25 [shape = 'u8[1024]{0}', space=vmem, size = 0x400, scoped, tag = 'input window, operand 19, single buffered']
    #allocation26 [shape = 'u8[1024]{0}', space=vmem, size = 0x400, scoped, tag = 'input window, operand 21, single buffered']
    #allocation27 [shape = 's32[1]{0}', space=sflag, size = 0x4, scoped, tag = 'scoped memory for tpu_custom_call.1']
    #allocation28 [shape = 'u8[1024]{0}', space=vmem, size = 0x400, scoped, tag = 'input window, operand 22, single buffered']
    #allocation29 [shape = 'u8[1024]{0}', space=vmem, size = 0x400, scoped, tag = 'input window, operand 23, single buffered']
    #allocation30 [shape = 's32[1]{0}', space=sflag, size = 0x4, scoped, tag = 'scoped memory for tpu_custom_call.1']
    #allocation31 [shape = 'u8[5120]{0}', space=vmem, size = 0x1400, scoped, tag = 'output window, operand 0']
    %88 = vsyncpa [#allocation6], 0
    %s89 = scalar_lea.sflag [#allocation6], 1
    %90 = vsyncpa %s89, 0
    %91 = vsyncpa [#allocation9], 0
    %92 = vsyncpa [#allocation12], 0
    %93 = vsyncpa [#allocation15], 0
    %94 = vsyncpa [#allocation18], 0
    %95 = vsyncpa [#allocation21], 0
    %96 = vsyncpa [#allocation24], 0
    %97 = vsyncpa [#allocation27], 0
    %98 = vsyncpa [#allocation30], 0
    %99 = vsyncpa [#allocation7], 0
    %s100 = scalar_lea.sflag [#allocation7], 1
    %101 = vsyncpa %s100, 0
    loop: start=0, step=1, limit=4
    $region2: #{tpu_custom_call.1} parent=1 // loop_pre_header
      _
    $region3: #{tpu_custom_call.1} parent=1 // loop_header
      %s103 = sphi 0, %s107
      %p104 = scmp.ge.s32.totalorder %s103, 4
      %s113 = sphi 0, %s115
      %s116 = sphi 0, %s113
      %s117 = sphi 0, %s116
      %s133 = sphi 0, %s117
      %s137 = sphi 0, %s137
      %s139 = sphi 0, %s137
      %s140 = sphi 0, %s139
      %s154 = sphi 0, %s140
      %s158 = sphi 0, %s158
      %s160 = sphi 0, %s158
      %s161 = sphi 0, %s160
      %s175 = sphi 0, %s161
      %s179 = sphi 0, %s179
      %s181 = sphi 0, %s179
      %s182 = sphi 0, %s181
      %s196 = sphi 0, %s182
      %s200 = sphi 0, %s200
      %s202 = sphi 0, %s200
      %s203 = sphi 0, %s202
      %s217 = sphi 0, %s203
      %s221 = sphi 0, %s221
      %s223 = sphi 0, %s221
      %s224 = sphi 0, %s223
      %s238 = sphi 0, %s224
      %s242 = sphi 0, %s242
      %s244 = sphi 0, %s242
      %s245 = sphi 0, %s244
      %s259 = sphi 0, %s245
      %s263 = sphi 0, %s263
      %s265 = sphi 0, %s263
      %s266 = sphi 0, %s265
      %s280 = sphi 0, %s266
      %s284 = sphi 0, %s284
      %s286 = sphi 0, %s284
      %s287 = sphi 0, %s286
      %s301 = sphi 0, %s287
      %s305 = sphi 0, %s305
      %s307 = sphi 0, %s305
      %s308 = sphi 0, %s307
      %s322 = sphi 0, %s308
      %s326 = sphi 0, %s326
      %s328 = sphi 0, %s326
      %s329 = sphi 0, %s328
      %s343 = sphi 0, %s329
      %s347 = sphi 0, %s347
      %s349 = sphi 0, %s347
      %s350 = sphi 0, %s349
      %s364 = sphi 0, %s350
      %s368 = sphi 0, %s368
      %s370 = sphi 0, %s368
      %s371 = sphi 0, %s370
      %s385 = sphi 0, %s371
      %s389 = sphi 0, %s389
      %s391 = sphi 0, %s389
      %s392 = sphi 0, %s391
      %s406 = sphi 0, %s392
      %s410 = sphi 0, %s410
      %s412 = sphi 0, %s410
      %s413 = sphi 0, %s412
      %s427 = sphi 0, %s413
      %s431 = sphi 0, %s431
      %s433 = sphi 0, %s431
      %s434 = sphi 0, %s433
      %s448 = sphi 0, %s434
      %s452 = sphi 0, %s452
      %s454 = sphi 0, %s452
      %s455 = sphi 0, %s454
      %s469 = sphi 0, %s455
      %s473 = sphi 0, %s473
      %s475 = sphi 0, %s473
      %s476 = sphi 0, %s475
      %s490 = sphi 0, %s476
      %s494 = sphi 0, %s494
      %s496 = sphi 0, %s494
      %s497 = sphi 0, %s496
      %s511 = sphi 0, %s497
      %s515 = sphi 0, %s515
      %s517 = sphi 0, %s515
      %s518 = sphi 0, %s517
      %s532 = sphi 0, %s518
      %s536 = sphi 0, %s536
      %s538 = sphi 0, %s536
      %s539 = sphi 0, %s538
      %s553 = sphi 0, %s539
      %s557 = sphi 0, %s557
      %s559 = sphi 0, %s557
      %s560 = sphi 0, %s559
      %s574 = sphi 0, %s560
      %s578 = sphi 0, %s578
      %s580 = sphi 0, %s578
      %s581 = sphi 0, %s580
      %s595 = sphi 0, %s581
      %s599 = sphi 0, %s599
      %s601 = sphi 0, %s599
      %s602 = sphi 0, %s601
      %s616 = sphi 0, %s602
      %s620 = sphi 0, %s620
      %s622 = sphi 0, %s620
      %s623 = sphi 0, %s622
      %s637 = sphi 0, %s623
      %s641 = sphi 0, %s641
      %s643 = sphi 0, %s641
      %s644 = sphi 0, %s643
      %s658 = sphi 0, %s644
      %s662 = sphi 0, %s662
      %s664 = sphi 0, %s662
      %s665 = sphi 0, %s664
      %s679 = sphi 0, %s665
      %s683 = sphi 0, %s683
      %s685 = sphi 0, %s683
      %s686 = sphi 0, %s685
      %s700 = sphi 0, %s686
      %s704 = sphi 0, %s704
      %s706 = sphi 0, %s704
      %s707 = sphi 0, %s706
      %s721 = sphi 0, %s707
      %s725 = sphi 0, %s725
      %s727 = sphi 0, %s725
      %s728 = sphi 0, %s727
      %s742 = sphi 0, %s728
      %s746 = sphi 0, %s746
      %s748 = sphi 0, %s746
      %s749 = sphi 0, %s748
      %s763 = sphi 0, %s749
      %s767 = sphi 0, %s767
      %s769 = sphi 0, %s767
      %s770 = sphi 0, %s769
      %s784 = sphi 0, %s770
      %s788 = sphi 0, %s788
      %s790 = sphi 0, %s788
      %s791 = sphi 0, %s790
      %s805 = sphi 0, %s791
      %s809 = sphi 0, %s809
      %s811 = sphi 0, %s809
      %s812 = sphi 0, %s811
      %s826 = sphi 0, %s812
      %s830 = sphi 0, %s830
      %s832 = sphi 0, %s830
      %s833 = sphi 0, %s832
      %s847 = sphi 0, %s833
      %s851 = sphi 0, %s851
      %s853 = sphi 0, %s851
      %s854 = sphi 0, %s853
      %s868 = sphi 0, %s854
      %s872 = sphi 0, %s872
      %s874 = sphi 0, %s872
      %s875 = sphi 0, %s874
      %s889 = sphi 0, %s875
      %s895 = sphi 0, %s897
      %s898 = sphi 0, %s895
      %s899 = sphi 0, %s898
      %s915 = sphi 0, %s899
    $region4: #{tpu_custom_call.1} parent=1 // loop_header_branch
      %106 = sbr.rel (%p104) target = $region8
    $region5: #{tpu_custom_call.1} parent=1 // loop_body
      %s108 = ssub.s32 %s103, 1
      %s109 = ssub.s32 %s103, 2
      %s110 = sadd.s32 %s103, 1
      %s111 = ssub.s32 %s103, %s110
      %p112 = scmp.eq.s32.totalorder %s111, 0
      %s114 = sadd.s32 %s113, 1
      %s115 = scalar_select %p112, %s113, %s114
      %p118 = pneg %p112
      %p119 = scmp.eq.s32.totalorder %s103, 1
      %p120 = por %p118, %p119
      %p121 = scmp.ne.s32.totalorder %s113, %s116
      %p122 = scmp.eq.s32.totalorder %s103, 0
      %p123 = por %p121, %p122
      %p124 = scmp.ne.s32.totalorder %s113, %s116
      %p125 = scmp.eq.s32.totalorder %s108, 1
      %p126 = por %p124, %p125
      %p127 = scmp.ne.s32.totalorder %s116, %s117
      %p128 = scmp.eq.s32.totalorder %s108, 0
      %p129 = por %p127, %p128
      %p130 = scmp.ne.s32.totalorder %s116, %s117
      %p131 = scmp.eq.s32.totalorder %s109, 1
      %p132 = por %p130, %p131
      %p134 = scmp.ne.s32.totalorder %s117, %s133
      %p135 = scmp.eq.s32.totalorder %s109, 0
      %p136 = por %p134, %p135
      %s138 = sadd.s32 %s137, 1
      %p141 = scmp.eq.s32.totalorder %s103, 1
      %p142 = scmp.ne.s32.totalorder %s137, %s139
      %p143 = scmp.eq.s32.totalorder %s103, 0
      %p144 = por %p142, %p143
      %p145 = scmp.ne.s32.totalorder %s137, %s139
      %p146 = scmp.eq.s32.totalorder %s108, 1
      %p147 = por %p145, %p146
      %p148 = scmp.ne.s32.totalorder %s139, %s140
      %p149 = scmp.eq.s32.totalorder %s108, 0
      %p150 = por %p148, %p149
      %p151 = scmp.ne.s32.totalorder %s139, %s140
      %p152 = scmp.eq.s32.totalorder %s109, 1
      %p153 = por %p151, %p152
      %p155 = scmp.ne.s32.totalorder %s140, %s154
      %p156 = scmp.eq.s32.totalorder %s109, 0
      %p157 = por %p155, %p156
      %s159 = sadd.s32 %s158, 1
      %p162 = scmp.eq.s32.totalorder %s103, 1
      %p163 = scmp.ne.s32.totalorder %s158, %s160
      %p164 = scmp.eq.s32.totalorder %s103, 0
      %p165 = por %p163, %p164
      %p166 = scmp.ne.s32.totalorder %s158, %s160
      %p167 = scmp.eq.s32.totalorder %s108, 1
      %p168 = por %p166, %p167
      %p169 = scmp.ne.s32.totalorder %s160, %s161
      %p170 = scmp.eq.s32.totalorder %s108, 0
      %p171 = por %p169, %p170
      %p172 = scmp.ne.s32.totalorder %s160, %s161
      %p173 = scmp.eq.s32.totalorder %s109, 1
      %p174 = por %p172, %p173
      %p176 = scmp.ne.s32.totalorder %s161, %s175
      %p177 = scmp.eq.s32.totalorder %s109, 0
      %p178 = por %p176, %p177
      %s180 = sadd.s32 %s179, 1
      %p183 = scmp.eq.s32.totalorder %s103, 1
      %p184 = scmp.ne.s32.totalorder %s179, %s181
      %p185 = scmp.eq.s32.totalorder %s103, 0
      %p186 = por %p184, %p185
      %p187 = scmp.ne.s32.totalorder %s179, %s181
      %p188 = scmp.eq.s32.totalorder %s108, 1
      %p189 = por %p187, %p188
      %p190 = scmp.ne.s32.totalorder %s181, %s182
      %p191 = scmp.eq.s32.totalorder %s108, 0
      %p192 = por %p190, %p191
      %p193 = scmp.ne.s32.totalorder %s181, %s182
      %p194 = scmp.eq.s32.totalorder %s109, 1
      %p195 = por %p193, %p194
      %p197 = scmp.ne.s32.totalorder %s182, %s196
      %p198 = scmp.eq.s32.totalorder %s109, 0
      %p199 = por %p197, %p198
      %s201 = sadd.s32 %s200, 1
      %p204 = scmp.eq.s32.totalorder %s103, 1
      %p205 = scmp.ne.s32.totalorder %s200, %s202
      %p206 = scmp.eq.s32.totalorder %s103, 0
      %p207 = por %p205, %p206
      %p208 = scmp.ne.s32.totalorder %s200, %s202
      %p209 = scmp.eq.s32.totalorder %s108, 1
      %p210 = por %p208, %p209
      %p211 = scmp.ne.s32.totalorder %s202, %s203
      %p212 = scmp.eq.s32.totalorder %s108, 0
      %p213 = por %p211, %p212
      %p214 = scmp.ne.s32.totalorder %s202, %s203
      %p215 = scmp.eq.s32.totalorder %s109, 1
      %p216 = por %p214, %p215
      %p218 = scmp.ne.s32.totalorder %s203, %s217
      %p219 = scmp.eq.s32.totalorder %s109, 0
      %p220 = por %p218, %p219
      %s222 = sadd.s32 %s221, 1
      %p225 = scmp.eq.s32.totalorder %s103, 1
      %p226 = scmp.ne.s32.totalorder %s221, %s223
      %p227 = scmp.eq.s32.totalorder %s103, 0
      %p228 = por %p226, %p227
      %p229 = scmp.ne.s32.totalorder %s221, %s223
      %p230 = scmp.eq.s32.totalorder %s108, 1
      %p231 = por %p229, %p230
      %p232 = scmp.ne.s32.totalorder %s223, %s224
      %p233 = scmp.eq.s32.totalorder %s108, 0
      %p234 = por %p232, %p233
      %p235 = scmp.ne.s32.totalorder %s223, %s224
      %p236 = scmp.eq.s32.totalorder %s109, 1
      %p237 = por %p235, %p236
      %p239 = scmp.ne.s32.totalorder %s224, %s238
      %p240 = scmp.eq.s32.totalorder %s109, 0
      %p241 = por %p239, %p240
      %s243 = sadd.s32 %s242, 1
      %p246 = scmp.eq.s32.totalorder %s103, 1
      %p247 = scmp.ne.s32.totalorder %s242, %s244
      %p248 = scmp.eq.s32.totalorder %s103, 0
      %p249 = por %p247, %p248
      %p250 = scmp.ne.s32.totalorder %s242, %s244
      %p251 = scmp.eq.s32.totalorder %s108, 1
      %p252 = por %p250, %p251
      %p253 = scmp.ne.s32.totalorder %s244, %s245
      %p254 = scmp.eq.s32.totalorder %s108, 0
      %p255 = por %p253, %p254
      %p256 = scmp.ne.s32.totalorder %s244, %s245
      %p257 = scmp.eq.s32.totalorder %s109, 1
      %p258 = por %p256, %p257
      %p260 = scmp.ne.s32.totalorder %s245, %s259
      %p261 = scmp.eq.s32.totalorder %s109, 0
      %p262 = por %p260, %p261
      %s264 = sadd.s32 %s263, 1
      %p267 = scmp.eq.s32.totalorder %s103, 1
      %p268 = scmp.ne.s32.totalorder %s263, %s265
      %p269 = scmp.eq.s32.totalorder %s103, 0
      %p270 = por %p268, %p269
      %p271 = scmp.ne.s32.totalorder %s263, %s265
      %p272 = scmp.eq.s32.totalorder %s108, 1
      %p273 = por %p271, %p272
      %p274 = scmp.ne.s32.totalorder %s265, %s266
      %p275 = scmp.eq.s32.totalorder %s108, 0
      %p276 = por %p274, %p275
      %p277 = scmp.ne.s32.totalorder %s265, %s266
      %p278 = scmp.eq.s32.totalorder %s109, 1
      %p279 = por %p277, %p278
      %p281 = scmp.ne.s32.totalorder %s266, %s280
      %p282 = scmp.eq.s32.totalorder %s109, 0
      %p283 = por %p281, %p282
      %s285 = sadd.s32 %s284, 1
      %p288 = scmp.eq.s32.totalorder %s103, 1
      %p289 = scmp.ne.s32.totalorder %s284, %s286
      %p290 = scmp.eq.s32.totalorder %s103, 0
      %p291 = por %p289, %p290
      %p292 = scmp.ne.s32.totalorder %s284, %s286
      %p293 = scmp.eq.s32.totalorder %s108, 1
      %p294 = por %p292, %p293
      %p295 = scmp.ne.s32.totalorder %s286, %s287
      %p296 = scmp.eq.s32.totalorder %s108, 0
      %p297 = por %p295, %p296
      %p298 = scmp.ne.s32.totalorder %s286, %s287
      %p299 = scmp.eq.s32.totalorder %s109, 1
      %p300 = por %p298, %p299
      %p302 = scmp.ne.s32.totalorder %s287, %s301
      %p303 = scmp.eq.s32.totalorder %s109, 0
      %p304 = por %p302, %p303
      %s306 = sadd.s32 %s305, 1
      %p309 = scmp.eq.s32.totalorder %s103, 1
      %p310 = scmp.ne.s32.totalorder %s305, %s307
      %p311 = scmp.eq.s32.totalorder %s103, 0
      %p312 = por %p310, %p311
      %p313 = scmp.ne.s32.totalorder %s305, %s307
      %p314 = scmp.eq.s32.totalorder %s108, 1
      %p315 = por %p313, %p314
      %p316 = scmp.ne.s32.totalorder %s307, %s308
      %p317 = scmp.eq.s32.totalorder %s108, 0
      %p318 = por %p316, %p317
      %p319 = scmp.ne.s32.totalorder %s307, %s308
      %p320 = scmp.eq.s32.totalorder %s109, 1
      %p321 = por %p319, %p320
      %p323 = scmp.ne.s32.totalorder %s308, %s322
      %p324 = scmp.eq.s32.totalorder %s109, 0
      %p325 = por %p323, %p324
      %s327 = sadd.s32 %s326, 1
      %p330 = scmp.eq.s32.totalorder %s103, 1
      %p331 = scmp.ne.s32.totalorder %s326, %s328
      %p332 = scmp.eq.s32.totalorder %s103, 0
      %p333 = por %p331, %p332
      %p334 = scmp.ne.s32.totalorder %s326, %s328
      %p335 = scmp.eq.s32.totalorder %s108, 1
      %p336 = por %p334, %p335
      %p337 = scmp.ne.s32.totalorder %s328, %s329
      %p338 = scmp.eq.s32.totalorder %s108, 0
      %p339 = por %p337, %p338
      %p340 = scmp.ne.s32.totalorder %s328, %s329
      %p341 = scmp.eq.s32.totalorder %s109, 1
      %p342 = por %p340, %p341
      %p344 = scmp.ne.s32.totalorder %s329, %s343
      %p345 = scmp.eq.s32.totalorder %s109, 0
      %p346 = por %p344, %p345
      %s348 = sadd.s32 %s347, 1
      %p351 = scmp.eq.s32.totalorder %s103, 1
      %p352 = scmp.ne.s32.totalorder %s347, %s349
      %p353 = scmp.eq.s32.totalorder %s103, 0
      %p354 = por %p352, %p353
      %p355 = scmp.ne.s32.totalorder %s347, %s349
      %p356 = scmp.eq.s32.totalorder %s108, 1
      %p357 = por %p355, %p356
      %p358 = scmp.ne.s32.totalorder %s349, %s350
      %p359 = scmp.eq.s32.totalorder %s108, 0
      %p360 = por %p358, %p359
      %p361 = scmp.ne.s32.totalorder %s349, %s350
      %p362 = scmp.eq.s32.totalorder %s109, 1
      %p363 = por %p361, %p362
      %p365 = scmp.ne.s32.totalorder %s350, %s364
      %p366 = scmp.eq.s32.totalorder %s109, 0
      %p367 = por %p365, %p366
      %s369 = sadd.s32 %s368, 1
      %p372 = scmp.eq.s32.totalorder %s103, 1
      %p373 = scmp.ne.s32.totalorder %s368, %s370
      %p374 = scmp.eq.s32.totalorder %s103, 0
      %p375 = por %p373, %p374
      %p376 = scmp.ne.s32.totalorder %s368, %s370
      %p377 = scmp.eq.s32.totalorder %s108, 1
      %p378 = por %p376, %p377
      %p379 = scmp.ne.s32.totalorder %s370, %s371
      %p380 = scmp.eq.s32.totalorder %s108, 0
      %p381 = por %p379, %p380
      %p382 = scmp.ne.s32.totalorder %s370, %s371
      %p383 = scmp.eq.s32.totalorder %s109, 1
      %p384 = por %p382, %p383
      %p386 = scmp.ne.s32.totalorder %s371, %s385
      %p387 = scmp.eq.s32.totalorder %s109, 0
      %p388 = por %p386, %p387
      %s390 = sadd.s32 %s389, 1
      %p393 = scmp.eq.s32.totalorder %s103, 1
      %p394 = scmp.ne.s32.totalorder %s389, %s391
      %p395 = scmp.eq.s32.totalorder %s103, 0
      %p396 = por %p394, %p395
      %p397 = scmp.ne.s32.totalorder %s389, %s391
      %p398 = scmp.eq.s32.totalorder %s108, 1
      %p399 = por %p397, %p398
      %p400 = scmp.ne.s32.totalorder %s391, %s392
      %p401 = scmp.eq.s32.totalorder %s108, 0
      %p402 = por %p400, %p401
      %p403 = scmp.ne.s32.totalorder %s391, %s392
      %p404 = scmp.eq.s32.totalorder %s109, 1
      %p405 = por %p403, %p404
      %p407 = scmp.ne.s32.totalorder %s392, %s406
      %p408 = scmp.eq.s32.totalorder %s109, 0
      %p409 = por %p407, %p408
      %s411 = sadd.s32 %s410, 1
      %p414 = scmp.eq.s32.totalorder %s103, 1
      %p415 = scmp.ne.s32.totalorder %s410, %s412
      %p416 = scmp.eq.s32.totalorder %s103, 0
      %p417 = por %p415, %p416
      %p418 = scmp.ne.s32.totalorder %s410, %s412
      %p419 = scmp.eq.s32.totalorder %s108, 1
      %p420 = por %p418, %p419
      %p421 = scmp.ne.s32.totalorder %s412, %s413
      %p422 = scmp.eq.s32.totalorder %s108, 0
      %p423 = por %p421, %p422
      %p424 = scmp.ne.s32.totalorder %s412, %s413
      %p425 = scmp.eq.s32.totalorder %s109, 1
      %p426 = por %p424, %p425
      %p428 = scmp.ne.s32.totalorder %s413, %s427
      %p429 = scmp.eq.s32.totalorder %s109, 0
      %p430 = por %p428, %p429
      %s432 = sadd.s32 %s431, 1
      %p435 = scmp.eq.s32.totalorder %s103, 1
      %p436 = scmp.ne.s32.totalorder %s431, %s433
      %p437 = scmp.eq.s32.totalorder %s103, 0
      %p438 = por %p436, %p437
      %p439 = scmp.ne.s32.totalorder %s431, %s433
      %p440 = scmp.eq.s32.totalorder %s108, 1
      %p441 = por %p439, %p440
      %p442 = scmp.ne.s32.totalorder %s433, %s434
      %p443 = scmp.eq.s32.totalorder %s108, 0
      %p444 = por %p442, %p443
      %p445 = scmp.ne.s32.totalorder %s433, %s434
      %p446 = scmp.eq.s32.totalorder %s109, 1
      %p447 = por %p445, %p446
      %p449 = scmp.ne.s32.totalorder %s434, %s448
      %p450 = scmp.eq.s32.totalorder %s109, 0
      %p451 = por %p449, %p450
      %s453 = sadd.s32 %s452, 1
      %p456 = scmp.eq.s32.totalorder %s103, 1
      %p457 = scmp.ne.s32.totalorder %s452, %s454
      %p458 = scmp.eq.s32.totalorder %s103, 0
      %p459 = por %p457, %p458
      %p460 = scmp.ne.s32.totalorder %s452, %s454
      %p461 = scmp.eq.s32.totalorder %s108, 1
      %p462 = por %p460, %p461
      %p463 = scmp.ne.s32.totalorder %s454, %s455
      %p464 = scmp.eq.s32.totalorder %s108, 0
      %p465 = por %p463, %p464
      %p466 = scmp.ne.s32.totalorder %s454, %s455
      %p467 = scmp.eq.s32.totalorder %s109, 1
      %p468 = por %p466, %p467
      %p470 = scmp.ne.s32.totalorder %s455, %s469
      %p471 = scmp.eq.s32.totalorder %s109, 0
      %p472 = por %p470, %p471
      %s474 = sadd.s32 %s473, 1
      %p477 = scmp.eq.s32.totalorder %s103, 1
      %p478 = scmp.ne.s32.totalorder %s473, %s475
      %p479 = scmp.eq.s32.totalorder %s103, 0
      %p480 = por %p478, %p479
      %p481 = scmp.ne.s32.totalorder %s473, %s475
      %p482 = scmp.eq.s32.totalorder %s108, 1
      %p483 = por %p481, %p482
      %p484 = scmp.ne.s32.totalorder %s475, %s476
      %p485 = scmp.eq.s32.totalorder %s108, 0
      %p486 = por %p484, %p485
      %p487 = scmp.ne.s32.totalorder %s475, %s476
      %p488 = scmp.eq.s32.totalorder %s109, 1
      %p489 = por %p487, %p488
      %p491 = scmp.ne.s32.totalorder %s476, %s490
      %p492 = scmp.eq.s32.totalorder %s109, 0
      %p493 = por %p491, %p492
      %s495 = sadd.s32 %s494, 1
      %p498 = scmp.eq.s32.totalorder %s103, 1
      %p499 = scmp.ne.s32.totalorder %s494, %s496
      %p500 = scmp.eq.s32.totalorder %s103, 0
      %p501 = por %p499, %p500
      %p502 = scmp.ne.s32.totalorder %s494, %s496
      %p503 = scmp.eq.s32.totalorder %s108, 1
      %p504 = por %p502, %p503
      %p505 = scmp.ne.s32.totalorder %s496, %s497
      %p506 = scmp.eq.s32.totalorder %s108, 0
      %p507 = por %p505, %p506
      %p508 = scmp.ne.s32.totalorder %s496, %s497
      %p509 = scmp.eq.s32.totalorder %s109, 1
      %p510 = por %p508, %p509
      %p512 = scmp.ne.s32.totalorder %s497, %s511
      %p513 = scmp.eq.s32.totalorder %s109, 0
      %p514 = por %p512, %p513
      %s516 = sadd.s32 %s515, 1
      %p519 = scmp.eq.s32.totalorder %s103, 1
      %p520 = scmp.ne.s32.totalorder %s515, %s517
      %p521 = scmp.eq.s32.totalorder %s103, 0
      %p522 = por %p520, %p521
      %p523 = scmp.ne.s32.totalorder %s515, %s517
      %p524 = scmp.eq.s32.totalorder %s108, 1
      %p525 = por %p523, %p524
      %p526 = scmp.ne.s32.totalorder %s517, %s518
      %p527 = scmp.eq.s32.totalorder %s108, 0
      %p528 = por %p526, %p527
      %p529 = scmp.ne.s32.totalorder %s517, %s518
      %p530 = scmp.eq.s32.totalorder %s109, 1
      %p531 = por %p529, %p530
      %p533 = scmp.ne.s32.totalorder %s518, %s532
      %p534 = scmp.eq.s32.totalorder %s109, 0
      %p535 = por %p533, %p534
      %s537 = sadd.s32 %s536, 1
      %p540 = scmp.eq.s32.totalorder %s103, 1
      %p541 = scmp.ne.s32.totalorder %s536, %s538
      %p542 = scmp.eq.s32.totalorder %s103, 0
      %p543 = por %p541, %p542
      %p544 = scmp.ne.s32.totalorder %s536, %s538
      %p545 = scmp.eq.s32.totalorder %s108, 1
      %p546 = por %p544, %p545
      %p547 = scmp.ne.s32.totalorder %s538, %s539
      %p548 = scmp.eq.s32.totalorder %s108, 0
      %p549 = por %p547, %p548
      %p550 = scmp.ne.s32.totalorder %s538, %s539
      %p551 = scmp.eq.s32.totalorder %s109, 1
      %p552 = por %p550, %p551
      %p554 = scmp.ne.s32.totalorder %s539, %s553
      %p555 = scmp.eq.s32.totalorder %s109, 0
      %p556 = por %p554, %p555
      %s558 = sadd.s32 %s557, 1
      %p561 = scmp.eq.s32.totalorder %s103, 1
      %p562 = scmp.ne.s32.totalorder %s557, %s559
      %p563 = scmp.eq.s32.totalorder %s103, 0
      %p564 = por %p562, %p563
      %p565 = scmp.ne.s32.totalorder %s557, %s559
      %p566 = scmp.eq.s32.totalorder %s108, 1
      %p567 = por %p565, %p566
      %p568 = scmp.ne.s32.totalorder %s559, %s560
      %p569 = scmp.eq.s32.totalorder %s108, 0
      %p570 = por %p568, %p569
      %p571 = scmp.ne.s32.totalorder %s559, %s560
      %p572 = scmp.eq.s32.totalorder %s109, 1
      %p573 = por %p571, %p572
      %p575 = scmp.ne.s32.totalorder %s560, %s574
      %p576 = scmp.eq.s32.totalorder %s109, 0
      %p577 = por %p575, %p576
      %s579 = sadd.s32 %s578, 1
      %p582 = scmp.eq.s32.totalorder %s103, 1
      %p583 = scmp.ne.s32.totalorder %s578, %s580
      %p584 = scmp.eq.s32.totalorder %s103, 0
      %p585 = por %p583, %p584
      %p586 = scmp.ne.s32.totalorder %s578, %s580
      %p587 = scmp.eq.s32.totalorder %s108, 1
      %p588 = por %p586, %p587
      %p589 = scmp.ne.s32.totalorder %s580, %s581
      %p590 = scmp.eq.s32.totalorder %s108, 0
      %p591 = por %p589, %p590
      %p592 = scmp.ne.s32.totalorder %s580, %s581
      %p593 = scmp.eq.s32.totalorder %s109, 1
      %p594 = por %p592, %p593
      %p596 = scmp.ne.s32.totalorder %s581, %s595
      %p597 = scmp.eq.s32.totalorder %s109, 0
      %p598 = por %p596, %p597
      %s600 = sadd.s32 %s599, 1
      %p603 = scmp.eq.s32.totalorder %s103, 1
      %p604 = scmp.ne.s32.totalorder %s599, %s601
      %p605 = scmp.eq.s32.totalorder %s103, 0
      %p606 = por %p604, %p605
      %p607 = scmp.ne.s32.totalorder %s599, %s601
      %p608 = scmp.eq.s32.totalorder %s108, 1
      %p609 = por %p607, %p608
      %p610 = scmp.ne.s32.totalorder %s601, %s602
      %p611 = scmp.eq.s32.totalorder %s108, 0
      %p612 = por %p610, %p611
      %p613 = scmp.ne.s32.totalorder %s601, %s602
      %p614 = scmp.eq.s32.totalorder %s109, 1
      %p615 = por %p613, %p614
      %p617 = scmp.ne.s32.totalorder %s602, %s616
      %p618 = scmp.eq.s32.totalorder %s109, 0
      %p619 = por %p617, %p618
      %s621 = sadd.s32 %s620, 1
      %p624 = scmp.eq.s32.totalorder %s103, 1
      %p625 = scmp.ne.s32.totalorder %s620, %s622
      %p626 = scmp.eq.s32.totalorder %s103, 0
      %p627 = por %p625, %p626
      %p628 = scmp.ne.s32.totalorder %s620, %s622
      %p629 = scmp.eq.s32.totalorder %s108, 1
      %p630 = por %p628, %p629
      %p631 = scmp.ne.s32.totalorder %s622, %s623
      %p632 = scmp.eq.s32.totalorder %s108, 0
      %p633 = por %p631, %p632
      %p634 = scmp.ne.s32.totalorder %s622, %s623
      %p635 = scmp.eq.s32.totalorder %s109, 1
      %p636 = por %p634, %p635
      %p638 = scmp.ne.s32.totalorder %s623, %s637
      %p639 = scmp.eq.s32.totalorder %s109, 0
      %p640 = por %p638, %p639
      %s642 = sadd.s32 %s641, 1
      %p645 = scmp.eq.s32.totalorder %s103, 1
      %p646 = scmp.ne.s32.totalorder %s641, %s643
      %p647 = scmp.eq.s32.totalorder %s103, 0
      %p648 = por %p646, %p647
      %p649 = scmp.ne.s32.totalorder %s641, %s643
      %p650 = scmp.eq.s32.totalorder %s108, 1
      %p651 = por %p649, %p650
      %p652 = scmp.ne.s32.totalorder %s643, %s644
      %p653 = scmp.eq.s32.totalorder %s108, 0
      %p654 = por %p652, %p653
      %p655 = scmp.ne.s32.totalorder %s643, %s644
      %p656 = scmp.eq.s32.totalorder %s109, 1
      %p657 = por %p655, %p656
      %p659 = scmp.ne.s32.totalorder %s644, %s658
      %p660 = scmp.eq.s32.totalorder %s109, 0
      %p661 = por %p659, %p660
      %s663 = sadd.s32 %s662, 1
      %p666 = scmp.eq.s32.totalorder %s103, 1
      %p667 = scmp.ne.s32.totalorder %s662, %s664
      %p668 = scmp.eq.s32.totalorder %s103, 0
      %p669 = por %p667, %p668
      %p670 = scmp.ne.s32.totalorder %s662, %s664
      %p671 = scmp.eq.s32.totalorder %s108, 1
      %p672 = por %p670, %p671
      %p673 = scmp.ne.s32.totalorder %s664, %s665
      %p674 = scmp.eq.s32.totalorder %s108, 0
      %p675 = por %p673, %p674
      %p676 = scmp.ne.s32.totalorder %s664, %s665
      %p677 = scmp.eq.s32.totalorder %s109, 1
      %p678 = por %p676, %p677
      %p680 = scmp.ne.s32.totalorder %s665, %s679
      %p681 = scmp.eq.s32.totalorder %s109, 0
      %p682 = por %p680, %p681
      %s684 = sadd.s32 %s683, 1
      %p687 = scmp.eq.s32.totalorder %s103, 1
      %p688 = scmp.ne.s32.totalorder %s683, %s685
      %p689 = scmp.eq.s32.totalorder %s103, 0
      %p690 = por %p688, %p689
      %p691 = scmp.ne.s32.totalorder %s683, %s685
      %p692 = scmp.eq.s32.totalorder %s108, 1
      %p693 = por %p691, %p692
      %p694 = scmp.ne.s32.totalorder %s685, %s686
      %p695 = scmp.eq.s32.totalorder %s108, 0
      %p696 = por %p694, %p695
      %p697 = scmp.ne.s32.totalorder %s685, %s686
      %p698 = scmp.eq.s32.totalorder %s109, 1
      %p699 = por %p697, %p698
      %p701 = scmp.ne.s32.totalorder %s686, %s700
      %p702 = scmp.eq.s32.totalorder %s109, 0
      %p703 = por %p701, %p702
      %s705 = sadd.s32 %s704, 1
      %p708 = scmp.eq.s32.totalorder %s103, 1
      %p709 = scmp.ne.s32.totalorder %s704, %s706
      %p710 = scmp.eq.s32.totalorder %s103, 0
      %p711 = por %p709, %p710
      %p712 = scmp.ne.s32.totalorder %s704, %s706
      %p713 = scmp.eq.s32.totalorder %s108, 1
      %p714 = por %p712, %p713
      %p715 = scmp.ne.s32.totalorder %s706, %s707
      %p716 = scmp.eq.s32.totalorder %s108, 0
      %p717 = por %p715, %p716
      %p718 = scmp.ne.s32.totalorder %s706, %s707
      %p719 = scmp.eq.s32.totalorder %s109, 1
      %p720 = por %p718, %p719
      %p722 = scmp.ne.s32.totalorder %s707, %s721
      %p723 = scmp.eq.s32.totalorder %s109, 0
      %p724 = por %p722, %p723
      %s726 = sadd.s32 %s725, 1
      %p729 = scmp.eq.s32.totalorder %s103, 1
      %p730 = scmp.ne.s32.totalorder %s725, %s727
      %p731 = scmp.eq.s32.totalorder %s103, 0
      %p732 = por %p730, %p731
      %p733 = scmp.ne.s32.totalorder %s725, %s727
      %p734 = scmp.eq.s32.totalorder %s108, 1
      %p735 = por %p733, %p734
      %p736 = scmp.ne.s32.totalorder %s727, %s728
      %p737 = scmp.eq.s32.totalorder %s108, 0
      %p738 = por %p736, %p737
      %p739 = scmp.ne.s32.totalorder %s727, %s728
      %p740 = scmp.eq.s32.totalorder %s109, 1
      %p741 = por %p739, %p740
      %p743 = scmp.ne.s32.totalorder %s728, %s742
      %p744 = scmp.eq.s32.totalorder %s109, 0
      %p745 = por %p743, %p744
      %s747 = sadd.s32 %s746, 1
      %p750 = scmp.eq.s32.totalorder %s103, 1
      %p751 = scmp.ne.s32.totalorder %s746, %s748
      %p752 = scmp.eq.s32.totalorder %s103, 0
      %p753 = por %p751, %p752
      %p754 = scmp.ne.s32.totalorder %s746, %s748
      %p755 = scmp.eq.s32.totalorder %s108, 1
      %p756 = por %p754, %p755
      %p757 = scmp.ne.s32.totalorder %s748, %s749
      %p758 = scmp.eq.s32.totalorder %s108, 0
      %p759 = por %p757, %p758
      %p760 = scmp.ne.s32.totalorder %s748, %s749
      %p761 = scmp.eq.s32.totalorder %s109, 1
      %p762 = por %p760, %p761
      %p764 = scmp.ne.s32.totalorder %s749, %s763
      %p765 = scmp.eq.s32.totalorder %s109, 0
      %p766 = por %p764, %p765
      %s768 = sadd.s32 %s767, 1
      %p771 = scmp.eq.s32.totalorder %s103, 1
      %p772 = scmp.ne.s32.totalorder %s767, %s769
      %p773 = scmp.eq.s32.totalorder %s103, 0
      %p774 = por %p772, %p773
      %p775 = scmp.ne.s32.totalorder %s767, %s769
      %p776 = scmp.eq.s32.totalorder %s108, 1
      %p777 = por %p775, %p776
      %p778 = scmp.ne.s32.totalorder %s769, %s770
      %p779 = scmp.eq.s32.totalorder %s108, 0
      %p780 = por %p778, %p779
      %p781 = scmp.ne.s32.totalorder %s769, %s770
      %p782 = scmp.eq.s32.totalorder %s109, 1
      %p783 = por %p781, %p782
      %p785 = scmp.ne.s32.totalorder %s770, %s784
      %p786 = scmp.eq.s32.totalorder %s109, 0
      %p787 = por %p785, %p786
      %s789 = sadd.s32 %s788, 1
      %p792 = scmp.eq.s32.totalorder %s103, 1
      %p793 = scmp.ne.s32.totalorder %s788, %s790
      %p794 = scmp.eq.s32.totalorder %s103, 0
      %p795 = por %p793, %p794
      %p796 = scmp.ne.s32.totalorder %s788, %s790
      %p797 = scmp.eq.s32.totalorder %s108, 1
      %p798 = por %p796, %p797
      %p799 = scmp.ne.s32.totalorder %s790, %s791
      %p800 = scmp.eq.s32.totalorder %s108, 0
      %p801 = por %p799, %p800
      %p802 = scmp.ne.s32.totalorder %s790, %s791
      %p803 = scmp.eq.s32.totalorder %s109, 1
      %p804 = por %p802, %p803
      %p806 = scmp.ne.s32.totalorder %s791, %s805
      %p807 = scmp.eq.s32.totalorder %s109, 0
      %p808 = por %p806, %p807
      %s810 = sadd.s32 %s809, 1
      %p813 = scmp.eq.s32.totalorder %s103, 1
      %p814 = scmp.ne.s32.totalorder %s809, %s811
      %p815 = scmp.eq.s32.totalorder %s103, 0
      %p816 = por %p814, %p815
      %p817 = scmp.ne.s32.totalorder %s809, %s811
      %p818 = scmp.eq.s32.totalorder %s108, 1
      %p819 = por %p817, %p818
      %p820 = scmp.ne.s32.totalorder %s811, %s812
      %p821 = scmp.eq.s32.totalorder %s108, 0
      %p822 = por %p820, %p821
      %p823 = scmp.ne.s32.totalorder %s811, %s812
      %p824 = scmp.eq.s32.totalorder %s109, 1
      %p825 = por %p823, %p824
      %p827 = scmp.ne.s32.totalorder %s812, %s826
      %p828 = scmp.eq.s32.totalorder %s109, 0
      %p829 = por %p827, %p828
      %s831 = sadd.s32 %s830, 1
      %p834 = scmp.eq.s32.totalorder %s103, 1
      %p835 = scmp.ne.s32.totalorder %s830, %s832
      %p836 = scmp.eq.s32.totalorder %s103, 0
      %p837 = por %p835, %p836
      %p838 = scmp.ne.s32.totalorder %s830, %s832
      %p839 = scmp.eq.s32.totalorder %s108, 1
      %p840 = por %p838, %p839
      %p841 = scmp.ne.s32.totalorder %s832, %s833
      %p842 = scmp.eq.s32.totalorder %s108, 0
      %p843 = por %p841, %p842
      %p844 = scmp.ne.s32.totalorder %s832, %s833
      %p845 = scmp.eq.s32.totalorder %s109, 1
      %p846 = por %p844, %p845
      %p848 = scmp.ne.s32.totalorder %s833, %s847
      %p849 = scmp.eq.s32.totalorder %s109, 0
      %p850 = por %p848, %p849
      %s852 = sadd.s32 %s851, 1
      %p855 = scmp.eq.s32.totalorder %s103, 1
      %p856 = scmp.ne.s32.totalorder %s851, %s853
      %p857 = scmp.eq.s32.totalorder %s103, 0
      %p858 = por %p856, %p857
      %p859 = scmp.ne.s32.totalorder %s851, %s853
      %p860 = scmp.eq.s32.totalorder %s108, 1
      %p861 = por %p859, %p860
      %p862 = scmp.ne.s32.totalorder %s853, %s854
      %p863 = scmp.eq.s32.totalorder %s108, 0
      %p864 = por %p862, %p863
      %p865 = scmp.ne.s32.totalorder %s853, %s854
      %p866 = scmp.eq.s32.totalorder %s109, 1
      %p867 = por %p865, %p866
      %p869 = scmp.ne.s32.totalorder %s854, %s868
      %p870 = scmp.eq.s32.totalorder %s109, 0
      %p871 = por %p869, %p870
      %s873 = sadd.s32 %s872, 1
      %p876 = scmp.eq.s32.totalorder %s103, 1
      %p877 = scmp.ne.s32.totalorder %s872, %s874
      %p878 = scmp.eq.s32.totalorder %s103, 0
      %p879 = por %p877, %p878
      %p880 = scmp.ne.s32.totalorder %s872, %s874
      %p881 = scmp.eq.s32.totalorder %s108, 1
      %p882 = por %p880, %p881
      %p883 = scmp.ne.s32.totalorder %s874, %s875
      %p884 = scmp.eq.s32.totalorder %s108, 0
      %p885 = por %p883, %p884
      %p886 = scmp.ne.s32.totalorder %s874, %s875
      %p887 = scmp.eq.s32.totalorder %s109, 1
      %p888 = por %p886, %p887
      %p890 = scmp.ne.s32.totalorder %s875, %s889
      %p891 = scmp.eq.s32.totalorder %s109, 0
      %p892 = por %p890, %p891
      %s893 = ssub.s32 %s103, %s110
      %p894 = scmp.eq.s32.totalorder %s893, 0
      %s896 = sadd.s32 %s895, 1
      %s897 = scalar_select %p894, %s895, %s896
      %p900 = pneg %p894
      %p901 = scmp.eq.s32.totalorder %s103, 1
      %p902 = por %p900, %p901
      %p903 = scmp.ne.s32.totalorder %s895, %s898
      %p904 = scmp.eq.s32.totalorder %s103, 0
      %p905 = por %p903, %p904
      %p906 = scmp.ne.s32.totalorder %s895, %s898
      %p907 = scmp.eq.s32.totalorder %s108, 1
      %p908 = por %p906, %p907
      %p909 = scmp.ne.s32.totalorder %s898, %s899
      %p910 = scmp.eq.s32.totalorder %s108, 0
      %p911 = por %p909, %p910
      %p912 = scmp.ne.s32.totalorder %s898, %s899
      %p913 = scmp.eq.s32.totalorder %s109, 1
      %p914 = por %p912, %p913
      %p916 = scmp.ne.s32.totalorder %s899, %s915
      %p917 = scmp.eq.s32.totalorder %s109, 0
      %p918 = por %p916, %p917
      %p919 = scmp.le.s32.totalorder 1, %s103
      %p920 = scmp.lt.s32.totalorder %s103, 3
      %p921 = pnand %p919, %p920
      %p922 = pneg %p921
      // Predicated region
      $region9: #{tpu_custom_call.1} parent=5 // pred_check
        _
      $region10: #{tpu_custom_call.1} parent=5 // pred_check_branch
        %924 = sbr.rel (%p921) target = $region12
      $region11: #{tpu_custom_call.1} parent=5 // pred_region
        %s925 = ssub.s32 %s103, 1
        // Predicated region
        $region13: #{tpu_custom_call.1} parent=11 // pred_check
          %p926 = pneg %p150
        $region14: #{tpu_custom_call.1} parent=11 // pred_check_branch
          %928 = sbr.rel (%p926) target = $region16
        $region15: #{tpu_custom_call.1} parent=11 // pred_region
          _
        $region16: #{tpu_custom_call.1} parent=11 // pred_fallthru
          _
        // Predicated region
        $region17: #{tpu_custom_call.1} parent=11 // pred_check
          %p929 = pneg %p171
        $region18: #{tpu_custom_call.1} parent=11 // pred_check_branch
          %931 = sbr.rel (%p929) target = $region20
        $region19: #{tpu_custom_call.1} parent=11 // pred_region
          %s933 = ssub.s32 16, 16
          %934 = vsyncadd [#allocation9], %s933
          %s936 = sshll.u32 [#allocation8], 4
          %s937 = int_to_ptr.vmem [resolvable:$true] %s936
          %939 = dma.hbm_to_vmem [thread:$0]  %s7, 16, %s937, [#allocation9]
        $region20: #{tpu_custom_call.1} parent=11 // pred_fallthru
          _
        // Predicated region
        $region21: #{tpu_custom_call.1} parent=11 // pred_check
          %p940 = pneg %p192
        $region22: #{tpu_custom_call.1} parent=11 // pred_check_branch
          %942 = sbr.rel (%p940) target = $region24
        $region23: #{tpu_custom_call.1} parent=11 // pred_region
          %s944 = ssub.s32 32, 32
          %945 = vsyncadd [#allocation9], %s944
          %s946 = sshll.u32 [#allocation10], 4
          %s947 = int_to_ptr.vmem [resolvable:$true] %s946
          %952 = dma.hbm_to_vmem [thread:$0]  %s9, 32, %s947, [#allocation9], 16, 16, 1
        $region24: #{tpu_custom_call.1} parent=11 // pred_fallthru
          _
        // Predicated region
        $region25: #{tpu_custom_call.1} parent=11 // pred_check
          %p953 = pneg %p213
        $region26: #{tpu_custom_call.1} parent=11 // pred_check_branch
          %955 = sbr.rel (%p953) target = $region28
        $region27: #{tpu_custom_call.1} parent=11 // pred_region
          %s957 = ssub.s32 32, 32
          %958 = vsyncadd [#allocation12], %s957
          %s959 = sshll.u32 [#allocation11], 4
          %s960 = int_to_ptr.vmem [resolvable:$true] %s959
          %965 = dma.hbm_to_vmem [thread:$0]  %s11, 32, %s960, [#allocation12], 16, 16, 1
        $region28: #{tpu_custom_call.1} parent=11 // pred_fallthru
          _
        // Predicated region
        $region29: #{tpu_custom_call.1} parent=11 // pred_check
          %p966 = pneg %p234
        $region30: #{tpu_custom_call.1} parent=11 // pred_check_branch
          %968 = sbr.rel (%p966) target = $region32
        $region31: #{tpu_custom_call.1} parent=11 // pred_region
          _
        $region32: #{tpu_custom_call.1} parent=11 // pred_fallthru
          _
        // Predicated region
        $region33: #{tpu_custom_call.1} parent=11 // pred_check
          %p969 = pneg %p255
        $region34: #{tpu_custom_call.1} parent=11 // pred_check_branch
          %971 = sbr.rel (%p969) target = $region36
        $region35: #{tpu_custom_call.1} parent=11 // pred_region
          %s973 = ssub.s32 32, 32
          %974 = vsyncadd [#allocation12], %s973
          %s975 = sshll.u32 [#allocation13], 4
          %s976 = int_to_ptr.vmem [resolvable:$true] %s975
          %981 = dma.hbm_to_vmem [thread:$0]  %s15, 32, %s976, [#allocation12], 16, 16, 1
        $region36: #{tpu_custom_call.1} parent=11 // pred_fallthru
          _
        // Predicated region
        $region37: #{tpu_custom_call.1} parent=11 // pred_check
          %p982 = pneg %p276
        $region38: #{tpu_custom_call.1} parent=11 // pred_check_branch
          %984 = sbr.rel (%p982) target = $region40
        $region39: #{tpu_custom_call.1} parent=11 // pred_region
          _
        $region40: #{tpu_custom_call.1} parent=11 // pred_fallthru
          _
        // Predicated region
        $region41: #{tpu_custom_call.1} parent=11 // pred_check
          %p985 = pneg %p297
        $region42: #{tpu_custom_call.1} parent=11 // pred_check_branch
          %987 = sbr.rel (%p985) target = $region44
        $region43: #{tpu_custom_call.1} parent=11 // pred_region
          %s989 = ssub.s32 32, 32
          %990 = vsyncadd [#allocation15], %s989
          %s991 = sshll.u32 [#allocation14], 4
          %s992 = int_to_ptr.vmem [resolvable:$true] %s991
          %997 = dma.hbm_to_vmem [thread:$0]  %s19, 32, %s992, [#allocation15], 16, 16, 1
        $region44: #{tpu_custom_call.1} parent=11 // pred_fallthru
          _
        // Predicated region
        $region45: #{tpu_custom_call.1} parent=11 // pred_check
          %p998 = pneg %p318
        $region46: #{tpu_custom_call.1} parent=11 // pred_check_branch
          %1000 = sbr.rel (%p998) target = $region48
        $region47: #{tpu_custom_call.1} parent=11 // pred_region
          %s1002 = ssub.s32 32, 32
          %1003 = vsyncadd [#allocation15], %s1002
          %s1004 = sshll.u32 [#allocation16], 4
          %s1005 = int_to_ptr.vmem [resolvable:$true] %s1004
          %1010 = dma.hbm_to_vmem [thread:$0]  %s21, 32, %s1005, [#allocation15], 16, 16, 1
        $region48: #{tpu_custom_call.1} parent=11 // pred_fallthru
          _
        // Predicated region
        $region49: #{tpu_custom_call.1} parent=11 // pred_check
          %p1011 = pneg %p339
        $region50: #{tpu_custom_call.1} parent=11 // pred_check_branch
          %1013 = sbr.rel (%p1011) target = $region52
        $region51: #{tpu_custom_call.1} parent=11 // pred_region
          %s1015 = ssub.s32 32, 32
          %1016 = vsyncadd [#allocation18], %s1015
          %s1017 = sshll.u32 [#allocation17], 4
          %s1018 = int_to_ptr.vmem [resolvable:$true] %s1017
          %1023 = dma.hbm_to_vmem [thread:$0]  %s23, 32, %s1018, [#allocation18], 16, 16, 1
        $region52: #{tpu_custom_call.1} parent=11 // pred_fallthru
          _
        // Predicated region
        $region53: #{tpu_custom_call.1} parent=11 // pred_check
          %p1024 = pneg %p360
        $region54: #{tpu_custom_call.1} parent=11 // pred_check_branch
          %1026 = sbr.rel (%p1024) target = $region56
        $region55: #{tpu_custom_call.1} parent=11 // pred_region
          _
        $region56: #{tpu_custom_call.1} parent=11 // pred_fallthru
          _
        // Predicated region
        $region57: #{tpu_custom_call.1} parent=11 // pred_check
          %p1027 = pneg %p381
        $region58: #{tpu_custom_call.1} parent=11 // pred_check_branch
          %1029 = sbr.rel (%p1027) target = $region60
        $region59: #{tpu_custom_call.1} parent=11 // pred_region
          %s1031 = ssub.s32 32, 32
          %1032 = vsyncadd [#allocation18], %s1031
          %s1033 = sshll.u32 [#allocation19], 4
          %s1034 = int_to_ptr.vmem [resolvable:$true] %s1033
          %1039 = dma.hbm_to_vmem [thread:$0]  %s27, 32, %s1034, [#allocation18], 16, 16, 1
        $region60: #{tpu_custom_call.1} parent=11 // pred_fallthru
          _
        // Predicated region
        $region61: #{tpu_custom_call.1} parent=11 // pred_check
          %p1040 = pneg %p402
        $region62: #{tpu_custom_call.1} parent=11 // pred_check_branch
          %1042 = sbr.rel (%p1040) target = $region64
        $region63: #{tpu_custom_call.1} parent=11 // pred_region
          _
        $region64: #{tpu_custom_call.1} parent=11 // pred_fallthru
          _
        // Predicated region
        $region65: #{tpu_custom_call.1} parent=11 // pred_check
          %p1043 = pneg %p423
        $region66: #{tpu_custom_call.1} parent=11 // pred_check_branch
          %1045 = sbr.rel (%p1043) target = $region68
        $region67: #{tpu_custom_call.1} parent=11 // pred_region
          %s1047 = ssub.s32 32, 32
          %1048 = vsyncadd [#allocation21], %s1047
          %s1049 = sshll.u32 [#allocation20], 4
          %s1050 = int_to_ptr.vmem [resolvable:$true] %s1049
          %1055 = dma.hbm_to_vmem [thread:$0]  %s31, 32, %s1050, [#allocation21], 16, 16, 1
        $region68: #{tpu_custom_call.1} parent=11 // pred_fallthru
          _
        // Predicated region
        $region69: #{tpu_custom_call.1} parent=11 // pred_check
          %p1056 = pneg %p444
        $region70: #{tpu_custom_call.1} parent=11 // pred_check_branch
          %1058 = sbr.rel (%p1056) target = $region72
        $region71: #{tpu_custom_call.1} parent=11 // pred_region
          %s1060 = ssub.s32 32, 32
          %1061 = vsyncadd [#allocation21], %s1060
          %s1062 = sshll.u32 [#allocation22], 4
          %s1063 = int_to_ptr.vmem [resolvable:$true] %s1062
          %1068 = dma.hbm_to_vmem [thread:$0]  %s33, 32, %s1063, [#allocation21], 16, 16, 1
        $region72: #{tpu_custom_call.1} parent=11 // pred_fallthru
          _
        // Predicated region
        $region73: #{tpu_custom_call.1} parent=11 // pred_check
          %p1069 = pneg %p465
        $region74: #{tpu_custom_call.1} parent=11 // pred_check_branch
          %1071 = sbr.rel (%p1069) target = $region76
        $region75: #{tpu_custom_call.1} parent=11 // pred_region
          %s1073 = ssub.s32 32, 32
          %1074 = vsyncadd [#allocation24], %s1073
          %s1075 = sshll.u32 [#allocation23], 4
          %s1076 = int_to_ptr.vmem [resolvable:$true] %s1075
          %1081 = dma.hbm_to_vmem [thread:$0]  %s35, 32, %s1076, [#allocation24], 16, 16, 1
        $region76: #{tpu_custom_call.1} parent=11 // pred_fallthru
          _
        // Predicated region
        $region77: #{tpu_custom_call.1} parent=11 // pred_check
          %p1082 = pneg %p486
        $region78: #{tpu_custom_call.1} parent=11 // pred_check_branch
          %1084 = sbr.rel (%p1082) target = $region80
        $region79: #{tpu_custom_call.1} parent=11 // pred_region
          _
        $region80: #{tpu_custom_call.1} parent=11 // pred_fallthru
          _
        // Predicated region
        $region81: #{tpu_custom_call.1} parent=11 // pred_check
          %p1085 = pneg %p507
        $region82: #{tpu_custom_call.1} parent=11 // pred_check_branch
          %1087 = sbr.rel (%p1085) target = $region84
        $region83: #{tpu_custom_call.1} parent=11 // pred_region
          %s1089 = ssub.s32 32, 32
          %1090 = vsyncadd [#allocation24], %s1089
          %s1091 = sshll.u32 [#allocation25], 4
          %s1092 = int_to_ptr.vmem [resolvable:$true] %s1091
          %1097 = dma.hbm_to_vmem [thread:$0]  %s39, 32, %s1092, [#allocation24], 16, 16, 1
        $region84: #{tpu_custom_call.1} parent=11 // pred_fallthru
          _
        // Predicated region
        $region85: #{tpu_custom_call.1} parent=11 // pred_check
          %p1098 = pneg %p528
        $region86: #{tpu_custom_call.1} parent=11 // pred_check_branch
          %1100 = sbr.rel (%p1098) target = $region88
        $region87: #{tpu_custom_call.1} parent=11 // pred_region
          _
        $region88: #{tpu_custom_call.1} parent=11 // pred_fallthru
          _
        // Predicated region
        $region89: #{tpu_custom_call.1} parent=11 // pred_check
          %p1101 = pneg %p549
        $region90: #{tpu_custom_call.1} parent=11 // pred_check_branch
          %1103 = sbr.rel (%p1101) target = $region92
        $region91: #{tpu_custom_call.1} parent=11 // pred_region
          %s1105 = ssub.s32 32, 32
          %1106 = vsyncadd [#allocation27], %s1105
          %s1107 = sshll.u32 [#allocation26], 4
          %s1108 = int_to_ptr.vmem [resolvable:$true] %s1107
          %1113 = dma.hbm_to_vmem [thread:$0]  %s43, 32, %s1108, [#allocation27], 16, 16, 1
        $region92: #{tpu_custom_call.1} parent=11 // pred_fallthru
          _
        // Predicated region
        $region93: #{tpu_custom_call.1} parent=11 // pred_check
          %p1114 = pneg %p570
        $region94: #{tpu_custom_call.1} parent=11 // pred_check_branch
          %1116 = sbr.rel (%p1114) target = $region96
        $region95: #{tpu_custom_call.1} parent=11 // pred_region
          %s1118 = ssub.s32 32, 32
          %1119 = vsyncadd [#allocation27], %s1118
          %s1120 = sshll.u32 [#allocation28], 4
          %s1121 = int_to_ptr.vmem [resolvable:$true] %s1120
          %1126 = dma.hbm_to_vmem [thread:$0]  %s45, 32, %s1121, [#allocation27], 16, 16, 1
        $region96: #{tpu_custom_call.1} parent=11 // pred_fallthru
          _
        // Predicated region
        $region97: #{tpu_custom_call.1} parent=11 // pred_check
          %p1127 = pneg %p591
        $region98: #{tpu_custom_call.1} parent=11 // pred_check_branch
          %1129 = sbr.rel (%p1127) target = $region100
        $region99: #{tpu_custom_call.1} parent=11 // pred_region
          %s1131 = ssub.s32 32, 32
          %1132 = vsyncadd [#allocation30], %s1131
          %s1133 = sshll.u32 [#allocation29], 4
          %s1134 = int_to_ptr.vmem [resolvable:$true] %s1133
          %1139 = dma.hbm_to_vmem [thread:$0]  %s47, 32, %s1134, [#allocation30], 16, 16, 1
        $region100: #{tpu_custom_call.1} parent=11 // pred_fallthru
          _
        // Predicated region
        $region101: #{tpu_custom_call.1} parent=11 // pred_check
          %p1140 = pneg %p612
        $region102: #{tpu_custom_call.1} parent=11 // pred_check_branch
          %1142 = sbr.rel (%p1140) target = $region104
        $region103: #{tpu_custom_call.1} parent=11 // pred_region
          _
        $region104: #{tpu_custom_call.1} parent=11 // pred_fallthru
          _
        // Predicated region
        $region105: #{tpu_custom_call.1} parent=11 // pred_check
          %p1143 = pneg %p633
        $region106: #{tpu_custom_call.1} parent=11 // pred_check_branch
          %1145 = sbr.rel (%p1143) target = $region108
        $region107: #{tpu_custom_call.1} parent=11 // pred_region
          _
        $region108: #{tpu_custom_call.1} parent=11 // pred_fallthru
          _
        // Predicated region
        $region109: #{tpu_custom_call.1} parent=11 // pred_check
          %p1146 = pneg %p654
        $region110: #{tpu_custom_call.1} parent=11 // pred_check_branch
          %1148 = sbr.rel (%p1146) target = $region112
        $region111: #{tpu_custom_call.1} parent=11 // pred_region
          _
        $region112: #{tpu_custom_call.1} parent=11 // pred_fallthru
          _
        // Predicated region
        $region113: #{tpu_custom_call.1} parent=11 // pred_check
          %p1149 = pneg %p675
        $region114: #{tpu_custom_call.1} parent=11 // pred_check_branch
          %1151 = sbr.rel (%p1149) target = $region116
        $region115: #{tpu_custom_call.1} parent=11 // pred_region
          _
        $region116: #{tpu_custom_call.1} parent=11 // pred_fallthru
          _
        // Predicated region
        $region117: #{tpu_custom_call.1} parent=11 // pred_check
          %p1152 = pneg %p696
        $region118: #{tpu_custom_call.1} parent=11 // pred_check_branch
          %1154 = sbr.rel (%p1152) target = $region120
        $region119: #{tpu_custom_call.1} parent=11 // pred_region
          _
        $region120: #{tpu_custom_call.1} parent=11 // pred_fallthru
          _
        // Predicated region
        $region121: #{tpu_custom_call.1} parent=11 // pred_check
          %p1155 = pneg %p717
        $region122: #{tpu_custom_call.1} parent=11 // pred_check_branch
          %1157 = sbr.rel (%p1155) target = $region124
        $region123: #{tpu_custom_call.1} parent=11 // pred_region
          _
        $region124: #{tpu_custom_call.1} parent=11 // pred_fallthru
          _
        // Predicated region
        $region125: #{tpu_custom_call.1} parent=11 // pred_check
          %p1158 = pneg %p738
        $region126: #{tpu_custom_call.1} parent=11 // pred_check_branch
          %1160 = sbr.rel (%p1158) target = $region128
        $region127: #{tpu_custom_call.1} parent=11 // pred_region
          _
        $region128: #{tpu_custom_call.1} parent=11 // pred_fallthru
          _
        // Predicated region
        $region129: #{tpu_custom_call.1} parent=11 // pred_check
          %p1161 = pneg %p759
        $region130: #{tpu_custom_call.1} parent=11 // pred_check_branch
          %1163 = sbr.rel (%p1161) target = $region132
        $region131: #{tpu_custom_call.1} parent=11 // pred_region
          _
        $region132: #{tpu_custom_call.1} parent=11 // pred_fallthru
          _
        // Predicated region
        $region133: #{tpu_custom_call.1} parent=11 // pred_check
          %p1164 = pneg %p780
        $region134: #{tpu_custom_call.1} parent=11 // pred_check_branch
          %1166 = sbr.rel (%p1164) target = $region136
        $region135: #{tpu_custom_call.1} parent=11 // pred_region
          _
        $region136: #{tpu_custom_call.1} parent=11 // pred_fallthru
          _
        // Predicated region
        $region137: #{tpu_custom_call.1} parent=11 // pred_check
          %p1167 = pneg %p801
        $region138: #{tpu_custom_call.1} parent=11 // pred_check_branch
          %1169 = sbr.rel (%p1167) target = $region140
        $region139: #{tpu_custom_call.1} parent=11 // pred_region
          _
        $region140: #{tpu_custom_call.1} parent=11 // pred_fallthru
          _
        // Predicated region
        $region141: #{tpu_custom_call.1} parent=11 // pred_check
          %p1170 = pneg %p822
        $region142: #{tpu_custom_call.1} parent=11 // pred_check_branch
          %1172 = sbr.rel (%p1170) target = $region144
        $region143: #{tpu_custom_call.1} parent=11 // pred_region
          _
        $region144: #{tpu_custom_call.1} parent=11 // pred_fallthru
          _
        // Predicated region
        $region145: #{tpu_custom_call.1} parent=11 // pred_check
          %p1173 = pneg %p843
        $region146: #{tpu_custom_call.1} parent=11 // pred_check_branch
          %1175 = sbr.rel (%p1173) target = $region148
        $region147: #{tpu_custom_call.1} parent=11 // pred_region
          _
        $region148: #{tpu_custom_call.1} parent=11 // pred_fallthru
          _
        // Predicated region
        $region149: #{tpu_custom_call.1} parent=11 // pred_check
          %p1176 = pneg %p864
        $region150: #{tpu_custom_call.1} parent=11 // pred_check_branch
          %1178 = sbr.rel (%p1176) target = $region152
        $region151: #{tpu_custom_call.1} parent=11 // pred_region
          _
        $region152: #{tpu_custom_call.1} parent=11 // pred_fallthru
          _
        // Predicated region
        $region153: #{tpu_custom_call.1} parent=11 // pred_check
          %p1179 = pneg %p885
        $region154: #{tpu_custom_call.1} parent=11 // pred_check_branch
          %1181 = sbr.rel (%p1179) target = $region156
        $region155: #{tpu_custom_call.1} parent=11 // pred_region
          _
        $region156: #{tpu_custom_call.1} parent=11 // pred_fallthru
          _
      $region12: #{tpu_custom_call.1} parent=5 // pred_fallthru
        _
      %p1182 = scmp.lt.s32.totalorder %s103, 2
      // Predicated region
      $region157: #{tpu_custom_call.1} parent=5 // pred_check
        %p1183 = pneg %p1182
      $region158: #{tpu_custom_call.1} parent=5 // pred_check_branch
        %1185 = sbr.rel (%p1183) target = $region160
      $region159: #{tpu_custom_call.1} parent=5 // pred_region
        // Predicated region
        $region161: #{tpu_custom_call.1} parent=159 // pred_check
          %p1186 = pneg %p123
        $region162: #{tpu_custom_call.1} parent=159 // pred_check_branch
          %1188 = sbr.rel (%p1186) target = $region164
        $region163: #{tpu_custom_call.1} parent=159 // pred_region
          %s1189 = sand.u32 %s113, 1
          %s1190 = scalar_lea.sflag [#allocation6], %s1189
          %s1191 = sand.u32 %s113, 1
          %s1192 = smul.addr %s1191, 8
          %s1193 = scalar_lea.vmem [#allocation5], %s1192
          %s1195 = ssub.s32 128, 128
          %1196 = vsyncadd %s1190, %s1195
          %s1197 = smul.addr %s103, 128
          %s1198 = scalar_lea.hbm %s3, %s1197
          %s1200 = sshll.u32 %s1193, 4
          %s1201 = int_to_ptr.vmem [resolvable:$true] %s1200
          %1203 = dma.hbm_to_vmem [thread:$0]  %s1198, 128, %s1201, %s1190
        $region164: #{tpu_custom_call.1} parent=159 // pred_fallthru
          _
      $region160: #{tpu_custom_call.1} parent=5 // pred_fallthru
        _
      %p1204 = scmp.le.s32.totalorder 1, %s103
      %p1205 = scmp.lt.s32.totalorder %s103, 3
      %p1206 = pnand %p1204, %p1205
      %p1207 = pneg %p1206
      // Predicated region
      $region165: #{tpu_custom_call.1} parent=5 // pred_check
        _
      $region166: #{tpu_custom_call.1} parent=5 // pred_check_branch
        %1209 = sbr.rel (%p1206) target = $region168
      $region167: #{tpu_custom_call.1} parent=5 // pred_region
        %s1210 = ssub.s32 %s103, 1
        %s1211 = sand.u32 %s116, 1
        %s1212 = scalar_lea.sflag [#allocation6], %s1211
        %s1213 = sand.u32 %s116, 1
        %s1214 = smul.addr %s1213, 8
        %s1215 = scalar_lea.vmem [#allocation5], %s1214
        // Predicated region
        $region169: #{tpu_custom_call.1} parent=167 // pred_check
          %p1216 = pneg %p129
        $region170: #{tpu_custom_call.1} parent=167 // pred_check_branch
          %1218 = sbr.rel (%p1216) target = $region172
        $region171: #{tpu_custom_call.1} parent=167 // pred_region
          %1219 = dma.done %s1212, 128
        $region172: #{tpu_custom_call.1} parent=167 // pred_fallthru
          _
        // Predicated region
        $region173: #{tpu_custom_call.1} parent=167 // pred_check
          %p1220 = pneg %p171
        $region174: #{tpu_custom_call.1} parent=167 // pred_check_branch
          %1222 = sbr.rel (%p1220) target = $region176
        $region175: #{tpu_custom_call.1} parent=167 // pred_region
          %1223 = dma.done [#allocation9], 16
        $region176: #{tpu_custom_call.1} parent=167 // pred_fallthru
          _
        // Predicated region
        $region177: #{tpu_custom_call.1} parent=167 // pred_check
          %p1224 = pneg %p192
        $region178: #{tpu_custom_call.1} parent=167 // pred_check_branch
          %1226 = sbr.rel (%p1224) target = $region180
        $region179: #{tpu_custom_call.1} parent=167 // pred_region
          %1227 = dma.done [#allocation9], 32
        $region180: #{tpu_custom_call.1} parent=167 // pred_fallthru
          _
        // Predicated region
        $region181: #{tpu_custom_call.1} parent=167 // pred_check
          %p1228 = pneg %p213
        $region182: #{tpu_custom_call.1} parent=167 // pred_check_branch
          %1230 = sbr.rel (%p1228) target = $region184
        $region183: #{tpu_custom_call.1} parent=167 // pred_region
          %1231 = dma.done [#allocation12], 32
        $region184: #{tpu_custom_call.1} parent=167 // pred_fallthru
          _
        // Predicated region
        $region185: #{tpu_custom_call.1} parent=167 // pred_check
          %p1232 = pneg %p255
        $region186: #{tpu_custom_call.1} parent=167 // pred_check_branch
          %1234 = sbr.rel (%p1232) target = $region188
        $region187: #{tpu_custom_call.1} parent=167 // pred_region
          %1235 = dma.done [#allocation12], 32
        $region188: #{tpu_custom_call.1} parent=167 // pred_fallthru
          _
        // Predicated region
        $region189: #{tpu_custom_call.1} parent=167 // pred_check
          %p1236 = pneg %p297
        $region190: #{tpu_custom_call.1} parent=167 // pred_check_branch
          %1238 = sbr.rel (%p1236) target = $region192
        $region191: #{tpu_custom_call.1} parent=167 // pred_region
          %1239 = dma.done [#allocation15], 32
        $region192: #{tpu_custom_call.1} parent=167 // pred_fallthru
          _
        // Predicated region
        $region193: #{tpu_custom_call.1} parent=167 // pred_check
          %p1240 = pneg %p318
        $region194: #{tpu_custom_call.1} parent=167 // pred_check_branch
          %1242 = sbr.rel (%p1240) target = $region196
        $region195: #{tpu_custom_call.1} parent=167 // pred_region
          %1243 = dma.done [#allocation15], 32
        $region196: #{tpu_custom_call.1} parent=167 // pred_fallthru
          _
        // Predicated region
        $region197: #{tpu_custom_call.1} parent=167 // pred_check
          %p1244 = pneg %p339
        $region198: #{tpu_custom_call.1} parent=167 // pred_check_branch
          %1246 = sbr.rel (%p1244) target = $region200
        $region199: #{tpu_custom_call.1} parent=167 // pred_region
          %1247 = dma.done [#allocation18], 32
        $region200: #{tpu_custom_call.1} parent=167 // pred_fallthru
          _
        // Predicated region
        $region201: #{tpu_custom_call.1} parent=167 // pred_check
          %p1248 = pneg %p381
        $region202: #{tpu_custom_call.1} parent=167 // pred_check_branch
          %1250 = sbr.rel (%p1248) target = $region204
        $region203: #{tpu_custom_call.1} parent=167 // pred_region
          %1251 = dma.done [#allocation18], 32
        $region204: #{tpu_custom_call.1} parent=167 // pred_fallthru
          _
        // Predicated region
        $region205: #{tpu_custom_call.1} parent=167 // pred_check
          %p1252 = pneg %p423
        $region206: #{tpu_custom_call.1} parent=167 // pred_check_branch
          %1254 = sbr.rel (%p1252) target = $region208
        $region207: #{tpu_custom_call.1} parent=167 // pred_region
          %1255 = dma.done [#allocation21], 32
        $region208: #{tpu_custom_call.1} parent=167 // pred_fallthru
          _
        // Predicated region
        $region209: #{tpu_custom_call.1} parent=167 // pred_check
          %p1256 = pneg %p444
        $region210: #{tpu_custom_call.1} parent=167 // pred_check_branch
          %1258 = sbr.rel (%p1256) target = $region212
        $region211: #{tpu_custom_call.1} parent=167 // pred_region
          %1259 = dma.done [#allocation21], 32
        $region212: #{tpu_custom_call.1} parent=167 // pred_fallthru
          _
        // Predicated region
        $region213: #{tpu_custom_call.1} parent=167 // pred_check
          %p1260 = pneg %p465
        $region214: #{tpu_custom_call.1} parent=167 // pred_check_branch
          %1262 = sbr.rel (%p1260) target = $region216
        $region215: #{tpu_custom_call.1} parent=167 // pred_region
          %1263 = dma.done [#allocation24], 32
        $region216: #{tpu_custom_call.1} parent=167 // pred_fallthru
          _
        // Predicated region
        $region217: #{tpu_custom_call.1} parent=167 // pred_check
          %p1264 = pneg %p507
        $region218: #{tpu_custom_call.1} parent=167 // pred_check_branch
          %1266 = sbr.rel (%p1264) target = $region220
        $region219: #{tpu_custom_call.1} parent=167 // pred_region
          %1267 = dma.done [#allocation24], 32
        $region220: #{tpu_custom_call.1} parent=167 // pred_fallthru
          _
        // Predicated region
        $region221: #{tpu_custom_call.1} parent=167 // pred_check
          %p1268 = pneg %p549
        $region222: #{tpu_custom_call.1} parent=167 // pred_check_branch
          %1270 = sbr.rel (%p1268) target = $region224
        $region223: #{tpu_custom_call.1} parent=167 // pred_region
          %1271 = dma.done [#allocation27], 32
        $region224: #{tpu_custom_call.1} parent=167 // pred_fallthru
          _
        // Predicated region
        $region225: #{tpu_custom_call.1} parent=167 // pred_check
          %p1272 = pneg %p570
        $region226: #{tpu_custom_call.1} parent=167 // pred_check_branch
          %1274 = sbr.rel (%p1272) target = $region228
        $region227: #{tpu_custom_call.1} parent=167 // pred_region
          %1275 = dma.done [#allocation27], 32
        $region228: #{tpu_custom_call.1} parent=167 // pred_fallthru
          _
        // Predicated region
        $region229: #{tpu_custom_call.1} parent=167 // pred_check
          %p1276 = pneg %p591
        $region230: #{tpu_custom_call.1} parent=167 // pred_check_branch
          %1278 = sbr.rel (%p1276) target = $region232
        $region231: #{tpu_custom_call.1} parent=167 // pred_region
          %1279 = dma.done [#allocation30], 32
        $region232: #{tpu_custom_call.1} parent=167 // pred_fallthru
          _
        %s1280 = sand.u32 %s116, 1
        %s1281 = scalar_lea.sflag [#allocation6], %s1280
        %s1282 = sand.u32 %s116, 1
        %s1283 = smul.addr %s1282, 8
        %s1284 = scalar_lea.vmem [#allocation5], %s1283
        %p1285 = pneg %p129
        %p1286 = pneg %p126
        %p1287 = pneg %p150
        %p1288 = pneg %p147
        %p1289 = pneg %p171
        %p1290 = pneg %p168
        %p1291 = pneg %p192
        %p1292 = pneg %p189
        %p1293 = pneg %p213
        %p1294 = pneg %p210
        %p1295 = pneg %p234
        %p1296 = pneg %p231
        %p1297 = pneg %p255
        %p1298 = pneg %p252
        %p1299 = pneg %p276
        %p1300 = pneg %p273
        %p1301 = pneg %p297
        %p1302 = pneg %p294
        %p1303 = pneg %p318
        %p1304 = pneg %p315
        %p1305 = pneg %p339
        %p1306 = pneg %p336
        %p1307 = pneg %p360
        %p1308 = pneg %p357
        %p1309 = pneg %p381
        %p1310 = pneg %p378
        %p1311 = pneg %p402
        %p1312 = pneg %p399
        %p1313 = pneg %p423
        %p1314 = pneg %p420
        %p1315 = pneg %p444
        %p1316 = pneg %p441
        %p1317 = pneg %p465
        %p1318 = pneg %p462
        %p1319 = pneg %p486
        %p1320 = pneg %p483
        %p1321 = pneg %p507
        %p1322 = pneg %p504
        %p1323 = pneg %p528
        %p1324 = pneg %p525
        %p1325 = pneg %p549
        %p1326 = pneg %p546
        %p1327 = pneg %p570
        %p1328 = pneg %p567
        %p1329 = pneg %p591
        %p1330 = pneg %p588
        %p1331 = pneg %p612
        %p1332 = pneg %p609
        %p1333 = pneg %p633
        %p1334 = pneg %p630
        %p1335 = pneg %p654
        %p1336 = pneg %p651
        %p1337 = pneg %p675
        %p1338 = pneg %p672
        %p1339 = pneg %p696
        %p1340 = pneg %p693
        %p1341 = pneg %p717
        %p1342 = pneg %p714
        %p1343 = pneg %p738
        %p1344 = pneg %p735
        %p1345 = pneg %p759
        %p1346 = pneg %p756
        %p1347 = pneg %p780
        %p1348 = pneg %p777
        %p1349 = pneg %p801
        %p1350 = pneg %p798
        %p1351 = pneg %p822
        %p1352 = pneg %p819
        %p1353 = pneg %p843
        %p1354 = pneg %p840
        %p1355 = pneg %p864
        %p1356 = pneg %p861
        %p1357 = pneg %p885
        %p1358 = pneg %p882
        %p1359 = pneg %p911
        %p1360 = pneg %p908
        %s1361 = sand.u32 %s898, 1
        %s1362 = scalar_lea.sflag [#allocation7], %s1361
        %s1363 = sand.u32 %s898, 1
        %s1364 = smul.addr %s1363, 5
        %s1365 = scalar_lea.vmem [#allocation31], %s1364
        %v1367 = vld [vmem:[%s1215] sm:$0xff]
        %s1368 = sld [smem:[#allocation3 + %s108]]
        %v1369 = vlaneseq
        %v1370 = vand.u32 %v1369, 127
        %v1371 = vstv %s1368
        %vm1372 = vcmp.lt.s32.totalorder %v1370, %v1371
        %v1373 = vld [vmem:[%s5] sm:$0xf]
        %v1374 = vld [vmem:[%s5 + $0x4] sm:$0xf]
        %v1375 = vld [vmem:[%s5 + $0x8] sm:$0xf]
        %v1376 = vld [vmem:[%s5 + $0xc] sm:$0xf]
        %v1377 = vld [vmem:[%s5 + $0x10] sm:$0xf]
        %v1378 = vpack.c.bf16 %v1367, %v1367
        %v1379 = vld [vmem:[#allocation8] sm:$0x1]
        %v1381 = vlaneseq
        %v1382 = vshrl.u32 %v1381, 7
        %v1383 = vsub.s32 0, %v1382
        %v1384 = vrot.slane %v1379, %v1383
        %v1391 = vunpack.c.l.b16 %v1373
        %v1392 = vunpack.c.l.b16 %v1374
        %v1393 = vunpack.c.l.b16 %v1375
        %v1394 = vunpack.c.l.b16 %v1376
        %v1395 = vunpack.c.l.b16 %v1377
        %v1396 = vpack.c.b16 %v1392, %v1391
        %v1397 = vpack.c.b16 %v1394, %v1393
        %v1398 = vpack.c.b16 %v1395, %v1395
        %vm1401 = vcmask 326656
        %v1403 = vsel %vm1401, %v1378, 0
        %vm1405 = vcmask 1043456
        %v1407 = vsel %vm1405, %v1398, 0
        %1409 = vmatprep.subr.bf16.mxu0 0
        %1410 = vmatpush1.bf16.msra.mxu0 %v1396
        %1411 = vmatprep.subr.bf16.mxu0 0
        %1412 = vmatpush1.bf16.msra.mxu0 %v1397
        %1413 = vmatprep.subr.bf16.mxu0 0
        %1414 = vmatpush1.bf16.msra.mxu0 %v1407
        %1415 = vmatprep.subr.bf16.mxu0 0
        %1416 = vmatpush1.bf16.msra.mxu0 0
        %1417 = vmatprep.subr.bf16.mxu0 0
        %1418 = vmatpush1.bf16.msra.mxu0 0
        %1419 = vmatprep.subr.bf16.mxu0 0
        %1420 = vmatpush1.bf16.msra.mxu0 0
        %1421 = vmatprep.subr.bf16.mxu0 0
        %1422 = vmatpush1.bf16.msra.mxu0 0
        %1423 = vmatprep.subr.bf16.mxu0 0
        %1424 = vmatpush1.bf16.msra.mxu0 0
        %1425 = vmatprep.subr.bf16.mxu0 0
        %1426 = vmatpush1.bf16.msra.mxu0 0
        %1427 = vmatprep.subr.bf16.mxu0 0
        %1428 = vmatpush1.bf16.msra.mxu0 0
        %1429 = vmatprep.subr.bf16.mxu0 0
        %1430 = vmatpush1.bf16.msra.mxu0 0
        %1431 = vmatprep.subr.bf16.mxu0 0
        %1432 = vmatpush1.bf16.msra.mxu0 0
        %1433 = vmatprep.subr.bf16.mxu0 0
        %1434 = vmatpush1.bf16.msra.mxu0 0
        %1435 = vmatprep.subr.bf16.mxu0 0
        %1436 = vmatpush1.bf16.msra.mxu0 0
        %1437 = vmatprep.subr.bf16.mxu0 0
        %1438 = vmatpush1.bf16.msra.mxu0 0
        %1439 = vmatprep.subr.bf16.mxu0 0
        %1440 = vmatpush1.bf16.msra.mxu0 0
        %1441 = vmatprep.mubr.bf16.mxu0 0
        %1442 = vmatmul.mubr.bf16.gmra.mrb[0].mxu0 %v1403
        %v1443 = vpop.f32.mrb[0].mxu0
        %v1444 = vadd.f32 %v1384, %v1443
        %v1445 = vpop.f32.mrb[0].mxu0
        %v1446 = vpop.f32.mrb[0].mxu0
        %v1447 = vpop.f32.mrb[0].mxu0
        %1448 = vdwg.mxu0
        %v1449 = vld [vmem:[#allocation10] sm:$0x1]
        %v1450 = vld [vmem:[#allocation11] sm:$0x1]
        %vm1451 = vcmask 261120
        %v1452 = vsel %vm1451, %v1444, 0.0
        %1453 = vadd.xlane.f32.xlu0 %v1452
        %v1454 = vpop.xlane.xlu0 %1453
        %v1455 = vrcp.pop 32.0
        %v1456 = vmul.f32 %v1454, %v1455
        %v1457 = vsub.f32 %v1444, %v1456
        %v1458 = vmul.f32 %v1457, %v1457
        %v1459 = vsel %vm1451, %v1458, 0.0
        %1460 = vadd.xlane.f32.xlu0 %v1459
        %v1461 = vpop.xlane.xlu0 %1460
        %v1462 = vmul.f32 %v1461, %v1455
        %v1463 = vadd.f32 %v1462, 1e-05
        %v1464 = vrsqrt.pop %v1463
        %v1465 = vmul.f32 %v1457, %v1464
        %v1467 = vlaneseq
        %v1468 = vshrl.u32 %v1467, 7
        %v1469 = vsub.s32 0, %v1468
        %v1470 = vrot.slane %v1449, %v1469
        %v1472 = vmul.f32 %v1465, %v1470
        %v1474 = vlaneseq
        %v1475 = vshrl.u32 %v1474, 7
        %v1476 = vsub.s32 0, %v1475
        %v1477 = vrot.slane %v1450, %v1476
        %v1479 = vadd.f32 %v1472, %v1477
        %v1480 = vld [vmem:[%s13] sm:$0xf]
        %v1481 = vld [vmem:[%s13 + $0x4] sm:$0xf]
        %v1482 = vld [vmem:[%s13 + $0x8] sm:$0xf]
        %v1483 = vld [vmem:[%s13 + $0xc] sm:$0xf]
        %v1484 = vpack.c.bf16 %v1479, %v1479
        %v1485 = vld [vmem:[#allocation13] sm:$0x1]
        %v1487 = vlaneseq
        %v1488 = vshrl.u32 %v1487, 7
        %v1489 = vsub.s32 0, %v1488
        %v1490 = vrot.slane %v1485, %v1489
        %v1496 = vunpack.c.l.b16 %v1480
        %v1497 = vunpack.c.l.b16 %v1481
        %v1498 = vunpack.c.l.b16 %v1482
        %v1499 = vunpack.c.l.b16 %v1483
        %v1500 = vpack.c.b16 %v1497, %v1496
        %v1501 = vpack.c.b16 %v1499, %v1498
        %v1505 = vsel %vm1451, %v1484, 0
        %1507 = vmatprep.subr.bf16.mxu0 0
        %1508 = vmatpush1.bf16.msra.mxu0 %v1500
        %1509 = vmatprep.subr.bf16.mxu0 0
        %1510 = vmatpush1.bf16.msra.mxu0 %v1501
        %1511 = vmatprep.subr.bf16.mxu0 0
        %1512 = vmatpush1.bf16.msra.mxu0 0
        %1513 = vmatprep.subr.bf16.mxu0 0
        %1514 = vmatpush1.bf16.msra.mxu0 0
        %1515 = vmatprep.subr.bf16.mxu0 0
        %1516 = vmatpush1.bf16.msra.mxu0 0
        %1517 = vmatprep.subr.bf16.mxu0 0
        %1518 = vmatpush1.bf16.msra.mxu0 0
        %1519 = vmatprep.subr.bf16.mxu0 0
        %1520 = vmatpush1.bf16.msra.mxu0 0
        %1521 = vmatprep.subr.bf16.mxu0 0
        %1522 = vmatpush1.bf16.msra.mxu0 0
        %1523 = vmatprep.subr.bf16.mxu0 0
        %1524 = vmatpush1.bf16.msra.mxu0 0
        %1525 = vmatprep.subr.bf16.mxu0 0
        %1526 = vmatpush1.bf16.msra.mxu0 0
        %1527 = vmatprep.subr.bf16.mxu0 0
        %1528 = vmatpush1.bf16.msra.mxu0 0
        %1529 = vmatprep.subr.bf16.mxu0 0
        %1530 = vmatpush1.bf16.msra.mxu0 0
        %1531 = vmatprep.subr.bf16.mxu0 0
        %1532 = vmatpush1.bf16.msra.mxu0 0
        %1533 = vmatprep.subr.bf16.mxu0 0
        %1534 = vmatpush1.bf16.msra.mxu0 0
        %1535 = vmatprep.subr.bf16.mxu0 0
        %1536 = vmatpush1.bf16.msra.mxu0 0
        %1537 = vmatprep.subr.bf16.mxu0 0
        %1538 = vmatpush1.bf16.msra.mxu0 0
        %1539 = vmatprep.mubr.bf16.mxu0 0
        %1540 = vmatmul.mubr.bf16.gmra.mrb[0].mxu0 %v1505
        %v1541 = vpop.f32.mrb[0].mxu0
        %v1542 = vadd.f32 %v1490, %v1541
        %v1543 = vpop.f32.mrb[0].mxu0
        %v1544 = vpop.f32.mrb[0].mxu0
        %v1545 = vpop.f32.mrb[0].mxu0
        %1546 = vdwg.mxu0
        %v1547 = vsub.f32 0.0, %v1542
        %v1548 = vmul.f32 %v1547, 1.442695
        %v1549 = vpow.pop %v1548
        %v1550 = vadd.f32 %v1549, 1.0
        %v1551 = vrcp.pop %v1550
        %v1552 = vmul.f32 1.0, %v1551
        %v1553 = vmul.f32 %v1542, %v1552
        %v1554 = vld [vmem:[%s17] sm:$0xf]
        %v1555 = vld [vmem:[%s17 + $0x4] sm:$0xf]
        %v1556 = vld [vmem:[%s17 + $0x8] sm:$0xf]
        %v1557 = vld [vmem:[%s17 + $0xc] sm:$0xf]
        %v1558 = vld [vmem:[%s17 + $0x10] sm:$0xf]
        %v1559 = vld [vmem:[%s17 + $0x14] sm:$0xf]
        %v1560 = vld [vmem:[%s17 + $0x18] sm:$0xf]
        %v1561 = vld [vmem:[%s17 + $0x1c] sm:$0xf]
        %v1562 = vpack.c.bf16 %v1553, %v1553
        %v1563 = vld [vmem:[#allocation14] sm:$0x1]
        %v1565 = vlaneseq
        %v1566 = vshrl.u32 %v1565, 7
        %v1567 = vsub.s32 0, %v1566
        %v1568 = vrot.slane %v1563, %v1567
        %v1578 = vunpack.c.l.b16 %v1554
        %v1579 = vunpack.c.l.b16 %v1555
        %v1580 = vunpack.c.l.b16 %v1556
        %v1581 = vunpack.c.l.b16 %v1557
        %v1582 = vunpack.c.l.b16 %v1558
        %v1583 = vunpack.c.l.b16 %v1559
        %v1584 = vunpack.c.l.b16 %v1560
        %v1585 = vunpack.c.l.b16 %v1561
        %v1586 = vpack.c.b16 %v1579, %v1578
        %v1587 = vpack.c.b16 %v1581, %v1580
        %v1588 = vpack.c.b16 %v1583, %v1582
        %v1589 = vpack.c.b16 %v1585, %v1584
        %vm1594 = vcmask 523264
        %v1596 = vsel %vm1594, %v1562, 0
        %1598 = vmatprep.subr.bf16.mxu0 0
        %1599 = vmatpush1.bf16.msra.mxu0 %v1586
        %1600 = vmatprep.subr.bf16.mxu0 0
        %1601 = vmatpush1.bf16.msra.mxu0 %v1587
        %1602 = vmatprep.subr.bf16.mxu0 0
        %1603 = vmatpush1.bf16.msra.mxu0 %v1588
        %1604 = vmatprep.subr.bf16.mxu0 0
        %1605 = vmatpush1.bf16.msra.mxu0 %v1589
        %1606 = vmatprep.subr.bf16.mxu0 0
        %1607 = vmatpush1.bf16.msra.mxu0 0
        %1608 = vmatprep.subr.bf16.mxu0 0
        %1609 = vmatpush1.bf16.msra.mxu0 0
        %1610 = vmatprep.subr.bf16.mxu0 0
        %1611 = vmatpush1.bf16.msra.mxu0 0
        %1612 = vmatprep.subr.bf16.mxu0 0
        %1613 = vmatpush1.bf16.msra.mxu0 0
        %1614 = vmatprep.subr.bf16.mxu0 0
        %1615 = vmatpush1.bf16.msra.mxu0 0
        %1616 = vmatprep.subr.bf16.mxu0 0
        %1617 = vmatpush1.bf16.msra.mxu0 0
        %1618 = vmatprep.subr.bf16.mxu0 0
        %1619 = vmatpush1.bf16.msra.mxu0 0
        %1620 = vmatprep.subr.bf16.mxu0 0
        %1621 = vmatpush1.bf16.msra.mxu0 0
        %1622 = vmatprep.subr.bf16.mxu0 0
        %1623 = vmatpush1.bf16.msra.mxu0 0
        %1624 = vmatprep.subr.bf16.mxu0 0
        %1625 = vmatpush1.bf16.msra.mxu0 0
        %1626 = vmatprep.subr.bf16.mxu0 0
        %1627 = vmatpush1.bf16.msra.mxu0 0
        %1628 = vmatprep.subr.bf16.mxu0 0
        %1629 = vmatpush1.bf16.msra.mxu0 0
        %1630 = vmatprep.mubr.bf16.mxu0 0
        %1631 = vmatmul.mubr.bf16.gmra.mrb[0].mxu0 %v1596
        %v1632 = vpop.f32.mrb[0].mxu0
        %v1633 = vadd.f32 %v1568, %v1632
        %v1634 = vpop.f32.mrb[0].mxu0
        %v1635 = vpop.f32.mrb[0].mxu0
        %v1636 = vpop.f32.mrb[0].mxu0
        %1637 = vdwg.mxu0
        %v1638 = vmul.f32 %v1633, 0.5
        %v1639 = vadd.f32 %v1444, %v1638
        %v1640 = vld [vmem:[#allocation16] sm:$0x1]
        %v1641 = vld [vmem:[#allocation17] sm:$0x1]
        %v1642 = vsel %vm1451, %v1639, 0.0
        %1643 = vadd.xlane.f32.xlu0 %v1642
        %v1644 = vpop.xlane.xlu0 %1643
        %v1645 = vmul.f32 %v1644, %v1455
        %v1646 = vsub.f32 %v1639, %v1645
        %v1647 = vmul.f32 %v1646, %v1646
        %v1648 = vsel %vm1451, %v1647, 0.0
        %1649 = vadd.xlane.f32.xlu0 %v1648
        %v1650 = vpop.xlane.xlu0 %1649
        %v1651 = vmul.f32 %v1650, %v1455
        %v1652 = vadd.f32 %v1651, 1e-05
        %v1653 = vrsqrt.pop %v1652
        %v1654 = vmul.f32 %v1646, %v1653
        %v1656 = vlaneseq
        %v1657 = vshrl.u32 %v1656, 7
        %v1658 = vsub.s32 0, %v1657
        %v1659 = vrot.slane %v1640, %v1658
        %v1661 = vmul.f32 %v1654, %v1659
        %v1663 = vlaneseq
        %v1664 = vshrl.u32 %v1663, 7
        %v1665 = vsub.s32 0, %v1664
        %v1666 = vrot.slane %v1641, %v1665
        %v1668 = vadd.f32 %v1661, %v1666
        %v1669 = vld [vmem:[%s25] sm:$0xf]
        %v1670 = vld [vmem:[%s25 + $0x4] sm:$0xf]
        %v1671 = vld [vmem:[%s25 + $0x8] sm:$0xf]
        %v1672 = vld [vmem:[%s25 + $0xc] sm:$0xf]
        %v1673 = vpack.c.bf16 %v1668, %v1668
        %v1674 = vld [vmem:[#allocation19] sm:$0x1]
        %v1676 = vlaneseq
        %v1677 = vshrl.u32 %v1676, 7
        %v1678 = vsub.s32 0, %v1677
        %v1679 = vrot.slane %v1674, %v1678
        %v1685 = vunpack.c.l.b16 %v1669
        %v1686 = vunpack.c.l.b16 %v1670
        %v1687 = vunpack.c.l.b16 %v1671
        %v1688 = vunpack.c.l.b16 %v1672
        %v1689 = vpack.c.b16 %v1686, %v1685
        %v1690 = vpack.c.b16 %v1688, %v1687
        %v1694 = vsel %vm1451, %v1673, 0
        %1696 = vmatprep.subr.bf16.mxu0 0
        %1697 = vmatpush1.bf16.msra.mxu0 %v1689
        %1698 = vmatprep.subr.bf16.mxu0 0
        %1699 = vmatpush1.bf16.msra.mxu0 %v1690
        %1700 = vmatprep.subr.bf16.mxu0 0
        %1701 = vmatpush1.bf16.msra.mxu0 0
        %1702 = vmatprep.subr.bf16.mxu0 0
        %1703 = vmatpush1.bf16.msra.mxu0 0
        %1704 = vmatprep.subr.bf16.mxu0 0
        %1705 = vmatpush1.bf16.msra.mxu0 0
        %1706 = vmatprep.subr.bf16.mxu0 0
        %1707 = vmatpush1.bf16.msra.mxu0 0
        %1708 = vmatprep.subr.bf16.mxu0 0
        %1709 = vmatpush1.bf16.msra.mxu0 0
        %1710 = vmatprep.subr.bf16.mxu0 0
        %1711 = vmatpush1.bf16.msra.mxu0 0
        %1712 = vmatprep.subr.bf16.mxu0 0
        %1713 = vmatpush1.bf16.msra.mxu0 0
        %1714 = vmatprep.subr.bf16.mxu0 0
        %1715 = vmatpush1.bf16.msra.mxu0 0
        %1716 = vmatprep.subr.bf16.mxu0 0
        %1717 = vmatpush1.bf16.msra.mxu0 0
        %1718 = vmatprep.subr.bf16.mxu0 0
        %1719 = vmatpush1.bf16.msra.mxu0 0
        %1720 = vmatprep.subr.bf16.mxu0 0
        %1721 = vmatpush1.bf16.msra.mxu0 0
        %1722 = vmatprep.subr.bf16.mxu0 0
        %1723 = vmatpush1.bf16.msra.mxu0 0
        %1724 = vmatprep.subr.bf16.mxu0 0
        %1725 = vmatpush1.bf16.msra.mxu0 0
        %1726 = vmatprep.subr.bf16.mxu0 0
        %1727 = vmatpush1.bf16.msra.mxu0 0
        %1728 = vmatprep.mubr.bf16.mxu0 0
        %1729 = vmatmul.mubr.bf16.gmra.mrb[0].mxu0 %v1694
        %v1730 = vpop.f32.mrb[0].mxu0
        %v1731 = vadd.f32 %v1679, %v1730
        %v1732 = vpop.f32.mrb[0].mxu0
        %v1733 = vpop.f32.mrb[0].mxu0
        %v1734 = vpop.f32.mrb[0].mxu0
        %1735 = vdwg.mxu0
        %1737 = vrot.lane.b32.xlu0 %v1731, 112
        %v1738 = vpop.permute.xlu0 %1737
        %v1740 = vpack.c.bf16 %v1731, %v1731
        %v1741 = vpack.c.bf16 %v1738, %v1738
        %1743 = vrot.lane.b32.xlu0 %v1740, 96
        %v1744 = vpop.permute.xlu0 %1743
        %vm1745 = vcmask 130048
        %v1747 = vsel %vm1745, %v1740, 0
        %v1750 = vsel %vm1745, %v1744, 0
        %1752 = vmatprep.subr.bf16.mxu0 0
        %1753 = vmatpush1.bf16.xpose.msra.mxu0 %v1750
        %1754 = vmatprep.subr.bf16.mxu0 0
        %1755 = vmatpush1.bf16.xpose.msra.mxu0 0
        %1756 = vmatprep.subr.bf16.mxu0 0
        %1757 = vmatpush1.bf16.xpose.msra.mxu0 0
        %1758 = vmatprep.subr.bf16.mxu0 0
        %1759 = vmatpush1.bf16.xpose.msra.mxu0 0
        %1760 = vmatprep.subr.bf16.mxu0 0
        %1761 = vmatpush1.bf16.xpose.msra.mxu0 0
        %1762 = vmatprep.subr.bf16.mxu0 0
        %1763 = vmatpush1.bf16.xpose.msra.mxu0 0
        %1764 = vmatprep.subr.bf16.mxu0 0
        %1765 = vmatpush1.bf16.xpose.msra.mxu0 0
        %1766 = vmatprep.subr.bf16.mxu0 0
        %1767 = vmatpush1.bf16.xpose.msra.mxu0 0
        %1768 = vmatprep.subr.bf16.mxu0 0
        %1769 = vmatpush1.bf16.xpose.msra.mxu0 0
        %1770 = vmatprep.subr.bf16.mxu0 0
        %1771 = vmatpush1.bf16.xpose.msra.mxu0 0
        %1772 = vmatprep.subr.bf16.mxu0 0
        %1773 = vmatpush1.bf16.xpose.msra.mxu0 0
        %1774 = vmatprep.subr.bf16.mxu0 0
        %1775 = vmatpush1.bf16.xpose.msra.mxu0 0
        %1776 = vmatprep.subr.bf16.mxu0 0
        %1777 = vmatpush1.bf16.xpose.msra.mxu0 0
        %1778 = vmatprep.subr.bf16.mxu0 0
        %1779 = vmatpush1.bf16.xpose.msra.mxu0 0
        %1780 = vmatprep.subr.bf16.mxu0 0
        %1781 = vmatpush1.bf16.xpose.msra.mxu0 0
        %1782 = vmatprep.subr.bf16.mxu0 0
        %1783 = vmatpush1.bf16.xpose.msra.mxu0 0
        %1784 = vmatprep.mubr.bf16.mxu0 0
        %1785 = vmatmul.mubr.bf16.gmra.mrb[0].mxu0 %v1747
        %v1786 = vpop.f32.mrb[0].mxu0
        %v1787 = vadd.f32 0.0, %v1786
        %v1788 = vpop.f32.mrb[0].mxu0
        %v1789 = vpop.f32.mrb[0].mxu0
        %v1790 = vpop.f32.mrb[0].mxu0
        %1791 = vdwg.mxu0
        %1793 = vrot.lane.b32.xlu0 %v1741, 96
        %v1794 = vpop.permute.xlu0 %1793
        %v1796 = vsel %vm1745, %v1741, 0
        %v1799 = vsel %vm1745, %v1794, 0
        %1801 = vmatprep.subr.bf16.mxu0 0
        %1802 = vmatpush1.bf16.xpose.msra.mxu0 %v1799
        %1803 = vmatprep.subr.bf16.mxu0 0
        %1804 = vmatpush1.bf16.xpose.msra.mxu0 0
        %1805 = vmatprep.subr.bf16.mxu0 0
        %1806 = vmatpush1.bf16.xpose.msra.mxu0 0
        %1807 = vmatprep.subr.bf16.mxu0 0
        %1808 = vmatpush1.bf16.xpose.msra.mxu0 0
        %1809 = vmatprep.subr.bf16.mxu0 0
        %1810 = vmatpush1.bf16.xpose.msra.mxu0 0
        %1811 = vmatprep.subr.bf16.mxu0 0
        %1812 = vmatpush1.bf16.xpose.msra.mxu0 0
        %1813 = vmatprep.subr.bf16.mxu0 0
        %1814 = vmatpush1.bf16.xpose.msra.mxu0 0
        %1815 = vmatprep.subr.bf16.mxu0 0
        %1816 = vmatpush1.bf16.xpose.msra.mxu0 0
        %1817 = vmatprep.subr.bf16.mxu0 0
        %1818 = vmatpush1.bf16.xpose.msra.mxu0 0
        %1819 = vmatprep.subr.bf16.mxu0 0
        %1820 = vmatpush1.bf16.xpose.msra.mxu0 0
        %1821 = vmatprep.subr.bf16.mxu0 0
        %1822 = vmatpush1.bf16.xpose.msra.mxu0 0
        %1823 = vmatprep.subr.bf16.mxu0 0
        %1824 = vmatpush1.bf16.xpose.msra.mxu0 0
        %1825 = vmatprep.subr.bf16.mxu0 0
        %1826 = vmatpush1.bf16.xpose.msra.mxu0 0
        %1827 = vmatprep.subr.bf16.mxu0 0
        %1828 = vmatpush1.bf16.xpose.msra.mxu0 0
        %1829 = vmatprep.subr.bf16.mxu0 0
        %1830 = vmatpush1.bf16.xpose.msra.mxu0 0
        %1831 = vmatprep.subr.bf16.mxu0 0
        %1832 = vmatpush1.bf16.xpose.msra.mxu0 0
        %1833 = vmatprep.mubr.bf16.mxu0 0
        %1834 = vmatmul.mubr.bf16.gmra.mrb[0].mxu0 %v1796
        %v1835 = vpop.f32.mrb[0].mxu0
        %v1836 = vadd.f32 0.0, %v1835
        %v1837 = vpop.f32.mrb[0].mxu0
        %v1838 = vpop.f32.mrb[0].mxu0
        %v1839 = vpop.f32.mrb[0].mxu0
        %1840 = vdwg.mxu0
        %v1841 = vmul.f32 %v1787, 0.25
        %v1842 = vmul.f32 %v1836, 0.25
        %v1843 = vsel %vm1372, 1, 0
        %vm1844 = vcmp.eq.s32.totalorder %v1843, 1
        %v1845 = vsel %vm1844, %v1841, -1e+30
        %v1846 = vsel %vm1844, %v1842, -1e+30
        %vm1847 = vcmask 64512
        %v1848 = vsel %vm1847, %v1845, -inf
        %1849 = vmax.xlane.f32.xlu0 %v1848
        %v1850 = vpop.xlane.xlu0 %1849
        %v1851 = vsel %vm1847, %v1846, -inf
        %1852 = vmax.xlane.f32.xlu0 %v1851
        %v1853 = vpop.xlane.xlu0 %1852
        %v1854 = vsub.f32 %v1845, %v1850
        %v1855 = vsub.f32 %v1846, %v1853
        %v1856 = vmul.f32 %v1854, 1.442695
        %v1857 = vpow.pop %v1856
        %v1858 = vmul.f32 %v1855, 1.442695
        %v1859 = vpow.pop %v1858
        %v1860 = vsel %vm1847, %v1857, 0.0
        %1861 = vadd.xlane.f32.xlu0 %v1860
        %v1862 = vpop.xlane.xlu0 %1861
        %v1863 = vsel %vm1847, %v1859, 0.0
        %1864 = vadd.xlane.f32.xlu0 %v1863
        %v1865 = vpop.xlane.xlu0 %1864
        %v1866 = vrcp.pop %v1862
        %v1867 = vrcp.pop %v1865
        %v1868 = vmul.f32 %v1857, %v1866
        %v1869 = vmul.f32 %v1859, %v1867
        %v1870 = vpack.c.bf16 %v1868, %v1868
        %v1871 = vpack.c.bf16 %v1869, %v1869
        %1872 = vrot.lane.b32.xlu0 %v1740, 64
        %v1873 = vpop.permute.xlu0 %1872
        %v1875 = vsel %vm1847, %v1870, 0
        %v1878 = vsel %vm1405, %v1873, 0
        %1880 = vmatprep.subr.bf16.mxu0 0
        %1881 = vmatpush1.bf16.msra.mxu0 %v1878
        %1882 = vmatprep.subr.bf16.mxu0 0
        %1883 = vmatpush1.bf16.msra.mxu0 0
        %1884 = vmatprep.subr.bf16.mxu0 0
        %1885 = vmatpush1.bf16.msra.mxu0 0
        %1886 = vmatprep.subr.bf16.mxu0 0
        %1887 = vmatpush1.bf16.msra.mxu0 0
        %1888 = vmatprep.subr.bf16.mxu0 0
        %1889 = vmatpush1.bf16.msra.mxu0 0
        %1890 = vmatprep.subr.bf16.mxu0 0
        %1891 = vmatpush1.bf16.msra.mxu0 0
        %1892 = vmatprep.subr.bf16.mxu0 0
        %1893 = vmatpush1.bf16.msra.mxu0 0
        %1894 = vmatprep.subr.bf16.mxu0 0
        %1895 = vmatpush1.bf16.msra.mxu0 0
        %1896 = vmatprep.subr.bf16.mxu0 0
        %1897 = vmatpush1.bf16.msra.mxu0 0
        %1898 = vmatprep.subr.bf16.mxu0 0
        %1899 = vmatpush1.bf16.msra.mxu0 0
        %1900 = vmatprep.subr.bf16.mxu0 0
        %1901 = vmatpush1.bf16.msra.mxu0 0
        %1902 = vmatprep.subr.bf16.mxu0 0
        %1903 = vmatpush1.bf16.msra.mxu0 0
        %1904 = vmatprep.subr.bf16.mxu0 0
        %1905 = vmatpush1.bf16.msra.mxu0 0
        %1906 = vmatprep.subr.bf16.mxu0 0
        %1907 = vmatpush1.bf16.msra.mxu0 0
        %1908 = vmatprep.subr.bf16.mxu0 0
        %1909 = vmatpush1.bf16.msra.mxu0 0
        %1910 = vmatprep.subr.bf16.mxu0 0
        %1911 = vmatpush1.bf16.msra.mxu0 0
        %1912 = vmatprep.mubr.bf16.mxu0 0
        %1913 = vmatmul.mubr.bf16.gmra.mrb[0].mxu0 %v1875
        %v1914 = vpop.f32.mrb[0].mxu0
        %v1915 = vadd.f32 0.0, %v1914
        %v1916 = vpop.f32.mrb[0].mxu0
        %v1917 = vpop.f32.mrb[0].mxu0
        %v1918 = vpop.f32.mrb[0].mxu0
        %1919 = vdwg.mxu0
        %1920 = vrot.lane.b32.xlu0 %v1741, 64
        %v1921 = vpop.permute.xlu0 %1920
        %v1923 = vsel %vm1847, %v1871, 0
        %v1926 = vsel %vm1405, %v1921, 0
        %1928 = vmatprep.subr.bf16.mxu0 0
        %1929 = vmatpush1.bf16.msra.mxu0 %v1926
        %1930 = vmatprep.subr.bf16.mxu0 0
        %1931 = vmatpush1.bf16.msra.mxu0 0
        %1932 = vmatprep.subr.bf16.mxu0 0
        %1933 = vmatpush1.bf16.msra.mxu0 0
        %1934 = vmatprep.subr.bf16.mxu0 0
        %1935 = vmatpush1.bf16.msra.mxu0 0
        %1936 = vmatprep.subr.bf16.mxu0 0
        %1937 = vmatpush1.bf16.msra.mxu0 0
        %1938 = vmatprep.subr.bf16.mxu0 0
        %1939 = vmatpush1.bf16.msra.mxu0 0
        %1940 = vmatprep.subr.bf16.mxu0 0
        %1941 = vmatpush1.bf16.msra.mxu0 0
        %1942 = vmatprep.subr.bf16.mxu0 0
        %1943 = vmatpush1.bf16.msra.mxu0 0
        %1944 = vmatprep.subr.bf16.mxu0 0
        %1945 = vmatpush1.bf16.msra.mxu0 0
        %1946 = vmatprep.subr.bf16.mxu0 0
        %1947 = vmatpush1.bf16.msra.mxu0 0
        %1948 = vmatprep.subr.bf16.mxu0 0
        %1949 = vmatpush1.bf16.msra.mxu0 0
        %1950 = vmatprep.subr.bf16.mxu0 0
        %1951 = vmatpush1.bf16.msra.mxu0 0
        %1952 = vmatprep.subr.bf16.mxu0 0
        %1953 = vmatpush1.bf16.msra.mxu0 0
        %1954 = vmatprep.subr.bf16.mxu0 0
        %1955 = vmatpush1.bf16.msra.mxu0 0
        %1956 = vmatprep.subr.bf16.mxu0 0
        %1957 = vmatpush1.bf16.msra.mxu0 0
        %1958 = vmatprep.subr.bf16.mxu0 0
        %1959 = vmatpush1.bf16.msra.mxu0 0
        %1960 = vmatprep.mubr.bf16.mxu0 0
        %1961 = vmatmul.mubr.bf16.gmra.mrb[0].mxu0 %v1923
        %v1962 = vpop.f32.mrb[0].mxu0
        %v1963 = vadd.f32 0.0, %v1962
        %v1964 = vpop.f32.mrb[0].mxu0
        %v1965 = vpop.f32.mrb[0].mxu0
        %v1966 = vpop.f32.mrb[0].mxu0
        %1967 = vdwg.mxu0
        %v1968 = vld [vmem:[%s29] sm:$0xf]
        %v1969 = vld [vmem:[%s29 + $0x4] sm:$0xf]
        %v1970 = vld [vmem:[%s29 + $0x8] sm:$0xf]
        %v1971 = vld [vmem:[%s29 + $0xc] sm:$0xf]
        %v1972 = vld [vmem:[#allocation20] sm:$0x1]
        %v1973 = vpack.c.bf16 %v1915, %v1915
        %v1976 = vunpack.c.l.b16 %v1968
        %v1977 = vunpack.c.l.b16 %v1969
        %v1978 = vpack.c.b16 %v1977, %v1976
        %v1981 = vsel %vm1745, %v1973, 0
        %1983 = vmatprep.subr.bf16.mxu0 0
        %1984 = vmatpush1.bf16.msra.mxu0 %v1978
        %1985 = vmatprep.subr.bf16.mxu0 0
        %1986 = vmatpush1.bf16.msra.mxu0 0
        %1987 = vmatprep.subr.bf16.mxu0 0
        %1988 = vmatpush1.bf16.msra.mxu0 0
        %1989 = vmatprep.subr.bf16.mxu0 0
        %1990 = vmatpush1.bf16.msra.mxu0 0
        %1991 = vmatprep.subr.bf16.mxu0 0
        %1992 = vmatpush1.bf16.msra.mxu0 0
        %1993 = vmatprep.subr.bf16.mxu0 0
        %1994 = vmatpush1.bf16.msra.mxu0 0
        %1995 = vmatprep.subr.bf16.mxu0 0
        %1996 = vmatpush1.bf16.msra.mxu0 0
        %1997 = vmatprep.subr.bf16.mxu0 0
        %1998 = vmatpush1.bf16.msra.mxu0 0
        %1999 = vmatprep.subr.bf16.mxu0 0
        %2000 = vmatpush1.bf16.msra.mxu0 0
        %2001 = vmatprep.subr.bf16.mxu0 0
        %2002 = vmatpush1.bf16.msra.mxu0 0
        %2003 = vmatprep.subr.bf16.mxu0 0
        %2004 = vmatpush1.bf16.msra.mxu0 0
        %2005 = vmatprep.subr.bf16.mxu0 0
        %2006 = vmatpush1.bf16.msra.mxu0 0
        %2007 = vmatprep.subr.bf16.mxu0 0
        %2008 = vmatpush1.bf16.msra.mxu0 0
        %2009 = vmatprep.subr.bf16.mxu0 0
        %2010 = vmatpush1.bf16.msra.mxu0 0
        %2011 = vmatprep.subr.bf16.mxu0 0
        %2012 = vmatpush1.bf16.msra.mxu0 0
        %2013 = vmatprep.subr.bf16.mxu0 0
        %2014 = vmatpush1.bf16.msra.mxu0 0
        %2015 = vmatprep.mubr.bf16.mxu0 0
        %2016 = vmatmul.mubr.bf16.gmra.mrb[0].mxu0 %v1981
        %v2017 = vpop.f32.mrb[0].mxu0
        %v2018 = vadd.f32 0.0, %v2017
        %v2019 = vpop.f32.mrb[0].mxu0
        %v2020 = vpop.f32.mrb[0].mxu0
        %v2021 = vpop.f32.mrb[0].mxu0
        %2022 = vdwg.mxu0
        %v2024 = vlaneseq
        %v2025 = vshrl.u32 %v2024, 7
        %v2026 = vsub.s32 0, %v2025
        %v2027 = vrot.slane %v1972, %v2026
        %v2029 = vadd.f32 %v2027, %v2018
        %v2030 = vpack.c.bf16 %v1963, %v1963
        %v2033 = vunpack.c.l.b16 %v1970
        %v2034 = vunpack.c.l.b16 %v1971
        %v2035 = vpack.c.b16 %v2034, %v2033
        %v2038 = vsel %vm1745, %v2030, 0
        %2040 = vmatprep.subr.bf16.mxu0 0
        %2041 = vmatpush1.bf16.msra.mxu0 %v2035
        %2042 = vmatprep.subr.bf16.mxu0 0
        %2043 = vmatpush1.bf16.msra.mxu0 0
        %2044 = vmatprep.subr.bf16.mxu0 0
        %2045 = vmatpush1.bf16.msra.mxu0 0
        %2046 = vmatprep.subr.bf16.mxu0 0
        %2047 = vmatpush1.bf16.msra.mxu0 0
        %2048 = vmatprep.subr.bf16.mxu0 0
        %2049 = vmatpush1.bf16.msra.mxu0 0
        %2050 = vmatprep.subr.bf16.mxu0 0
        %2051 = vmatpush1.bf16.msra.mxu0 0
        %2052 = vmatprep.subr.bf16.mxu0 0
        %2053 = vmatpush1.bf16.msra.mxu0 0
        %2054 = vmatprep.subr.bf16.mxu0 0
        %2055 = vmatpush1.bf16.msra.mxu0 0
        %2056 = vmatprep.subr.bf16.mxu0 0
        %2057 = vmatpush1.bf16.msra.mxu0 0
        %2058 = vmatprep.subr.bf16.mxu0 0
        %2059 = vmatpush1.bf16.msra.mxu0 0
        %2060 = vmatprep.subr.bf16.mxu0 0
        %2061 = vmatpush1.bf16.msra.mxu0 0
        %2062 = vmatprep.subr.bf16.mxu0 0
        %2063 = vmatpush1.bf16.msra.mxu0 0
        %2064 = vmatprep.subr.bf16.mxu0 0
        %2065 = vmatpush1.bf16.msra.mxu0 0
        %2066 = vmatprep.subr.bf16.mxu0 0
        %2067 = vmatpush1.bf16.msra.mxu0 0
        %2068 = vmatprep.subr.bf16.mxu0 0
        %2069 = vmatpush1.bf16.msra.mxu0 0
        %2070 = vmatprep.subr.bf16.mxu0 0
        %2071 = vmatpush1.bf16.msra.mxu0 0
        %2072 = vmatprep.mubr.bf16.mxu0 0
        %2073 = vmatmul.mubr.bf16.gmra.mrb[0].mxu0 %v2038
        %v2074 = vpop.f32.mrb[0].mxu0
        %v2075 = vadd.f32 0.0, %v2074
        %v2076 = vpop.f32.mrb[0].mxu0
        %v2077 = vpop.f32.mrb[0].mxu0
        %v2078 = vpop.f32.mrb[0].mxu0
        %2079 = vdwg.mxu0
        %v2080 = vadd.f32 %v2029, %v2075
        %v2081 = vadd.f32 %v1639, %v2080
        %v2082 = vld [vmem:[#allocation22] sm:$0x1]
        %v2083 = vld [vmem:[#allocation23] sm:$0x1]
        %v2084 = vsel %vm1451, %v2081, 0.0
        %2085 = vadd.xlane.f32.xlu0 %v2084
        %v2086 = vpop.xlane.xlu0 %2085
        %v2087 = vmul.f32 %v2086, %v1455
        %v2088 = vsub.f32 %v2081, %v2087
        %v2089 = vmul.f32 %v2088, %v2088
        %v2090 = vsel %vm1451, %v2089, 0.0
        %2091 = vadd.xlane.f32.xlu0 %v2090
        %v2092 = vpop.xlane.xlu0 %2091
        %v2093 = vmul.f32 %v2092, %v1455
        %v2094 = vadd.f32 %v2093, 1e-05
        %v2095 = vrsqrt.pop %v2094
        %v2096 = vmul.f32 %v2088, %v2095
        %v2098 = vlaneseq
        %v2099 = vshrl.u32 %v2098, 7
        %v2100 = vsub.s32 0, %v2099
        %v2101 = vrot.slane %v2082, %v2100
        %v2103 = vmul.f32 %v2096, %v2101
        %v2105 = vlaneseq
        %v2106 = vshrl.u32 %v2105, 7
        %v2107 = vsub.s32 0, %v2106
        %v2108 = vrot.slane %v2083, %v2107
        %v2110 = vadd.f32 %v2103, %v2108
        %v2111 = vld [vmem:[%s37] sm:$0xf]
        %v2112 = vld [vmem:[%s37 + $0x4] sm:$0xf]
        %v2113 = vld [vmem:[%s37 + $0x8] sm:$0xf]
        %v2114 = vld [vmem:[%s37 + $0xc] sm:$0xf]
        %v2115 = vpack.c.bf16 %v2110, %v2110
        %v2116 = vld [vmem:[#allocation25] sm:$0x1]
        %v2118 = vlaneseq
        %v2119 = vshrl.u32 %v2118, 7
        %v2120 = vsub.s32 0, %v2119
        %v2121 = vrot.slane %v2116, %v2120
        %v2127 = vunpack.c.l.b16 %v2111
        %v2128 = vunpack.c.l.b16 %v2112
        %v2129 = vunpack.c.l.b16 %v2113
        %v2130 = vunpack.c.l.b16 %v2114
        %v2131 = vpack.c.b16 %v2128, %v2127
        %v2132 = vpack.c.b16 %v2130, %v2129
        %v2136 = vsel %vm1451, %v2115, 0
        %2138 = vmatprep.subr.bf16.mxu0 0
        %2139 = vmatpush1.bf16.msra.mxu0 %v2131
        %2140 = vmatprep.subr.bf16.mxu0 0
        %2141 = vmatpush1.bf16.msra.mxu0 %v2132
        %2142 = vmatprep.subr.bf16.mxu0 0
        %2143 = vmatpush1.bf16.msra.mxu0 0
        %2144 = vmatprep.subr.bf16.mxu0 0
        %2145 = vmatpush1.bf16.msra.mxu0 0
        %2146 = vmatprep.subr.bf16.mxu0 0
        %2147 = vmatpush1.bf16.msra.mxu0 0
        %2148 = vmatprep.subr.bf16.mxu0 0
        %2149 = vmatpush1.bf16.msra.mxu0 0
        %2150 = vmatprep.subr.bf16.mxu0 0
        %2151 = vmatpush1.bf16.msra.mxu0 0
        %2152 = vmatprep.subr.bf16.mxu0 0
        %2153 = vmatpush1.bf16.msra.mxu0 0
        %2154 = vmatprep.subr.bf16.mxu0 0
        %2155 = vmatpush1.bf16.msra.mxu0 0
        %2156 = vmatprep.subr.bf16.mxu0 0
        %2157 = vmatpush1.bf16.msra.mxu0 0
        %2158 = vmatprep.subr.bf16.mxu0 0
        %2159 = vmatpush1.bf16.msra.mxu0 0
        %2160 = vmatprep.subr.bf16.mxu0 0
        %2161 = vmatpush1.bf16.msra.mxu0 0
        %2162 = vmatprep.subr.bf16.mxu0 0
        %2163 = vmatpush1.bf16.msra.mxu0 0
        %2164 = vmatprep.subr.bf16.mxu0 0
        %2165 = vmatpush1.bf16.msra.mxu0 0
        %2166 = vmatprep.subr.bf16.mxu0 0
        %2167 = vmatpush1.bf16.msra.mxu0 0
        %2168 = vmatprep.subr.bf16.mxu0 0
        %2169 = vmatpush1.bf16.msra.mxu0 0
        %2170 = vmatprep.mubr.bf16.mxu0 0
        %2171 = vmatmul.mubr.bf16.gmra.mrb[0].mxu0 %v2136
        %v2172 = vpop.f32.mrb[0].mxu0
        %v2173 = vadd.f32 %v2121, %v2172
        %v2174 = vpop.f32.mrb[0].mxu0
        %v2175 = vpop.f32.mrb[0].mxu0
        %v2176 = vpop.f32.mrb[0].mxu0
        %2177 = vdwg.mxu0
        %v2178 = vsub.f32 0.0, %v2173
        %v2179 = vmul.f32 %v2178, 1.442695
        %v2180 = vpow.pop %v2179
        %v2181 = vadd.f32 %v2180, 1.0
        %v2182 = vrcp.pop %v2181
        %v2183 = vmul.f32 1.0, %v2182
        %2185 = vrot.lane.b32.xlu0 %v2183, 96
        %v2186 = vpop.permute.xlu0 %2185
        %v2188 = vmul.f32 %v2173, %v2186
        %v2190 = vrot.slane %v2188, 7
        %vm2192 = vcmask 1040384
        %v2193 = vsel %vm2192, 0.0, %v2190
        %v2194 = vsel %vm2192, %v2190, 0.0
        %v2195 = vld [vmem:[%s41] sm:$0x7]
        %v2196 = vlaneseq
        %v2197 = vshrl.u32 %v2196, 7
        %v2198 = vsub.s32 0, %v2197
        %v2199 = vrot.slane %v2195, %v2198
        %v2200 = vmul.f32 %v2193, %v2199
        %v2201 = vadd.f32 %v2200, 0.0
        %v2202 = vlaneseq
        %v2203 = vshrl.u32 %v2202, 7
        %v2204 = vsub.s32 1, %v2203
        %v2205 = vrot.slane %v2195, %v2204
        %v2206 = vmul.f32 %v2193, %v2205
        %v2207 = vmul.f32 %v2194, %v2205
        %vm2210 = vcmask 1046528
        %v2211 = vrot.slane %v2206, 1
        %v2212 = vrot.slane %v2207, 1
        %v2213 = vsel %vm2210, %v2211, %v2212
        %v2215 = vadd.f32 %v2201, %v2213
        %v2216 = vlaneseq
        %v2217 = vshrl.u32 %v2216, 7
        %v2218 = vsub.s32 2, %v2217
        %v2219 = vrot.slane %v2195, %v2218
        %v2220 = vmul.f32 %v2193, %v2219
        %v2221 = vmul.f32 %v2194, %v2219
        %vm2224 = vcmask 1045504
        %v2225 = vrot.slane %v2220, 2
        %v2226 = vrot.slane %v2221, 2
        %v2227 = vsel %vm2224, %v2225, %v2226
        %v2229 = vadd.f32 %v2215, %v2227
        %v2230 = vld [vmem:[#allocation26] sm:$0x1]
        %v2232 = vlaneseq
        %v2233 = vshrl.u32 %v2232, 7
        %v2234 = vsub.s32 0, %v2233
        %v2235 = vrot.slane %v2230, %v2234
        %v2237 = vadd.f32 %v2229, %v2235
        %v2238 = vld [vmem:[#allocation28] sm:$0x1]
        %v2240 = vlaneseq
        %v2241 = vshrl.u32 %v2240, 7
        %v2242 = vsub.s32 0, %v2241
        %v2243 = vrot.slane %v2238, %v2242
        %v2245 = vmul.f32 %v2237, %v2243
        %v2246 = vld [vmem:[#allocation29] sm:$0x1]
        %v2248 = vlaneseq
        %v2249 = vshrl.u32 %v2248, 7
        %v2250 = vsub.s32 0, %v2249
        %v2251 = vrot.slane %v2246, %v2250
        %v2253 = vadd.f32 %v2245, %v2251
        %v2254 = vsub.f32 0.0, %v2253
        %v2255 = vmul.f32 %v2254, 1.442695
        %v2256 = vpow.pop %v2255
        %v2257 = vadd.f32 %v2256, 1.0
        %v2258 = vrcp.pop %v2257
        %v2259 = vmul.f32 1.0, %v2258
        %v2260 = vmul.f32 %v2253, %v2259
        %v2261 = vld [vmem:[%s49] sm:$0xf]
        %v2262 = vld [vmem:[%s49 + $0x4] sm:$0xf]
        %v2263 = vld [vmem:[%s49 + $0x8] sm:$0xf]
        %v2264 = vld [vmem:[%s49 + $0xc] sm:$0xf]
        %v2265 = vpack.c.bf16 %v2260, %v2260
        %v2266 = vld [vmem:[%s51] sm:$0x1]
        %v2268 = vlaneseq
        %v2269 = vshrl.u32 %v2268, 7
        %v2270 = vsub.s32 0, %v2269
        %v2271 = vrot.slane %v2266, %v2270
        %v2277 = vunpack.c.l.b16 %v2261
        %v2278 = vunpack.c.l.b16 %v2262
        %v2279 = vunpack.c.l.b16 %v2263
        %v2280 = vunpack.c.l.b16 %v2264
        %v2281 = vpack.c.b16 %v2278, %v2277
        %v2282 = vpack.c.b16 %v2280, %v2279
        %v2286 = vsel %vm1451, %v2265, 0
        %2288 = vmatprep.subr.bf16.mxu0 0
        %2289 = vmatpush1.bf16.msra.mxu0 %v2281
        %2290 = vmatprep.subr.bf16.mxu0 0
        %2291 = vmatpush1.bf16.msra.mxu0 %v2282
        %2292 = vmatprep.subr.bf16.mxu0 0
        %2293 = vmatpush1.bf16.msra.mxu0 0
        %2294 = vmatprep.subr.bf16.mxu0 0
        %2295 = vmatpush1.bf16.msra.mxu0 0
        %2296 = vmatprep.subr.bf16.mxu0 0
        %2297 = vmatpush1.bf16.msra.mxu0 0
        %2298 = vmatprep.subr.bf16.mxu0 0
        %2299 = vmatpush1.bf16.msra.mxu0 0
        %2300 = vmatprep.subr.bf16.mxu0 0
        %2301 = vmatpush1.bf16.msra.mxu0 0
        %2302 = vmatprep.subr.bf16.mxu0 0
        %2303 = vmatpush1.bf16.msra.mxu0 0
        %2304 = vmatprep.subr.bf16.mxu0 0
        %2305 = vmatpush1.bf16.msra.mxu0 0
        %2306 = vmatprep.subr.bf16.mxu0 0
        %2307 = vmatpush1.bf16.msra.mxu0 0
        %2308 = vmatprep.subr.bf16.mxu0 0
        %2309 = vmatpush1.bf16.msra.mxu0 0
        %2310 = vmatprep.subr.bf16.mxu0 0
        %2311 = vmatpush1.bf16.msra.mxu0 0
        %2312 = vmatprep.subr.bf16.mxu0 0
        %2313 = vmatpush1.bf16.msra.mxu0 0
        %2314 = vmatprep.subr.bf16.mxu0 0
        %2315 = vmatpush1.bf16.msra.mxu0 0
        %2316 = vmatprep.subr.bf16.mxu0 0
        %2317 = vmatpush1.bf16.msra.mxu0 0
        %2318 = vmatprep.subr.bf16.mxu0 0
        %2319 = vmatpush1.bf16.msra.mxu0 0
        %2320 = vmatprep.mubr.bf16.mxu0 0
        %2321 = vmatmul.mubr.bf16.gmra.mrb[0].mxu0 %v2286
        %v2322 = vpop.f32.mrb[0].mxu0
        %v2323 = vadd.f32 %v2271, %v2322
        %v2324 = vpop.f32.mrb[0].mxu0
        %v2325 = vpop.f32.mrb[0].mxu0
        %v2326 = vpop.f32.mrb[0].mxu0
        %2327 = vdwg.mxu0
        %v2328 = vadd.f32 %v2081, %v2323
        %v2329 = vld [vmem:[%s53] sm:$0x1]
        %v2330 = vld [vmem:[%s55] sm:$0x1]
        %v2331 = vsel %vm1451, %v2328, 0.0
        %2332 = vadd.xlane.f32.xlu0 %v2331
        %v2333 = vpop.xlane.xlu0 %2332
        %v2334 = vmul.f32 %v2333, %v1455
        %v2335 = vsub.f32 %v2328, %v2334
        %v2336 = vmul.f32 %v2335, %v2335
        %v2337 = vsel %vm1451, %v2336, 0.0
        %2338 = vadd.xlane.f32.xlu0 %v2337
        %v2339 = vpop.xlane.xlu0 %2338
        %v2340 = vmul.f32 %v2339, %v1455
        %v2341 = vadd.f32 %v2340, 1e-05
        %v2342 = vrsqrt.pop %v2341
        %v2343 = vmul.f32 %v2335, %v2342
        %v2345 = vlaneseq
        %v2346 = vshrl.u32 %v2345, 7
        %v2347 = vsub.s32 0, %v2346
        %v2348 = vrot.slane %v2329, %v2347
        %v2350 = vmul.f32 %v2343, %v2348
        %v2352 = vlaneseq
        %v2353 = vshrl.u32 %v2352, 7
        %v2354 = vsub.s32 0, %v2353
        %v2355 = vrot.slane %v2330, %v2354
        %v2357 = vadd.f32 %v2350, %v2355
        %v2358 = vld [vmem:[%s57] sm:$0xf]
        %v2359 = vld [vmem:[%s57 + $0x4] sm:$0xf]
        %v2360 = vld [vmem:[%s57 + $0x8] sm:$0xf]
        %v2361 = vld [vmem:[%s57 + $0xc] sm:$0xf]
        %v2362 = vpack.c.bf16 %v2357, %v2357
        %v2363 = vld [vmem:[%s59] sm:$0x1]
        %v2365 = vlaneseq
        %v2366 = vshrl.u32 %v2365, 7
        %v2367 = vsub.s32 0, %v2366
        %v2368 = vrot.slane %v2363, %v2367
        %v2374 = vunpack.c.l.b16 %v2358
        %v2375 = vunpack.c.l.b16 %v2359
        %v2376 = vunpack.c.l.b16 %v2360
        %v2377 = vunpack.c.l.b16 %v2361
        %v2378 = vpack.c.b16 %v2375, %v2374
        %v2379 = vpack.c.b16 %v2377, %v2376
        %v2383 = vsel %vm1451, %v2362, 0
        %2385 = vmatprep.subr.bf16.mxu0 0
        %2386 = vmatpush1.bf16.msra.mxu0 %v2378
        %2387 = vmatprep.subr.bf16.mxu0 0
        %2388 = vmatpush1.bf16.msra.mxu0 %v2379
        %2389 = vmatprep.subr.bf16.mxu0 0
        %2390 = vmatpush1.bf16.msra.mxu0 0
        %2391 = vmatprep.subr.bf16.mxu0 0
        %2392 = vmatpush1.bf16.msra.mxu0 0
        %2393 = vmatprep.subr.bf16.mxu0 0
        %2394 = vmatpush1.bf16.msra.mxu0 0
        %2395 = vmatprep.subr.bf16.mxu0 0
        %2396 = vmatpush1.bf16.msra.mxu0 0
        %2397 = vmatprep.subr.bf16.mxu0 0
        %2398 = vmatpush1.bf16.msra.mxu0 0
        %2399 = vmatprep.subr.bf16.mxu0 0
        %2400 = vmatpush1.bf16.msra.mxu0 0
        %2401 = vmatprep.subr.bf16.mxu0 0
        %2402 = vmatpush1.bf16.msra.mxu0 0
        %2403 = vmatprep.subr.bf16.mxu0 0
        %2404 = vmatpush1.bf16.msra.mxu0 0
        %2405 = vmatprep.subr.bf16.mxu0 0
        %2406 = vmatpush1.bf16.msra.mxu0 0
        %2407 = vmatprep.subr.bf16.mxu0 0
        %2408 = vmatpush1.bf16.msra.mxu0 0
        %2409 = vmatprep.subr.bf16.mxu0 0
        %2410 = vmatpush1.bf16.msra.mxu0 0
        %2411 = vmatprep.subr.bf16.mxu0 0
        %2412 = vmatpush1.bf16.msra.mxu0 0
        %2413 = vmatprep.subr.bf16.mxu0 0
        %2414 = vmatpush1.bf16.msra.mxu0 0
        %2415 = vmatprep.subr.bf16.mxu0 0
        %2416 = vmatpush1.bf16.msra.mxu0 0
        %2417 = vmatprep.mubr.bf16.mxu0 0
        %2418 = vmatmul.mubr.bf16.gmra.mrb[0].mxu0 %v2383
        %v2419 = vpop.f32.mrb[0].mxu0
        %v2420 = vadd.f32 %v2368, %v2419
        %v2421 = vpop.f32.mrb[0].mxu0
        %v2422 = vpop.f32.mrb[0].mxu0
        %v2423 = vpop.f32.mrb[0].mxu0
        %2424 = vdwg.mxu0
        %v2425 = vsub.f32 0.0, %v2420
        %v2426 = vmul.f32 %v2425, 1.442695
        %v2427 = vpow.pop %v2426
        %v2428 = vadd.f32 %v2427, 1.0
        %v2429 = vrcp.pop %v2428
        %v2430 = vmul.f32 1.0, %v2429
        %v2431 = vmul.f32 %v2420, %v2430
        %v2432 = vld [vmem:[%s61] sm:$0xf]
        %v2433 = vld [vmem:[%s61 + $0x4] sm:$0xf]
        %v2434 = vld [vmem:[%s61 + $0x8] sm:$0xf]
        %v2435 = vld [vmem:[%s61 + $0xc] sm:$0xf]
        %v2436 = vld [vmem:[%s61 + $0x10] sm:$0xf]
        %v2437 = vld [vmem:[%s61 + $0x14] sm:$0xf]
        %v2438 = vld [vmem:[%s61 + $0x18] sm:$0xf]
        %v2439 = vld [vmem:[%s61 + $0x1c] sm:$0xf]
        %v2440 = vpack.c.bf16 %v2431, %v2431
        %v2441 = vld [vmem:[%s63] sm:$0x1]
        %v2443 = vlaneseq
        %v2444 = vshrl.u32 %v2443, 7
        %v2445 = vsub.s32 0, %v2444
        %v2446 = vrot.slane %v2441, %v2445
        %v2456 = vunpack.c.l.b16 %v2432
        %v2457 = vunpack.c.l.b16 %v2433
        %v2458 = vunpack.c.l.b16 %v2434
        %v2459 = vunpack.c.l.b16 %v2435
        %v2460 = vunpack.c.l.b16 %v2436
        %v2461 = vunpack.c.l.b16 %v2437
        %v2462 = vunpack.c.l.b16 %v2438
        %v2463 = vunpack.c.l.b16 %v2439
        %v2464 = vpack.c.b16 %v2457, %v2456
        %v2465 = vpack.c.b16 %v2459, %v2458
        %v2466 = vpack.c.b16 %v2461, %v2460
        %v2467 = vpack.c.b16 %v2463, %v2462
        %v2473 = vsel %vm1594, %v2440, 0
        %2475 = vmatprep.subr.bf16.mxu0 0
        %2476 = vmatpush1.bf16.msra.mxu0 %v2464
        %2477 = vmatprep.subr.bf16.mxu0 0
        %2478 = vmatpush1.bf16.msra.mxu0 %v2465
        %2479 = vmatprep.subr.bf16.mxu0 0
        %2480 = vmatpush1.bf16.msra.mxu0 %v2466
        %2481 = vmatprep.subr.bf16.mxu0 0
        %2482 = vmatpush1.bf16.msra.mxu0 %v2467
        %2483 = vmatprep.subr.bf16.mxu0 0
        %2484 = vmatpush1.bf16.msra.mxu0 0
        %2485 = vmatprep.subr.bf16.mxu0 0
        %2486 = vmatpush1.bf16.msra.mxu0 0
        %2487 = vmatprep.subr.bf16.mxu0 0
        %2488 = vmatpush1.bf16.msra.mxu0 0
        %2489 = vmatprep.subr.bf16.mxu0 0
        %2490 = vmatpush1.bf16.msra.mxu0 0
        %2491 = vmatprep.subr.bf16.mxu0 0
        %2492 = vmatpush1.bf16.msra.mxu0 0
        %2493 = vmatprep.subr.bf16.mxu0 0
        %2494 = vmatpush1.bf16.msra.mxu0 0
        %2495 = vmatprep.subr.bf16.mxu0 0
        %2496 = vmatpush1.bf16.msra.mxu0 0
        %2497 = vmatprep.subr.bf16.mxu0 0
        %2498 = vmatpush1.bf16.msra.mxu0 0
        %2499 = vmatprep.subr.bf16.mxu0 0
        %2500 = vmatpush1.bf16.msra.mxu0 0
        %2501 = vmatprep.subr.bf16.mxu0 0
        %2502 = vmatpush1.bf16.msra.mxu0 0
        %2503 = vmatprep.subr.bf16.mxu0 0
        %2504 = vmatpush1.bf16.msra.mxu0 0
        %2505 = vmatprep.subr.bf16.mxu0 0
        %2506 = vmatpush1.bf16.msra.mxu0 0
        %2507 = vmatprep.mubr.bf16.mxu0 0
        %2508 = vmatmul.mubr.bf16.gmra.mrb[0].mxu0 %v2473
        %v2509 = vpop.f32.mrb[0].mxu0
        %v2510 = vadd.f32 %v2446, %v2509
        %v2511 = vpop.f32.mrb[0].mxu0
        %v2512 = vpop.f32.mrb[0].mxu0
        %v2513 = vpop.f32.mrb[0].mxu0
        %2514 = vdwg.mxu0
        %v2515 = vmul.f32 %v2510, 0.5
        %v2516 = vadd.f32 %v2328, %v2515
        %v2517 = vld [vmem:[%s65] sm:$0x1]
        %v2518 = vld [vmem:[%s67] sm:$0x1]
        %v2519 = vsel %vm1451, %v2516, 0.0
        %2520 = vadd.xlane.f32.xlu0 %v2519
        %v2521 = vpop.xlane.xlu0 %2520
        %v2522 = vmul.f32 %v2521, %v1455
        %v2523 = vsub.f32 %v2516, %v2522
        %v2524 = vmul.f32 %v2523, %v2523
        %v2525 = vsel %vm1451, %v2524, 0.0
        %2526 = vadd.xlane.f32.xlu0 %v2525
        %v2527 = vpop.xlane.xlu0 %2526
        %v2528 = vmul.f32 %v2527, %v1455
        %v2529 = vadd.f32 %v2528, 1e-05
        %v2530 = vrsqrt.pop %v2529
        %v2531 = vmul.f32 %v2523, %v2530
        %v2533 = vlaneseq
        %v2534 = vshrl.u32 %v2533, 7
        %v2535 = vsub.s32 0, %v2534
        %v2536 = vrot.slane %v2517, %v2535
        %v2538 = vmul.f32 %v2531, %v2536
        %v2540 = vlaneseq
        %v2541 = vshrl.u32 %v2540, 7
        %v2542 = vsub.s32 0, %v2541
        %v2543 = vrot.slane %v2518, %v2542
        %v2545 = vadd.f32 %v2538, %v2543
        %s2546 = scalar_lea.vmem [#allocation10], 1
        %v2547 = vld [vmem:[%s2546] sm:$0x1]
        %s2548 = scalar_lea.vmem [#allocation11], 1
        %v2549 = vld [vmem:[%s2548] sm:$0x1]
        %v2550 = vsel %vm1451, %v2545, 0.0
        %2551 = vadd.xlane.f32.xlu0 %v2550
        %v2552 = vpop.xlane.xlu0 %2551
        %v2553 = vmul.f32 %v2552, %v1455
        %v2554 = vsub.f32 %v2545, %v2553
        %v2555 = vmul.f32 %v2554, %v2554
        %v2556 = vsel %vm1451, %v2555, 0.0
        %2557 = vadd.xlane.f32.xlu0 %v2556
        %v2558 = vpop.xlane.xlu0 %2557
        %v2559 = vmul.f32 %v2558, %v1455
        %v2560 = vadd.f32 %v2559, 1e-05
        %v2561 = vrsqrt.pop %v2560
        %v2562 = vmul.f32 %v2554, %v2561
        %v2564 = vlaneseq
        %v2565 = vshrl.u32 %v2564, 7
        %v2566 = vsub.s32 0, %v2565
        %v2567 = vrot.slane %v2547, %v2566
        %v2569 = vmul.f32 %v2562, %v2567
        %v2571 = vlaneseq
        %v2572 = vshrl.u32 %v2571, 7
        %v2573 = vsub.s32 0, %v2572
        %v2574 = vrot.slane %v2549, %v2573
        %v2576 = vadd.f32 %v2569, %v2574
        %s2577 = scalar_lea.vmem %s13, 16
        %v2578 = vld [vmem:[%s2577] sm:$0xf]
        %v2579 = vld [vmem:[%s2577 + $0x4] sm:$0xf]
        %v2580 = vld [vmem:[%s2577 + $0x8] sm:$0xf]
        %v2581 = vld [vmem:[%s2577 + $0xc] sm:$0xf]
        %v2582 = vpack.c.bf16 %v2576, %v2576
        %s2583 = scalar_lea.vmem [#allocation13], 1
        %v2584 = vld [vmem:[%s2583] sm:$0x1]
        %v2586 = vlaneseq
        %v2587 = vshrl.u32 %v2586, 7
        %v2588 = vsub.s32 0, %v2587
        %v2589 = vrot.slane %v2584, %v2588
        %v2595 = vunpack.c.l.b16 %v2578
        %v2596 = vunpack.c.l.b16 %v2579
        %v2597 = vunpack.c.l.b16 %v2580
        %v2598 = vunpack.c.l.b16 %v2581
        %v2599 = vpack.c.b16 %v2596, %v2595
        %v2600 = vpack.c.b16 %v2598, %v2597
        %v2604 = vsel %vm1451, %v2582, 0
        %2606 = vmatprep.subr.bf16.mxu0 0
        %2607 = vmatpush1.bf16.msra.mxu0 %v2599
        %2608 = vmatprep.subr.bf16.mxu0 0
        %2609 = vmatpush1.bf16.msra.mxu0 %v2600
        %2610 = vmatprep.subr.bf16.mxu0 0
        %2611 = vmatpush1.bf16.msra.mxu0 0
        %2612 = vmatprep.subr.bf16.mxu0 0
        %2613 = vmatpush1.bf16.msra.mxu0 0
        %2614 = vmatprep.subr.bf16.mxu0 0
        %2615 = vmatpush1.bf16.msra.mxu0 0
        %2616 = vmatprep.subr.bf16.mxu0 0
        %2617 = vmatpush1.bf16.msra.mxu0 0
        %2618 = vmatprep.subr.bf16.mxu0 0
        %2619 = vmatpush1.bf16.msra.mxu0 0
        %2620 = vmatprep.subr.bf16.mxu0 0
        %2621 = vmatpush1.bf16.msra.mxu0 0
        %2622 = vmatprep.subr.bf16.mxu0 0
        %2623 = vmatpush1.bf16.msra.mxu0 0
        %2624 = vmatprep.subr.bf16.mxu0 0
        %2625 = vmatpush1.bf16.msra.mxu0 0
        %2626 = vmatprep.subr.bf16.mxu0 0
        %2627 = vmatpush1.bf16.msra.mxu0 0
        %2628 = vmatprep.subr.bf16.mxu0 0
        %2629 = vmatpush1.bf16.msra.mxu0 0
        %2630 = vmatprep.subr.bf16.mxu0 0
        %2631 = vmatpush1.bf16.msra.mxu0 0
        %2632 = vmatprep.subr.bf16.mxu0 0
        %2633 = vmatpush1.bf16.msra.mxu0 0
        %2634 = vmatprep.subr.bf16.mxu0 0
        %2635 = vmatpush1.bf16.msra.mxu0 0
        %2636 = vmatprep.subr.bf16.mxu0 0
        %2637 = vmatpush1.bf16.msra.mxu0 0
        %2638 = vmatprep.mubr.bf16.mxu0 0
        %2639 = vmatmul.mubr.bf16.gmra.mrb[0].mxu0 %v2604
        %v2640 = vpop.f32.mrb[0].mxu0
        %v2641 = vadd.f32 %v2589, %v2640
        %v2642 = vpop.f32.mrb[0].mxu0
        %v2643 = vpop.f32.mrb[0].mxu0
        %v2644 = vpop.f32.mrb[0].mxu0
        %2645 = vdwg.mxu0
        %v2646 = vsub.f32 0.0, %v2641
        %v2647 = vmul.f32 %v2646, 1.442695
        %v2648 = vpow.pop %v2647
        %v2649 = vadd.f32 %v2648, 1.0
        %v2650 = vrcp.pop %v2649
        %v2651 = vmul.f32 1.0, %v2650
        %v2652 = vmul.f32 %v2641, %v2651
        %s2653 = scalar_lea.vmem %s17, 32
        %v2654 = vld [vmem:[%s2653] sm:$0xf]
        %v2655 = vld [vmem:[%s2653 + $0x4] sm:$0xf]
        %v2656 = vld [vmem:[%s2653 + $0x8] sm:$0xf]
        %v2657 = vld [vmem:[%s2653 + $0xc] sm:$0xf]
        %v2658 = vld [vmem:[%s2653 + $0x10] sm:$0xf]
        %v2659 = vld [vmem:[%s2653 + $0x14] sm:$0xf]
        %v2660 = vld [vmem:[%s2653 + $0x18] sm:$0xf]
        %v2661 = vld [vmem:[%s2653 + $0x1c] sm:$0xf]
        %v2662 = vpack.c.bf16 %v2652, %v2652
        %s2663 = scalar_lea.vmem [#allocation14], 1
        %v2664 = vld [vmem:[%s2663] sm:$0x1]
        %v2666 = vlaneseq
        %v2667 = vshrl.u32 %v2666, 7
        %v2668 = vsub.s32 0, %v2667
        %v2669 = vrot.slane %v2664, %v2668
        %v2679 = vunpack.c.l.b16 %v2654
        %v2680 = vunpack.c.l.b16 %v2655
        %v2681 = vunpack.c.l.b16 %v2656
        %v2682 = vunpack.c.l.b16 %v2657
        %v2683 = vunpack.c.l.b16 %v2658
        %v2684 = vunpack.c.l.b16 %v2659
        %v2685 = vunpack.c.l.b16 %v2660
        %v2686 = vunpack.c.l.b16 %v2661
        %v2687 = vpack.c.b16 %v2680, %v2679
        %v2688 = vpack.c.b16 %v2682, %v2681
        %v2689 = vpack.c.b16 %v2684, %v2683
        %v2690 = vpack.c.b16 %v2686, %v2685
        %v2696 = vsel %vm1594, %v2662, 0
        %2698 = vmatprep.subr.bf16.mxu0 0
        %2699 = vmatpush1.bf16.msra.mxu0 %v2687
        %2700 = vmatprep.subr.bf16.mxu0 0
        %2701 = vmatpush1.bf16.msra.mxu0 %v2688
        %2702 = vmatprep.subr.bf16.mxu0 0
        %2703 = vmatpush1.bf16.msra.mxu0 %v2689
        %2704 = vmatprep.subr.bf16.mxu0 0
        %2705 = vmatpush1.bf16.msra.mxu0 %v2690
        %2706 = vmatprep.subr.bf16.mxu0 0
        %2707 = vmatpush1.bf16.msra.mxu0 0
        %2708 = vmatprep.subr.bf16.mxu0 0
        %2709 = vmatpush1.bf16.msra.mxu0 0
        %2710 = vmatprep.subr.bf16.mxu0 0
        %2711 = vmatpush1.bf16.msra.mxu0 0
        %2712 = vmatprep.subr.bf16.mxu0 0
        %2713 = vmatpush1.bf16.msra.mxu0 0
        %2714 = vmatprep.subr.bf16.mxu0 0
        %2715 = vmatpush1.bf16.msra.mxu0 0
        %2716 = vmatprep.subr.bf16.mxu0 0
        %2717 = vmatpush1.bf16.msra.mxu0 0
        %2718 = vmatprep.subr.bf16.mxu0 0
        %2719 = vmatpush1.bf16.msra.mxu0 0
        %2720 = vmatprep.subr.bf16.mxu0 0
        %2721 = vmatpush1.bf16.msra.mxu0 0
        %2722 = vmatprep.subr.bf16.mxu0 0
        %2723 = vmatpush1.bf16.msra.mxu0 0
        %2724 = vmatprep.subr.bf16.mxu0 0
        %2725 = vmatpush1.bf16.msra.mxu0 0
        %2726 = vmatprep.subr.bf16.mxu0 0
        %2727 = vmatpush1.bf16.msra.mxu0 0
        %2728 = vmatprep.subr.bf16.mxu0 0
        %2729 = vmatpush1.bf16.msra.mxu0 0
        %2730 = vmatprep.mubr.bf16.mxu0 0
        %2731 = vmatmul.mubr.bf16.gmra.mrb[0].mxu0 %v2696
        %v2732 = vpop.f32.mrb[0].mxu0
        %v2733 = vadd.f32 %v2669, %v2732
        %v2734 = vpop.f32.mrb[0].mxu0
        %v2735 = vpop.f32.mrb[0].mxu0
        %v2736 = vpop.f32.mrb[0].mxu0
        %2737 = vdwg.mxu0
        %v2738 = vmul.f32 %v2733, 0.5
        %v2739 = vadd.f32 %v2545, %v2738
        %s2740 = scalar_lea.vmem [#allocation16], 1
        %v2741 = vld [vmem:[%s2740] sm:$0x1]
        %s2742 = scalar_lea.vmem [#allocation17], 1
        %v2743 = vld [vmem:[%s2742] sm:$0x1]
        %v2744 = vsel %vm1451, %v2739, 0.0
        %2745 = vadd.xlane.f32.xlu0 %v2744
        %v2746 = vpop.xlane.xlu0 %2745
        %v2747 = vmul.f32 %v2746, %v1455
        %v2748 = vsub.f32 %v2739, %v2747
        %v2749 = vmul.f32 %v2748, %v2748
        %v2750 = vsel %vm1451, %v2749, 0.0
        %2751 = vadd.xlane.f32.xlu0 %v2750
        %v2752 = vpop.xlane.xlu0 %2751
        %v2753 = vmul.f32 %v2752, %v1455
        %v2754 = vadd.f32 %v2753, 1e-05
        %v2755 = vrsqrt.pop %v2754
        %v2756 = vmul.f32 %v2748, %v2755
        %v2758 = vlaneseq
        %v2759 = vshrl.u32 %v2758, 7
        %v2760 = vsub.s32 0, %v2759
        %v2761 = vrot.slane %v2741, %v2760
        %v2763 = vmul.f32 %v2756, %v2761
        %v2765 = vlaneseq
        %v2766 = vshrl.u32 %v2765, 7
        %v2767 = vsub.s32 0, %v2766
        %v2768 = vrot.slane %v2743, %v2767
        %v2770 = vadd.f32 %v2763, %v2768
        %s2771 = scalar_lea.vmem %s25, 16
        %v2772 = vld [vmem:[%s2771] sm:$0xf]
        %v2773 = vld [vmem:[%s2771 + $0x4] sm:$0xf]
        %v2774 = vld [vmem:[%s2771 + $0x8] sm:$0xf]
        %v2775 = vld [vmem:[%s2771 + $0xc] sm:$0xf]
        %v2776 = vpack.c.bf16 %v2770, %v2770
        %s2777 = scalar_lea.vmem [#allocation19], 1
        %v2778 = vld [vmem:[%s2777] sm:$0x1]
        %v2780 = vlaneseq
        %v2781 = vshrl.u32 %v2780, 7
        %v2782 = vsub.s32 0, %v2781
        %v2783 = vrot.slane %v2778, %v2782
        %v2789 = vunpack.c.l.b16 %v2772
        %v2790 = vunpack.c.l.b16 %v2773
        %v2791 = vunpack.c.l.b16 %v2774
        %v2792 = vunpack.c.l.b16 %v2775
        %v2793 = vpack.c.b16 %v2790, %v2789
        %v2794 = vpack.c.b16 %v2792, %v2791
        %v2798 = vsel %vm1451, %v2776, 0
        %2800 = vmatprep.subr.bf16.mxu0 0
        %2801 = vmatpush1.bf16.msra.mxu0 %v2793
        %2802 = vmatprep.subr.bf16.mxu0 0
        %2803 = vmatpush1.bf16.msra.mxu0 %v2794
        %2804 = vmatprep.subr.bf16.mxu0 0
        %2805 = vmatpush1.bf16.msra.mxu0 0
        %2806 = vmatprep.subr.bf16.mxu0 0
        %2807 = vmatpush1.bf16.msra.mxu0 0
        %2808 = vmatprep.subr.bf16.mxu0 0
        %2809 = vmatpush1.bf16.msra.mxu0 0
        %2810 = vmatprep.subr.bf16.mxu0 0
        %2811 = vmatpush1.bf16.msra.mxu0 0
        %2812 = vmatprep.subr.bf16.mxu0 0
        %2813 = vmatpush1.bf16.msra.mxu0 0
        %2814 = vmatprep.subr.bf16.mxu0 0
        %2815 = vmatpush1.bf16.msra.mxu0 0
        %2816 = vmatprep.subr.bf16.mxu0 0
        %2817 = vmatpush1.bf16.msra.mxu0 0
        %2818 = vmatprep.subr.bf16.mxu0 0
        %2819 = vmatpush1.bf16.msra.mxu0 0
        %2820 = vmatprep.subr.bf16.mxu0 0
        %2821 = vmatpush1.bf16.msra.mxu0 0
        %2822 = vmatprep.subr.bf16.mxu0 0
        %2823 = vmatpush1.bf16.msra.mxu0 0
        %2824 = vmatprep.subr.bf16.mxu0 0
        %2825 = vmatpush1.bf16.msra.mxu0 0
        %2826 = vmatprep.subr.bf16.mxu0 0
        %2827 = vmatpush1.bf16.msra.mxu0 0
        %2828 = vmatprep.subr.bf16.mxu0 0
        %2829 = vmatpush1.bf16.msra.mxu0 0
        %2830 = vmatprep.subr.bf16.mxu0 0
        %2831 = vmatpush1.bf16.msra.mxu0 0
        %2832 = vmatprep.mubr.bf16.mxu0 0
        %2833 = vmatmul.mubr.bf16.gmra.mrb[0].mxu0 %v2798
        %v2834 = vpop.f32.mrb[0].mxu0
        %v2835 = vadd.f32 %v2783, %v2834
        %v2836 = vpop.f32.mrb[0].mxu0
        %v2837 = vpop.f32.mrb[0].mxu0
        %v2838 = vpop.f32.mrb[0].mxu0
        %2839 = vdwg.mxu0
        %2841 = vrot.lane.b32.xlu0 %v2835, 112
        %v2842 = vpop.permute.xlu0 %2841
        %v2844 = vpack.c.bf16 %v2835, %v2835
        %v2845 = vpack.c.bf16 %v2842, %v2842
        %2847 = vrot.lane.b32.xlu0 %v2844, 96
        %v2848 = vpop.permute.xlu0 %2847
        %v2850 = vsel %vm1745, %v2844, 0
        %v2853 = vsel %vm1745, %v2848, 0
        %2855 = vmatprep.subr.bf16.mxu0 0
        %2856 = vmatpush1.bf16.xpose.msra.mxu0 %v2853
        %2857 = vmatprep.subr.bf16.mxu0 0
        %2858 = vmatpush1.bf16.xpose.msra.mxu0 0
        %2859 = vmatprep.subr.bf16.mxu0 0
        %2860 = vmatpush1.bf16.xpose.msra.mxu0 0
        %2861 = vmatprep.subr.bf16.mxu0 0
        %2862 = vmatpush1.bf16.xpose.msra.mxu0 0
        %2863 = vmatprep.subr.bf16.mxu0 0
        %2864 = vmatpush1.bf16.xpose.msra.mxu0 0
        %2865 = vmatprep.subr.bf16.mxu0 0
        %2866 = vmatpush1.bf16.xpose.msra.mxu0 0
        %2867 = vmatprep.subr.bf16.mxu0 0
        %2868 = vmatpush1.bf16.xpose.msra.mxu0 0
        %2869 = vmatprep.subr.bf16.mxu0 0
        %2870 = vmatpush1.bf16.xpose.msra.mxu0 0
        %2871 = vmatprep.subr.bf16.mxu0 0
        %2872 = vmatpush1.bf16.xpose.msra.mxu0 0
        %2873 = vmatprep.subr.bf16.mxu0 0
        %2874 = vmatpush1.bf16.xpose.msra.mxu0 0
        %2875 = vmatprep.subr.bf16.mxu0 0
        %2876 = vmatpush1.bf16.xpose.msra.mxu0 0
        %2877 = vmatprep.subr.bf16.mxu0 0
        %2878 = vmatpush1.bf16.xpose.msra.mxu0 0
        %2879 = vmatprep.subr.bf16.mxu0 0
        %2880 = vmatpush1.bf16.xpose.msra.mxu0 0
        %2881 = vmatprep.subr.bf16.mxu0 0
        %2882 = vmatpush1.bf16.xpose.msra.mxu0 0
        %2883 = vmatprep.subr.bf16.mxu0 0
        %2884 = vmatpush1.bf16.xpose.msra.mxu0 0
        %2885 = vmatprep.subr.bf16.mxu0 0
        %2886 = vmatpush1.bf16.xpose.msra.mxu0 0
        %2887 = vmatprep.mubr.bf16.mxu0 0
        %2888 = vmatmul.mubr.bf16.gmra.mrb[0].mxu0 %v2850
        %v2889 = vpop.f32.mrb[0].mxu0
        %v2890 = vadd.f32 0.0, %v2889
        %v2891 = vpop.f32.mrb[0].mxu0
        %v2892 = vpop.f32.mrb[0].mxu0
        %v2893 = vpop.f32.mrb[0].mxu0
        %2894 = vdwg.mxu0
        %2896 = vrot.lane.b32.xlu0 %v2845, 96
        %v2897 = vpop.permute.xlu0 %2896
        %v2899 = vsel %vm1745, %v2845, 0
        %v2902 = vsel %vm1745, %v2897, 0
        %2904 = vmatprep.subr.bf16.mxu0 0
        %2905 = vmatpush1.bf16.xpose.msra.mxu0 %v2902
        %2906 = vmatprep.subr.bf16.mxu0 0
        %2907 = vmatpush1.bf16.xpose.msra.mxu0 0
        %2908 = vmatprep.subr.bf16.mxu0 0
        %2909 = vmatpush1.bf16.xpose.msra.mxu0 0
        %2910 = vmatprep.subr.bf16.mxu0 0
        %2911 = vmatpush1.bf16.xpose.msra.mxu0 0
        %2912 = vmatprep.subr.bf16.mxu0 0
        %2913 = vmatpush1.bf16.xpose.msra.mxu0 0
        %2914 = vmatprep.subr.bf16.mxu0 0
        %2915 = vmatpush1.bf16.xpose.msra.mxu0 0
        %2916 = vmatprep.subr.bf16.mxu0 0
        %2917 = vmatpush1.bf16.xpose.msra.mxu0 0
        %2918 = vmatprep.subr.bf16.mxu0 0
        %2919 = vmatpush1.bf16.xpose.msra.mxu0 0
        %2920 = vmatprep.subr.bf16.mxu0 0
        %2921 = vmatpush1.bf16.xpose.msra.mxu0 0
        %2922 = vmatprep.subr.bf16.mxu0 0
        %2923 = vmatpush1.bf16.xpose.msra.mxu0 0
        %2924 = vmatprep.subr.bf16.mxu0 0
        %2925 = vmatpush1.bf16.xpose.msra.mxu0 0
        %2926 = vmatprep.subr.bf16.mxu0 0
        %2927 = vmatpush1.bf16.xpose.msra.mxu0 0
        %2928 = vmatprep.subr.bf16.mxu0 0
        %2929 = vmatpush1.bf16.xpose.msra.mxu0 0
        %2930 = vmatprep.subr.bf16.mxu0 0
        %2931 = vmatpush1.bf16.xpose.msra.mxu0 0
        %2932 = vmatprep.subr.bf16.mxu0 0
        %2933 = vmatpush1.bf16.xpose.msra.mxu0 0
        %2934 = vmatprep.subr.bf16.mxu0 0
        %2935 = vmatpush1.bf16.xpose.msra.mxu0 0
        %2936 = vmatprep.mubr.bf16.mxu0 0
        %2937 = vmatmul.mubr.bf16.gmra.mrb[0].mxu0 %v2899
        %v2938 = vpop.f32.mrb[0].mxu0
        %v2939 = vadd.f32 0.0, %v2938
        %v2940 = vpop.f32.mrb[0].mxu0
        %v2941 = vpop.f32.mrb[0].mxu0
        %v2942 = vpop.f32.mrb[0].mxu0
        %2943 = vdwg.mxu0
        %v2944 = vmul.f32 %v2890, 0.25
        %v2945 = vmul.f32 %v2939, 0.25
        %v2946 = vsel %vm1844, %v2944, -1e+30
        %v2947 = vsel %vm1844, %v2945, -1e+30
        %v2948 = vsel %vm1847, %v2946, -inf
        %2949 = vmax.xlane.f32.xlu0 %v2948
        %v2950 = vpop.xlane.xlu0 %2949
        %v2951 = vsel %vm1847, %v2947, -inf
        %2952 = vmax.xlane.f32.xlu0 %v2951
        %v2953 = vpop.xlane.xlu0 %2952
        %v2954 = vsub.f32 %v2946, %v2950
        %v2955 = vsub.f32 %v2947, %v2953
        %v2956 = vmul.f32 %v2954, 1.442695
        %v2957 = vpow.pop %v2956
        %v2958 = vmul.f32 %v2955, 1.442695
        %v2959 = vpow.pop %v2958
        %v2960 = vsel %vm1847, %v2957, 0.0
        %2961 = vadd.xlane.f32.xlu0 %v2960
        %v2962 = vpop.xlane.xlu0 %2961
        %v2963 = vsel %vm1847, %v2959, 0.0
        %2964 = vadd.xlane.f32.xlu0 %v2963
        %v2965 = vpop.xlane.xlu0 %2964
        %v2966 = vrcp.pop %v2962
        %v2967 = vrcp.pop %v2965
        %v2968 = vmul.f32 %v2957, %v2966
        %v2969 = vmul.f32 %v2959, %v2967
        %v2970 = vpack.c.bf16 %v2968, %v2968
        %v2971 = vpack.c.bf16 %v2969, %v2969
        %2972 = vrot.lane.b32.xlu0 %v2844, 64
        %v2973 = vpop.permute.xlu0 %2972
        %v2975 = vsel %vm1847, %v2970, 0
        %v2978 = vsel %vm1405, %v2973, 0
        %2980 = vmatprep.subr.bf16.mxu0 0
        %2981 = vmatpush1.bf16.msra.mxu0 %v2978
        %2982 = vmatprep.subr.bf16.mxu0 0
        %2983 = vmatpush1.bf16.msra.mxu0 0
        %2984 = vmatprep.subr.bf16.mxu0 0
        %2985 = vmatpush1.bf16.msra.mxu0 0
        %2986 = vmatprep.subr.bf16.mxu0 0
        %2987 = vmatpush1.bf16.msra.mxu0 0
        %2988 = vmatprep.subr.bf16.mxu0 0
        %2989 = vmatpush1.bf16.msra.mxu0 0
        %2990 = vmatprep.subr.bf16.mxu0 0
        %2991 = vmatpush1.bf16.msra.mxu0 0
        %2992 = vmatprep.subr.bf16.mxu0 0
        %2993 = vmatpush1.bf16.msra.mxu0 0
        %2994 = vmatprep.subr.bf16.mxu0 0
        %2995 = vmatpush1.bf16.msra.mxu0 0
        %2996 = vmatprep.subr.bf16.mxu0 0
        %2997 = vmatpush1.bf16.msra.mxu0 0
        %2998 = vmatprep.subr.bf16.mxu0 0
        %2999 = vmatpush1.bf16.msra.mxu0 0
        %3000 = vmatprep.subr.bf16.mxu0 0
        %3001 = vmatpush1.bf16.msra.mxu0 0
        %3002 = vmatprep.subr.bf16.mxu0 0
        %3003 = vmatpush1.bf16.msra.mxu0 0
        %3004 = vmatprep.subr.bf16.mxu0 0
        %3005 = vmatpush1.bf16.msra.mxu0 0
        %3006 = vmatprep.subr.bf16.mxu0 0
        %3007 = vmatpush1.bf16.msra.mxu0 0
        %3008 = vmatprep.subr.bf16.mxu0 0
        %3009 = vmatpush1.bf16.msra.mxu0 0
        %3010 = vmatprep.subr.bf16.mxu0 0
        %3011 = vmatpush1.bf16.msra.mxu0 0
        %3012 = vmatprep.mubr.bf16.mxu0 0
        %3013 = vmatmul.mubr.bf16.gmra.mrb[0].mxu0 %v2975
        %v3014 = vpop.f32.mrb[0].mxu0
        %v3015 = vadd.f32 0.0, %v3014
        %v3016 = vpop.f32.mrb[0].mxu0
        %v3017 = vpop.f32.mrb[0].mxu0
        %v3018 = vpop.f32.mrb[0].mxu0
        %3019 = vdwg.mxu0
        %3020 = vrot.lane.b32.xlu0 %v2845, 64
        %v3021 = vpop.permute.xlu0 %3020
        %v3023 = vsel %vm1847, %v2971, 0
        %v3026 = vsel %vm1405, %v3021, 0
        %3028 = vmatprep.subr.bf16.mxu0 0
        %3029 = vmatpush1.bf16.msra.mxu0 %v3026
        %3030 = vmatprep.subr.bf16.mxu0 0
        %3031 = vmatpush1.bf16.msra.mxu0 0
        %3032 = vmatprep.subr.bf16.mxu0 0
        %3033 = vmatpush1.bf16.msra.mxu0 0
        %3034 = vmatprep.subr.bf16.mxu0 0
        %3035 = vmatpush1.bf16.msra.mxu0 0
        %3036 = vmatprep.subr.bf16.mxu0 0
        %3037 = vmatpush1.bf16.msra.mxu0 0
        %3038 = vmatprep.subr.bf16.mxu0 0
        %3039 = vmatpush1.bf16.msra.mxu0 0
        %3040 = vmatprep.subr.bf16.mxu0 0
        %3041 = vmatpush1.bf16.msra.mxu0 0
        %3042 = vmatprep.subr.bf16.mxu0 0
        %3043 = vmatpush1.bf16.msra.mxu0 0
        %3044 = vmatprep.subr.bf16.mxu0 0
        %3045 = vmatpush1.bf16.msra.mxu0 0
        %3046 = vmatprep.subr.bf16.mxu0 0
        %3047 = vmatpush1.bf16.msra.mxu0 0
        %3048 = vmatprep.subr.bf16.mxu0 0
        %3049 = vmatpush1.bf16.msra.mxu0 0
        %3050 = vmatprep.subr.bf16.mxu0 0
        %3051 = vmatpush1.bf16.msra.mxu0 0
        %3052 = vmatprep.subr.bf16.mxu0 0
        %3053 = vmatpush1.bf16.msra.mxu0 0
        %3054 = vmatprep.subr.bf16.mxu0 0
        %3055 = vmatpush1.bf16.msra.mxu0 0
        %3056 = vmatprep.subr.bf16.mxu0 0
        %3057 = vmatpush1.bf16.msra.mxu0 0
        %3058 = vmatprep.subr.bf16.mxu0 0
        %3059 = vmatpush1.bf16.msra.mxu0 0
        %3060 = vmatprep.mubr.bf16.mxu0 0
        %3061 = vmatmul.mubr.bf16.gmra.mrb[0].mxu0 %v3023
        %v3062 = vpop.f32.mrb[0].mxu0
        %v3063 = vadd.f32 0.0, %v3062
        %v3064 = vpop.f32.mrb[0].mxu0
        %v3065 = vpop.f32.mrb[0].mxu0
        %v3066 = vpop.f32.mrb[0].mxu0
        %3067 = vdwg.mxu0
        %s3068 = scalar_lea.vmem %s29, 16
        %v3069 = vld [vmem:[%s3068] sm:$0xf]
        %v3070 = vld [vmem:[%s3068 + $0x4] sm:$0xf]
        %v3071 = vld [vmem:[%s3068 + $0x8] sm:$0xf]
        %v3072 = vld [vmem:[%s3068 + $0xc] sm:$0xf]
        %s3073 = scalar_lea.vmem [#allocation20], 1
        %v3074 = vld [vmem:[%s3073] sm:$0x1]
        %v3075 = vpack.c.bf16 %v3015, %v3015
        %v3078 = vunpack.c.l.b16 %v3069
        %v3079 = vunpack.c.l.b16 %v3070
        %v3080 = vpack.c.b16 %v3079, %v3078
        %v3083 = vsel %vm1745, %v3075, 0
        %3085 = vmatprep.subr.bf16.mxu0 0
        %3086 = vmatpush1.bf16.msra.mxu0 %v3080
        %3087 = vmatprep.subr.bf16.mxu0 0
        %3088 = vmatpush1.bf16.msra.mxu0 0
        %3089 = vmatprep.subr.bf16.mxu0 0
        %3090 = vmatpush1.bf16.msra.mxu0 0
        %3091 = vmatprep.subr.bf16.mxu0 0
        %3092 = vmatpush1.bf16.msra.mxu0 0
        %3093 = vmatprep.subr.bf16.mxu0 0
        %3094 = vmatpush1.bf16.msra.mxu0 0
        %3095 = vmatprep.subr.bf16.mxu0 0
        %3096 = vmatpush1.bf16.msra.mxu0 0
        %3097 = vmatprep.subr.bf16.mxu0 0
        %3098 = vmatpush1.bf16.msra.mxu0 0
        %3099 = vmatprep.subr.bf16.mxu0 0
        %3100 = vmatpush1.bf16.msra.mxu0 0
        %3101 = vmatprep.subr.bf16.mxu0 0
        %3102 = vmatpush1.bf16.msra.mxu0 0
        %3103 = vmatprep.subr.bf16.mxu0 0
        %3104 = vmatpush1.bf16.msra.mxu0 0
        %3105 = vmatprep.subr.bf16.mxu0 0
        %3106 = vmatpush1.bf16.msra.mxu0 0
        %3107 = vmatprep.subr.bf16.mxu0 0
        %3108 = vmatpush1.bf16.msra.mxu0 0
        %3109 = vmatprep.subr.bf16.mxu0 0
        %3110 = vmatpush1.bf16.msra.mxu0 0
        %3111 = vmatprep.subr.bf16.mxu0 0
        %3112 = vmatpush1.bf16.msra.mxu0 0
        %3113 = vmatprep.subr.bf16.mxu0 0
        %3114 = vmatpush1.bf16.msra.mxu0 0
        %3115 = vmatprep.subr.bf16.mxu0 0
        %3116 = vmatpush1.bf16.msra.mxu0 0
        %3117 = vmatprep.mubr.bf16.mxu0 0
        %3118 = vmatmul.mubr.bf16.gmra.mrb[0].mxu0 %v3083
        %v3119 = vpop.f32.mrb[0].mxu0
        %v3120 = vadd.f32 0.0, %v3119
        %v3121 = vpop.f32.mrb[0].mxu0
        %v3122 = vpop.f32.mrb[0].mxu0
        %v3123 = vpop.f32.mrb[0].mxu0
        %3124 = vdwg.mxu0
        %v3126 = vlaneseq
        %v3127 = vshrl.u32 %v3126, 7
        %v3128 = vsub.s32 0, %v3127
        %v3129 = vrot.slane %v3074, %v3128
        %v3131 = vadd.f32 %v3129, %v3120
        %v3132 = vpack.c.bf16 %v3063, %v3063
        %v3135 = vunpack.c.l.b16 %v3071
        %v3136 = vunpack.c.l.b16 %v3072
        %v3137 = vpack.c.b16 %v3136, %v3135
        %v3140 = vsel %vm1745, %v3132, 0
        %3142 = vmatprep.subr.bf16.mxu0 0
        %3143 = vmatpush1.bf16.msra.mxu0 %v3137
        %3144 = vmatprep.subr.bf16.mxu0 0
        %3145 = vmatpush1.bf16.msra.mxu0 0
        %3146 = vmatprep.subr.bf16.mxu0 0
        %3147 = vmatpush1.bf16.msra.mxu0 0
        %3148 = vmatprep.subr.bf16.mxu0 0
        %3149 = vmatpush1.bf16.msra.mxu0 0
        %3150 = vmatprep.subr.bf16.mxu0 0
        %3151 = vmatpush1.bf16.msra.mxu0 0
        %3152 = vmatprep.subr.bf16.mxu0 0
        %3153 = vmatpush1.bf16.msra.mxu0 0
        %3154 = vmatprep.subr.bf16.mxu0 0
        %3155 = vmatpush1.bf16.msra.mxu0 0
        %3156 = vmatprep.subr.bf16.mxu0 0
        %3157 = vmatpush1.bf16.msra.mxu0 0
        %3158 = vmatprep.subr.bf16.mxu0 0
        %3159 = vmatpush1.bf16.msra.mxu0 0
        %3160 = vmatprep.subr.bf16.mxu0 0
        %3161 = vmatpush1.bf16.msra.mxu0 0
        %3162 = vmatprep.subr.bf16.mxu0 0
        %3163 = vmatpush1.bf16.msra.mxu0 0
        %3164 = vmatprep.subr.bf16.mxu0 0
        %3165 = vmatpush1.bf16.msra.mxu0 0
        %3166 = vmatprep.subr.bf16.mxu0 0
        %3167 = vmatpush1.bf16.msra.mxu0 0
        %3168 = vmatprep.subr.bf16.mxu0 0
        %3169 = vmatpush1.bf16.msra.mxu0 0
        %3170 = vmatprep.subr.bf16.mxu0 0
        %3171 = vmatpush1.bf16.msra.mxu0 0
        %3172 = vmatprep.subr.bf16.mxu0 0
        %3173 = vmatpush1.bf16.msra.mxu0 0
        %3174 = vmatprep.mubr.bf16.mxu0 0
        %3175 = vmatmul.mubr.bf16.gmra.mrb[0].mxu0 %v3140
        %v3176 = vpop.f32.mrb[0].mxu0
        %v3177 = vadd.f32 0.0, %v3176
        %v3178 = vpop.f32.mrb[0].mxu0
        %v3179 = vpop.f32.mrb[0].mxu0
        %v3180 = vpop.f32.mrb[0].mxu0
        %3181 = vdwg.mxu0
        %v3182 = vadd.f32 %v3131, %v3177
        %v3183 = vadd.f32 %v2739, %v3182
        %s3184 = scalar_lea.vmem [#allocation22], 1
        %v3185 = vld [vmem:[%s3184] sm:$0x1]
        %s3186 = scalar_lea.vmem [#allocation23], 1
        %v3187 = vld [vmem:[%s3186] sm:$0x1]
        %v3188 = vsel %vm1451, %v3183, 0.0
        %3189 = vadd.xlane.f32.xlu0 %v3188
        %v3190 = vpop.xlane.xlu0 %3189
        %v3191 = vmul.f32 %v3190, %v1455
        %v3192 = vsub.f32 %v3183, %v3191
        %v3193 = vmul.f32 %v3192, %v3192
        %v3194 = vsel %vm1451, %v3193, 0.0
        %3195 = vadd.xlane.f32.xlu0 %v3194
        %v3196 = vpop.xlane.xlu0 %3195
        %v3197 = vmul.f32 %v3196, %v1455
        %v3198 = vadd.f32 %v3197, 1e-05
        %v3199 = vrsqrt.pop %v3198
        %v3200 = vmul.f32 %v3192, %v3199
        %v3202 = vlaneseq
        %v3203 = vshrl.u32 %v3202, 7
        %v3204 = vsub.s32 0, %v3203
        %v3205 = vrot.slane %v3185, %v3204
        %v3207 = vmul.f32 %v3200, %v3205
        %v3209 = vlaneseq
        %v3210 = vshrl.u32 %v3209, 7
        %v3211 = vsub.s32 0, %v3210
        %v3212 = vrot.slane %v3187, %v3211
        %v3214 = vadd.f32 %v3207, %v3212
        %s3215 = scalar_lea.vmem %s37, 16
        %v3216 = vld [vmem:[%s3215] sm:$0xf]
        %v3217 = vld [vmem:[%s3215 + $0x4] sm:$0xf]
        %v3218 = vld [vmem:[%s3215 + $0x8] sm:$0xf]
        %v3219 = vld [vmem:[%s3215 + $0xc] sm:$0xf]
        %v3220 = vpack.c.bf16 %v3214, %v3214
        %s3221 = scalar_lea.vmem [#allocation25], 1
        %v3222 = vld [vmem:[%s3221] sm:$0x1]
        %v3224 = vlaneseq
        %v3225 = vshrl.u32 %v3224, 7
        %v3226 = vsub.s32 0, %v3225
        %v3227 = vrot.slane %v3222, %v3226
        %v3233 = vunpack.c.l.b16 %v3216
        %v3234 = vunpack.c.l.b16 %v3217
        %v3235 = vunpack.c.l.b16 %v3218
        %v3236 = vunpack.c.l.b16 %v3219
        %v3237 = vpack.c.b16 %v3234, %v3233
        %v3238 = vpack.c.b16 %v3236, %v3235
        %v3242 = vsel %vm1451, %v3220, 0
        %3244 = vmatprep.subr.bf16.mxu0 0
        %3245 = vmatpush1.bf16.msra.mxu0 %v3237
        %3246 = vmatprep.subr.bf16.mxu0 0
        %3247 = vmatpush1.bf16.msra.mxu0 %v3238
        %3248 = vmatprep.subr.bf16.mxu0 0
        %3249 = vmatpush1.bf16.msra.mxu0 0
        %3250 = vmatprep.subr.bf16.mxu0 0
        %3251 = vmatpush1.bf16.msra.mxu0 0
        %3252 = vmatprep.subr.bf16.mxu0 0
        %3253 = vmatpush1.bf16.msra.mxu0 0
        %3254 = vmatprep.subr.bf16.mxu0 0
        %3255 = vmatpush1.bf16.msra.mxu0 0
        %3256 = vmatprep.subr.bf16.mxu0 0
        %3257 = vmatpush1.bf16.msra.mxu0 0
        %3258 = vmatprep.subr.bf16.mxu0 0
        %3259 = vmatpush1.bf16.msra.mxu0 0
        %3260 = vmatprep.subr.bf16.mxu0 0
        %3261 = vmatpush1.bf16.msra.mxu0 0
        %3262 = vmatprep.subr.bf16.mxu0 0
        %3263 = vmatpush1.bf16.msra.mxu0 0
        %3264 = vmatprep.subr.bf16.mxu0 0
        %3265 = vmatpush1.bf16.msra.mxu0 0
        %3266 = vmatprep.subr.bf16.mxu0 0
        %3267 = vmatpush1.bf16.msra.mxu0 0
        %3268 = vmatprep.subr.bf16.mxu0 0
        %3269 = vmatpush1.bf16.msra.mxu0 0
        %3270 = vmatprep.subr.bf16.mxu0 0
        %3271 = vmatpush1.bf16.msra.mxu0 0
        %3272 = vmatprep.subr.bf16.mxu0 0
        %3273 = vmatpush1.bf16.msra.mxu0 0
        %3274 = vmatprep.subr.bf16.mxu0 0
        %3275 = vmatpush1.bf16.msra.mxu0 0
        %3276 = vmatprep.mubr.bf16.mxu0 0
        %3277 = vmatmul.mubr.bf16.gmra.mrb[0].mxu0 %v3242
        %v3278 = vpop.f32.mrb[0].mxu0
        %v3279 = vadd.f32 %v3227, %v3278
        %v3280 = vpop.f32.mrb[0].mxu0
        %v3281 = vpop.f32.mrb[0].mxu0
        %v3282 = vpop.f32.mrb[0].mxu0
        %3283 = vdwg.mxu0
        %v3284 = vsub.f32 0.0, %v3279
        %v3285 = vmul.f32 %v3284, 1.442695
        %v3286 = vpow.pop %v3285
        %v3287 = vadd.f32 %v3286, 1.0
        %v3288 = vrcp.pop %v3287
        %v3289 = vmul.f32 1.0, %v3288
        %3291 = vrot.lane.b32.xlu0 %v3289, 96
        %v3292 = vpop.permute.xlu0 %3291
        %v3294 = vmul.f32 %v3279, %v3292
        %v3296 = vrot.slane %v3294, 7
        %v3298 = vsel %vm2192, 0.0, %v3296
        %v3299 = vsel %vm2192, %v3296, 0.0
        %s3300 = scalar_lea.vmem %s41, 4
        %v3301 = vld [vmem:[%s3300] sm:$0x7]
        %v3302 = vlaneseq
        %v3303 = vshrl.u32 %v3302, 7
        %v3304 = vsub.s32 0, %v3303
        %v3305 = vrot.slane %v3301, %v3304
        %v3306 = vmul.f32 %v3298, %v3305
        %v3307 = vadd.f32 %v3306, 0.0
        %v3308 = vlaneseq
        %v3309 = vshrl.u32 %v3308, 7
        %v3310 = vsub.s32 1, %v3309
        %v3311 = vrot.slane %v3301, %v3310
        %v3312 = vmul.f32 %v3298, %v3311
        %v3313 = vmul.f32 %v3299, %v3311
        %v3316 = vrot.slane %v3312, 1
        %v3317 = vrot.slane %v3313, 1
        %v3318 = vsel %vm2210, %v3316, %v3317
        %v3320 = vadd.f32 %v3307, %v3318
        %v3321 = vlaneseq
        %v3322 = vshrl.u32 %v3321, 7
        %v3323 = vsub.s32 2, %v3322
        %v3324 = vrot.slane %v3301, %v3323
        %v3325 = vmul.f32 %v3298, %v3324
        %v3326 = vmul.f32 %v3299, %v3324
        %v3329 = vrot.slane %v3325, 2
        %v3330 = vrot.slane %v3326, 2
        %v3331 = vsel %vm2224, %v3329, %v3330
        %v3333 = vadd.f32 %v3320, %v3331
        %s3334 = scalar_lea.vmem [#allocation26], 1
        %v3335 = vld [vmem:[%s3334] sm:$0x1]
        %v3337 = vlaneseq
        %v3338 = vshrl.u32 %v3337, 7
        %v3339 = vsub.s32 0, %v3338
        %v3340 = vrot.slane %v3335, %v3339
        %v3342 = vadd.f32 %v3333, %v3340
        %s3343 = scalar_lea.vmem [#allocation28], 1
        %v3344 = vld [vmem:[%s3343] sm:$0x1]
        %v3346 = vlaneseq
        %v3347 = vshrl.u32 %v3346, 7
        %v3348 = vsub.s32 0, %v3347
        %v3349 = vrot.slane %v3344, %v3348
        %v3351 = vmul.f32 %v3342, %v3349
        %s3352 = scalar_lea.vmem [#allocation29], 1
        %v3353 = vld [vmem:[%s3352] sm:$0x1]
        %v3355 = vlaneseq
        %v3356 = vshrl.u32 %v3355, 7
        %v3357 = vsub.s32 0, %v3356
        %v3358 = vrot.slane %v3353, %v3357
        %v3360 = vadd.f32 %v3351, %v3358
        %v3361 = vsub.f32 0.0, %v3360
        %v3362 = vmul.f32 %v3361, 1.442695
        %v3363 = vpow.pop %v3362
        %v3364 = vadd.f32 %v3363, 1.0
        %v3365 = vrcp.pop %v3364
        %v3366 = vmul.f32 1.0, %v3365
        %v3367 = vmul.f32 %v3360, %v3366
        %s3368 = scalar_lea.vmem %s49, 16
        %v3369 = vld [vmem:[%s3368] sm:$0xf]
        %v3370 = vld [vmem:[%s3368 + $0x4] sm:$0xf]
        %v3371 = vld [vmem:[%s3368 + $0x8] sm:$0xf]
        %v3372 = vld [vmem:[%s3368 + $0xc] sm:$0xf]
        %v3373 = vpack.c.bf16 %v3367, %v3367
        %s3374 = scalar_lea.vmem %s51, 1
        %v3375 = vld [vmem:[%s3374] sm:$0x1]
        %v3377 = vlaneseq
        %v3378 = vshrl.u32 %v3377, 7
        %v3379 = vsub.s32 0, %v3378
        %v3380 = vrot.slane %v3375, %v3379
        %v3386 = vunpack.c.l.b16 %v3369
        %v3387 = vunpack.c.l.b16 %v3370
        %v3388 = vunpack.c.l.b16 %v3371
        %v3389 = vunpack.c.l.b16 %v3372
        %v3390 = vpack.c.b16 %v3387, %v3386
        %v3391 = vpack.c.b16 %v3389, %v3388
        %v3395 = vsel %vm1451, %v3373, 0
        %3397 = vmatprep.subr.bf16.mxu0 0
        %3398 = vmatpush1.bf16.msra.mxu0 %v3390
        %3399 = vmatprep.subr.bf16.mxu0 0
        %3400 = vmatpush1.bf16.msra.mxu0 %v3391
        %3401 = vmatprep.subr.bf16.mxu0 0
        %3402 = vmatpush1.bf16.msra.mxu0 0
        %3403 = vmatprep.subr.bf16.mxu0 0
        %3404 = vmatpush1.bf16.msra.mxu0 0
        %3405 = vmatprep.subr.bf16.mxu0 0
        %3406 = vmatpush1.bf16.msra.mxu0 0
        %3407 = vmatprep.subr.bf16.mxu0 0
        %3408 = vmatpush1.bf16.msra.mxu0 0
        %3409 = vmatprep.subr.bf16.mxu0 0
        %3410 = vmatpush1.bf16.msra.mxu0 0
        %3411 = vmatprep.subr.bf16.mxu0 0
        %3412 = vmatpush1.bf16.msra.mxu0 0
        %3413 = vmatprep.subr.bf16.mxu0 0
        %3414 = vmatpush1.bf16.msra.mxu0 0
        %3415 = vmatprep.subr.bf16.mxu0 0
        %3416 = vmatpush1.bf16.msra.mxu0 0
        %3417 = vmatprep.subr.bf16.mxu0 0
        %3418 = vmatpush1.bf16.msra.mxu0 0
        %3419 = vmatprep.subr.bf16.mxu0 0
        %3420 = vmatpush1.bf16.msra.mxu0 0
        %3421 = vmatprep.subr.bf16.mxu0 0
        %3422 = vmatpush1.bf16.msra.mxu0 0
        %3423 = vmatprep.subr.bf16.mxu0 0
        %3424 = vmatpush1.bf16.msra.mxu0 0
        %3425 = vmatprep.subr.bf16.mxu0 0
        %3426 = vmatpush1.bf16.msra.mxu0 0
        %3427 = vmatprep.subr.bf16.mxu0 0
        %3428 = vmatpush1.bf16.msra.mxu0 0
        %3429 = vmatprep.mubr.bf16.mxu0 0
        %3430 = vmatmul.mubr.bf16.gmra.mrb[0].mxu0 %v3395
        %v3431 = vpop.f32.mrb[0].mxu0
        %v3432 = vadd.f32 %v3380, %v3431
        %v3433 = vpop.f32.mrb[0].mxu0
        %v3434 = vpop.f32.mrb[0].mxu0
        %v3435 = vpop.f32.mrb[0].mxu0
        %3436 = vdwg.mxu0
        %v3437 = vadd.f32 %v3183, %v3432
        %s3438 = scalar_lea.vmem %s53, 1
        %v3439 = vld [vmem:[%s3438] sm:$0x1]
        %s3440 = scalar_lea.vmem %s55, 1
        %v3441 = vld [vmem:[%s3440] sm:$0x1]
        %v3442 = vsel %vm1451, %v3437, 0.0
        %3443 = vadd.xlane.f32.xlu0 %v3442
        %v3444 = vpop.xlane.xlu0 %3443
        %v3445 = vmul.f32 %v3444, %v1455
        %v3446 = vsub.f32 %v3437, %v3445
        %v3447 = vmul.f32 %v3446, %v3446
        %v3448 = vsel %vm1451, %v3447, 0.0
        %3449 = vadd.xlane.f32.xlu0 %v3448
        %v3450 = vpop.xlane.xlu0 %3449
        %v3451 = vmul.f32 %v3450, %v1455
        %v3452 = vadd.f32 %v3451, 1e-05
        %v3453 = vrsqrt.pop %v3452
        %v3454 = vmul.f32 %v3446, %v3453
        %v3456 = vlaneseq
        %v3457 = vshrl.u32 %v3456, 7
        %v3458 = vsub.s32 0, %v3457
        %v3459 = vrot.slane %v3439, %v3458
        %v3461 = vmul.f32 %v3454, %v3459
        %v3463 = vlaneseq
        %v3464 = vshrl.u32 %v3463, 7
        %v3465 = vsub.s32 0, %v3464
        %v3466 = vrot.slane %v3441, %v3465
        %v3468 = vadd.f32 %v3461, %v3466
        %s3469 = scalar_lea.vmem %s57, 16
        %v3470 = vld [vmem:[%s3469] sm:$0xf]
        %v3471 = vld [vmem:[%s3469 + $0x4] sm:$0xf]
        %v3472 = vld [vmem:[%s3469 + $0x8] sm:$0xf]
        %v3473 = vld [vmem:[%s3469 + $0xc] sm:$0xf]
        %v3474 = vpack.c.bf16 %v3468, %v3468
        %s3475 = scalar_lea.vmem %s59, 1
        %v3476 = vld [vmem:[%s3475] sm:$0x1]
        %v3478 = vlaneseq
        %v3479 = vshrl.u32 %v3478, 7
        %v3480 = vsub.s32 0, %v3479
        %v3481 = vrot.slane %v3476, %v3480
        %v3487 = vunpack.c.l.b16 %v3470
        %v3488 = vunpack.c.l.b16 %v3471
        %v3489 = vunpack.c.l.b16 %v3472
        %v3490 = vunpack.c.l.b16 %v3473
        %v3491 = vpack.c.b16 %v3488, %v3487
        %v3492 = vpack.c.b16 %v3490, %v3489
        %v3496 = vsel %vm1451, %v3474, 0
        %3498 = vmatprep.subr.bf16.mxu0 0
        %3499 = vmatpush1.bf16.msra.mxu0 %v3491
        %3500 = vmatprep.subr.bf16.mxu0 0
        %3501 = vmatpush1.bf16.msra.mxu0 %v3492
        %3502 = vmatprep.subr.bf16.mxu0 0
        %3503 = vmatpush1.bf16.msra.mxu0 0
        %3504 = vmatprep.subr.bf16.mxu0 0
        %3505 = vmatpush1.bf16.msra.mxu0 0
        %3506 = vmatprep.subr.bf16.mxu0 0
        %3507 = vmatpush1.bf16.msra.mxu0 0
        %3508 = vmatprep.subr.bf16.mxu0 0
        %3509 = vmatpush1.bf16.msra.mxu0 0
        %3510 = vmatprep.subr.bf16.mxu0 0
        %3511 = vmatpush1.bf16.msra.mxu0 0
        %3512 = vmatprep.subr.bf16.mxu0 0
        %3513 = vmatpush1.bf16.msra.mxu0 0
        %3514 = vmatprep.subr.bf16.mxu0 0
        %3515 = vmatpush1.bf16.msra.mxu0 0
        %3516 = vmatprep.subr.bf16.mxu0 0
        %3517 = vmatpush1.bf16.msra.mxu0 0
        %3518 = vmatprep.subr.bf16.mxu0 0
        %3519 = vmatpush1.bf16.msra.mxu0 0
        %3520 = vmatprep.subr.bf16.mxu0 0
        %3521 = vmatpush1.bf16.msra.mxu0 0
        %3522 = vmatprep.subr.bf16.mxu0 0
        %3523 = vmatpush1.bf16.msra.mxu0 0
        %3524 = vmatprep.subr.bf16.mxu0 0
        %3525 = vmatpush1.bf16.msra.mxu0 0
        %3526 = vmatprep.subr.bf16.mxu0 0
        %3527 = vmatpush1.bf16.msra.mxu0 0
        %3528 = vmatprep.subr.bf16.mxu0 0
        %3529 = vmatpush1.bf16.msra.mxu0 0
        %3530 = vmatprep.mubr.bf16.mxu0 0
        %3531 = vmatmul.mubr.bf16.gmra.mrb[0].mxu0 %v3496
        %v3532 = vpop.f32.mrb[0].mxu0
        %v3533 = vadd.f32 %v3481, %v3532
        %v3534 = vpop.f32.mrb[0].mxu0
        %v3535 = vpop.f32.mrb[0].mxu0
        %v3536 = vpop.f32.mrb[0].mxu0
        %3537 = vdwg.mxu0
        %v3538 = vsub.f32 0.0, %v3533
        %v3539 = vmul.f32 %v3538, 1.442695
        %v3540 = vpow.pop %v3539
        %v3541 = vadd.f32 %v3540, 1.0
        %v3542 = vrcp.pop %v3541
        %v3543 = vmul.f32 1.0, %v3542
        %v3544 = vmul.f32 %v3533, %v3543
        %s3545 = scalar_lea.vmem %s61, 32
        %v3546 = vld [vmem:[%s3545] sm:$0xf]
        %v3547 = vld [vmem:[%s3545 + $0x4] sm:$0xf]
        %v3548 = vld [vmem:[%s3545 + $0x8] sm:$0xf]
        %v3549 = vld [vmem:[%s3545 + $0xc] sm:$0xf]
        %v3550 = vld [vmem:[%s3545 + $0x10] sm:$0xf]
        %v3551 = vld [vmem:[%s3545 + $0x14] sm:$0xf]
        %v3552 = vld [vmem:[%s3545 + $0x18] sm:$0xf]
        %v3553 = vld [vmem:[%s3545 + $0x1c] sm:$0xf]
        %v3554 = vpack.c.bf16 %v3544, %v3544
        %s3555 = scalar_lea.vmem %s63, 1
        %v3556 = vld [vmem:[%s3555] sm:$0x1]
        %v3558 = vlaneseq
        %v3559 = vshrl.u32 %v3558, 7
        %v3560 = vsub.s32 0, %v3559
        %v3561 = vrot.slane %v3556, %v3560
        %v3571 = vunpack.c.l.b16 %v3546
        %v3572 = vunpack.c.l.b16 %v3547
        %v3573 = vunpack.c.l.b16 %v3548
        %v3574 = vunpack.c.l.b16 %v3549
        %v3575 = vunpack.c.l.b16 %v3550
        %v3576 = vunpack.c.l.b16 %v3551
        %v3577 = vunpack.c.l.b16 %v3552
        %v3578 = vunpack.c.l.b16 %v3553
        %v3579 = vpack.c.b16 %v3572, %v3571
        %v3580 = vpack.c.b16 %v3574, %v3573
        %v3581 = vpack.c.b16 %v3576, %v3575
        %v3582 = vpack.c.b16 %v3578, %v3577
        %v3588 = vsel %vm1594, %v3554, 0
        %3590 = vmatprep.subr.bf16.mxu0 0
        %3591 = vmatpush1.bf16.msra.mxu0 %v3579
        %3592 = vmatprep.subr.bf16.mxu0 0
        %3593 = vmatpush1.bf16.msra.mxu0 %v3580
        %3594 = vmatprep.subr.bf16.mxu0 0
        %3595 = vmatpush1.bf16.msra.mxu0 %v3581
        %3596 = vmatprep.subr.bf16.mxu0 0
        %3597 = vmatpush1.bf16.msra.mxu0 %v3582
        %3598 = vmatprep.subr.bf16.mxu0 0
        %3599 = vmatpush1.bf16.msra.mxu0 0
        %3600 = vmatprep.subr.bf16.mxu0 0
        %3601 = vmatpush1.bf16.msra.mxu0 0
        %3602 = vmatprep.subr.bf16.mxu0 0
        %3603 = vmatpush1.bf16.msra.mxu0 0
        %3604 = vmatprep.subr.bf16.mxu0 0
        %3605 = vmatpush1.bf16.msra.mxu0 0
        %3606 = vmatprep.subr.bf16.mxu0 0
        %3607 = vmatpush1.bf16.msra.mxu0 0
        %3608 = vmatprep.subr.bf16.mxu0 0
        %3609 = vmatpush1.bf16.msra.mxu0 0
        %3610 = vmatprep.subr.bf16.mxu0 0
        %3611 = vmatpush1.bf16.msra.mxu0 0
        %3612 = vmatprep.subr.bf16.mxu0 0
        %3613 = vmatpush1.bf16.msra.mxu0 0
        %3614 = vmatprep.subr.bf16.mxu0 0
        %3615 = vmatpush1.bf16.msra.mxu0 0
        %3616 = vmatprep.subr.bf16.mxu0 0
        %3617 = vmatpush1.bf16.msra.mxu0 0
        %3618 = vmatprep.subr.bf16.mxu0 0
        %3619 = vmatpush1.bf16.msra.mxu0 0
        %3620 = vmatprep.subr.bf16.mxu0 0
        %3621 = vmatpush1.bf16.msra.mxu0 0
        %3622 = vmatprep.mubr.bf16.mxu0 0
        %3623 = vmatmul.mubr.bf16.gmra.mrb[0].mxu0 %v3588
        %v3624 = vpop.f32.mrb[0].mxu0
        %v3625 = vadd.f32 %v3561, %v3624
        %v3626 = vpop.f32.mrb[0].mxu0
        %v3627 = vpop.f32.mrb[0].mxu0
        %v3628 = vpop.f32.mrb[0].mxu0
        %3629 = vdwg.mxu0
        %v3630 = vmul.f32 %v3625, 0.5
        %v3631 = vadd.f32 %v3437, %v3630
        %s3632 = scalar_lea.vmem %s65, 1
        %v3633 = vld [vmem:[%s3632] sm:$0x1]
        %s3634 = scalar_lea.vmem %s67, 1
        %v3635 = vld [vmem:[%s3634] sm:$0x1]
        %v3636 = vsel %vm1451, %v3631, 0.0
        %3637 = vadd.xlane.f32.xlu0 %v3636
        %v3638 = vpop.xlane.xlu0 %3637
        %v3639 = vmul.f32 %v3638, %v1455
        %v3640 = vsub.f32 %v3631, %v3639
        %v3641 = vmul.f32 %v3640, %v3640
        %v3642 = vsel %vm1451, %v3641, 0.0
        %3643 = vadd.xlane.f32.xlu0 %v3642
        %v3644 = vpop.xlane.xlu0 %3643
        %v3645 = vmul.f32 %v3644, %v1455
        %v3646 = vadd.f32 %v3645, 1e-05
        %v3647 = vrsqrt.pop %v3646
        %v3648 = vmul.f32 %v3640, %v3647
        %v3650 = vlaneseq
        %v3651 = vshrl.u32 %v3650, 7
        %v3652 = vsub.s32 0, %v3651
        %v3653 = vrot.slane %v3633, %v3652
        %v3655 = vmul.f32 %v3648, %v3653
        %v3657 = vlaneseq
        %v3658 = vshrl.u32 %v3657, 7
        %v3659 = vsub.s32 0, %v3658
        %v3660 = vrot.slane %v3635, %v3659
        %v3662 = vadd.f32 %v3655, %v3660
        %v3663 = vld [vmem:[%s69] sm:$0x1]
        %v3665 = vlaneseq
        %v3666 = vshrl.u32 %v3665, 7
        %v3667 = vsub.s32 0, %v3666
        %v3668 = vrot.slane %v3663, %v3667
        %v3670 = vmul.f32 %v3662, %v3668
        %v3671 = vsel %vm1451, %v3670, 0.0
        %3672 = vadd.xlane.f32.xlu0 %v3671
        %v3673 = vpop.xlane.xlu0 %3672
        %v3674 = vld [vmem:[#allocation4] sm:$0x1]
        %v3676 = vlaneseq
        %v3677 = vshrl.u32 %v3676, 7
        %v3678 = vsub.s32 0, %v3677
        %v3679 = vrot.slane %v3674, %v3678
        %v3681 = vadd.f32 %v3673, %v3679
        %vm3682 = vcmask 7168
        %v3683 = vsel %vm3682, %v3681, -inf
        %v3684 = vrot.slane %v3683, 4
        %v3685 = vmax.f32 %v3683, %v3684
        %v3686 = vrot.slane %v3685, 2
        %v3687 = vmax.f32 %v3685, %v3686
        %v3688 = vrot.slane %v3687, 1
        %v3689 = vmax.f32 %v3687, %v3688
        %v3690 = vsub.f32 %v3681, %v3689
        %v3691 = vmul.f32 %v3690, 1.442695
        %v3692 = vpow.pop %v3691
        %v3693 = vsel %vm3682, %v3692, 0.0
        %v3694 = vrot.slane %v3693, 4
        %v3695 = vadd.f32 %v3693, %v3694
        %v3696 = vrot.slane %v3695, 2
        %v3697 = vadd.f32 %v3695, %v3696
        %v3698 = vrot.slane %v3697, 1
        %v3699 = vadd.f32 %v3697, %v3698
        %v3700 = vrcp.pop %v3699
        %v3701 = vmul.f32 %v3692, %v3700
        %3703 = vset.pattern.permute.xlu0 0
        %3704 = vperm.xlu0 %3703, %v3701
        %v3705 = vpop.permute.xlu0 %3704
        %v3707 = vmul.f32 %v3705, %v3662
        %v3708 = vsel %vm1451, %v3707, 0.0
        %v3709 = vrot.slane %v3708, 4
        %v3710 = vadd.f32 %v3708, %v3709
        %v3711 = vrot.slane %v3710, 2
        %v3712 = vadd.f32 %v3710, %v3711
        %v3713 = vrot.slane %v3712, 1
        %v3714 = vadd.f32 %v3712, %v3713
        %v3715 = vld [vmem:[%s73] sm:$0xff]
        %v3716 = vld [vmem:[%s73 + $0x8] sm:$0xff]
        %v3717 = vld [vmem:[%s73 + $0x10] sm:$0xf]
        %v3718 = vld [vmem:[%s73 + $0x14] sm:$0xff]
        %v3719 = vld [vmem:[%s73 + $0x1c] sm:$0xff]
        %v3720 = vld [vmem:[%s73 + $0x24] sm:$0xf]
        %v3721 = vld [vmem:[%s73 + $0x28] sm:$0xff]
        %v3722 = vld [vmem:[%s73 + $0x30] sm:$0xff]
        %v3723 = vld [vmem:[%s73 + $0x38] sm:$0xf]
        %v3724 = vld [vmem:[%s73 + $0x3c] sm:$0xff]
        %v3725 = vld [vmem:[%s73 + $0x44] sm:$0xff]
        %v3726 = vld [vmem:[%s73 + $0x4c] sm:$0xf]
        %v3727 = vpack.c.bf16 %v3714, %v3714
        %v3728 = vld [vmem:[%s75] sm:$0x1f]
        %v3741 = vunpack.c.l.b16 %v3715
        %v3742 = vunpack.c.h.b16 %v3715
        %v3743 = vunpack.c.l.b16 %v3716
        %v3744 = vunpack.c.h.b16 %v3716
        %v3745 = vunpack.c.l.b16 %v3717
        %v3746 = vunpack.c.l.b16 %v3718
        %v3747 = vunpack.c.h.b16 %v3718
        %v3748 = vunpack.c.l.b16 %v3719
        %v3749 = vunpack.c.h.b16 %v3719
        %v3750 = vunpack.c.l.b16 %v3720
        %v3751 = vunpack.c.l.b16 %v3721
        %v3752 = vunpack.c.h.b16 %v3721
        %v3753 = vunpack.c.l.b16 %v3722
        %v3754 = vunpack.c.h.b16 %v3722
        %v3755 = vunpack.c.l.b16 %v3723
        %v3756 = vunpack.c.l.b16 %v3724
        %v3757 = vunpack.c.h.b16 %v3724
        %v3758 = vunpack.c.l.b16 %v3725
        %v3759 = vunpack.c.h.b16 %v3725
        %v3760 = vunpack.c.l.b16 %v3726
        %v3761 = vpack.c.b16 %v3746, %v3741
        %v3762 = vpack.c.b16 %v3747, %v3742
        %v3763 = vpack.c.b16 %v3748, %v3743
        %v3764 = vpack.c.b16 %v3749, %v3744
        %v3765 = vpack.c.b16 %v3750, %v3745
        %v3766 = vpack.c.b16 %v3756, %v3751
        %v3767 = vpack.c.b16 %v3757, %v3752
        %v3768 = vpack.c.b16 %v3758, %v3753
        %v3769 = vpack.c.b16 %v3759, %v3754
        %v3770 = vpack.c.b16 %v3760, %v3755
        %v3782 = vlaneseq
        %v3783 = vshrl.u32 %v3782, 7
        %v3784 = vsub.s32 0, %v3783
        %v3785 = vrot.slane %v3728, %v3784
        %v3786 = vlaneseq
        %v3787 = vshrl.u32 %v3786, 7
        %v3788 = vsub.s32 1, %v3787
        %v3789 = vrot.slane %v3728, %v3788
        %v3790 = vlaneseq
        %v3791 = vshrl.u32 %v3790, 7
        %v3792 = vsub.s32 2, %v3791
        %v3793 = vrot.slane %v3728, %v3792
        %v3794 = vlaneseq
        %v3795 = vshrl.u32 %v3794, 7
        %v3796 = vsub.s32 3, %v3795
        %v3797 = vrot.slane %v3728, %v3796
        %v3798 = vlaneseq
        %v3799 = vshrl.u32 %v3798, 7
        %v3800 = vsub.s32 4, %v3799
        %v3801 = vrot.slane %v3728, %v3800
        %v3808 = vsel %vm1451, %v3727, 0
        %3810 = vmatprep.subr.bf16.mxu0 %v3762
        %3811 = vmatpush1.bf16.msra.mxu0 %v3761
        %3812 = vmatprep.subr.bf16.mxu0 %v3767
        %3813 = vmatpush1.bf16.msra.mxu0 %v3766
        %3814 = vmatprep.subr.bf16.mxu0 0
        %3815 = vmatpush1.bf16.msra.mxu0 0
        %3816 = vmatprep.subr.bf16.mxu0 0
        %3817 = vmatpush1.bf16.msra.mxu0 0
        %3818 = vmatprep.subr.bf16.mxu0 0
        %3819 = vmatpush1.bf16.msra.mxu0 0
        %3820 = vmatprep.subr.bf16.mxu0 0
        %3821 = vmatpush1.bf16.msra.mxu0 0
        %3822 = vmatprep.subr.bf16.mxu0 0
        %3823 = vmatpush1.bf16.msra.mxu0 0
        %3824 = vmatprep.subr.bf16.mxu0 0
        %3825 = vmatpush1.bf16.msra.mxu0 0
        %3826 = vmatprep.subr.bf16.mxu0 0
        %3827 = vmatpush1.bf16.msra.mxu0 0
        %3828 = vmatprep.subr.bf16.mxu0 0
        %3829 = vmatpush1.bf16.msra.mxu0 0
        %3830 = vmatprep.subr.bf16.mxu0 0
        %3831 = vmatpush1.bf16.msra.mxu0 0
        %3832 = vmatprep.subr.bf16.mxu0 0
        %3833 = vmatpush1.bf16.msra.mxu0 0
        %3834 = vmatprep.subr.bf16.mxu0 0
        %3835 = vmatpush1.bf16.msra.mxu0 0
        %3836 = vmatprep.subr.bf16.mxu0 0
        %3837 = vmatpush1.bf16.msra.mxu0 0
        %3838 = vmatprep.subr.bf16.mxu0 0
        %3839 = vmatpush1.bf16.msra.mxu0 0
        %3840 = vmatprep.subr.bf16.mxu0 0
        %3841 = vmatpush1.bf16.msra.mxu0 0
        %3842 = vmatprep.mubr.bf16.mxu0 0
        %3843 = vmatmul.mubr.bf16.gmra.mrb[0].mxu0 %v3808
        %v3844 = vpop.f32.mrb[0].mxu0
        %v3845 = vadd.f32 %v3785, %v3844
        %v3846 = vpop.f32.mrb[0].mxu0
        %v3847 = vadd.f32 %v3789, %v3846
        %v3848 = vpop.f32.mrb[0].mxu0
        %v3849 = vpop.f32.mrb[0].mxu0
        %3850 = vdwg.mxu0
        %3851 = vmatprep.subr.bf16.mxu0 %v3764
        %3852 = vmatpush1.bf16.msra.mxu0 %v3763
        %3853 = vmatprep.subr.bf16.mxu0 %v3769
        %3854 = vmatpush1.bf16.msra.mxu0 %v3768
        %3855 = vmatprep.subr.bf16.mxu0 0
        %3856 = vmatpush1.bf16.msra.mxu0 0
        %3857 = vmatprep.subr.bf16.mxu0 0
        %3858 = vmatpush1.bf16.msra.mxu0 0
        %3859 = vmatprep.subr.bf16.mxu0 0
        %3860 = vmatpush1.bf16.msra.mxu0 0
        %3861 = vmatprep.subr.bf16.mxu0 0
        %3862 = vmatpush1.bf16.msra.mxu0 0
        %3863 = vmatprep.subr.bf16.mxu0 0
        %3864 = vmatpush1.bf16.msra.mxu0 0
        %3865 = vmatprep.subr.bf16.mxu0 0
        %3866 = vmatpush1.bf16.msra.mxu0 0
        %3867 = vmatprep.subr.bf16.mxu0 0
        %3868 = vmatpush1.bf16.msra.mxu0 0
        %3869 = vmatprep.subr.bf16.mxu0 0
        %3870 = vmatpush1.bf16.msra.mxu0 0
        %3871 = vmatprep.subr.bf16.mxu0 0
        %3872 = vmatpush1.bf16.msra.mxu0 0
        %3873 = vmatprep.subr.bf16.mxu0 0
        %3874 = vmatpush1.bf16.msra.mxu0 0
        %3875 = vmatprep.subr.bf16.mxu0 0
        %3876 = vmatpush1.bf16.msra.mxu0 0
        %3877 = vmatprep.subr.bf16.mxu0 0
        %3878 = vmatpush1.bf16.msra.mxu0 0
        %3879 = vmatprep.subr.bf16.mxu0 0
        %3880 = vmatpush1.bf16.msra.mxu0 0
        %3881 = vmatprep.subr.bf16.mxu0 0
        %3882 = vmatpush1.bf16.msra.mxu0 0
        %3883 = vmatprep.mubr.bf16.mxu0 0
        %3884 = vmatmul.mubr.bf16.gmra.mrb[0].mxu0 %v3808
        %v3885 = vpop.f32.mrb[0].mxu0
        %v3886 = vadd.f32 %v3793, %v3885
        %v3887 = vpop.f32.mrb[0].mxu0
        %v3888 = vadd.f32 %v3797, %v3887
        %v3889 = vpop.f32.mrb[0].mxu0
        %v3890 = vpop.f32.mrb[0].mxu0
        %3891 = vdwg.mxu0
        %3892 = vmatprep.subr.bf16.mxu0 0
        %3893 = vmatpush1.bf16.msra.mxu0 %v3765
        %3894 = vmatprep.subr.bf16.mxu0 0
        %3895 = vmatpush1.bf16.msra.mxu0 %v3770
        %3896 = vmatprep.subr.bf16.mxu0 0
        %3897 = vmatpush1.bf16.msra.mxu0 0
        %3898 = vmatprep.subr.bf16.mxu0 0
        %3899 = vmatpush1.bf16.msra.mxu0 0
        %3900 = vmatprep.subr.bf16.mxu0 0
        %3901 = vmatpush1.bf16.msra.mxu0 0
        %3902 = vmatprep.subr.bf16.mxu0 0
        %3903 = vmatpush1.bf16.msra.mxu0 0
        %3904 = vmatprep.subr.bf16.mxu0 0
        %3905 = vmatpush1.bf16.msra.mxu0 0
        %3906 = vmatprep.subr.bf16.mxu0 0
        %3907 = vmatpush1.bf16.msra.mxu0 0
        %3908 = vmatprep.subr.bf16.mxu0 0
        %3909 = vmatpush1.bf16.msra.mxu0 0
        %3910 = vmatprep.subr.bf16.mxu0 0
        %3911 = vmatpush1.bf16.msra.mxu0 0
        %3912 = vmatprep.subr.bf16.mxu0 0
        %3913 = vmatpush1.bf16.msra.mxu0 0
        %3914 = vmatprep.subr.bf16.mxu0 0
        %3915 = vmatpush1.bf16.msra.mxu0 0
        %3916 = vmatprep.subr.bf16.mxu0 0
        %3917 = vmatpush1.bf16.msra.mxu0 0
        %3918 = vmatprep.subr.bf16.mxu0 0
        %3919 = vmatpush1.bf16.msra.mxu0 0
        %3920 = vmatprep.subr.bf16.mxu0 0
        %3921 = vmatpush1.bf16.msra.mxu0 0
        %3922 = vmatprep.subr.bf16.mxu0 0
        %3923 = vmatpush1.bf16.msra.mxu0 0
        %3924 = vmatprep.mubr.bf16.mxu0 0
        %3925 = vmatmul.mubr.bf16.gmra.mrb[0].mxu0 %v3808
        %v3926 = vpop.f32.mrb[0].mxu0
        %v3927 = vadd.f32 %v3801, %v3926
        %v3928 = vpop.f32.mrb[0].mxu0
        %v3929 = vpop.f32.mrb[0].mxu0
        %v3930 = vpop.f32.mrb[0].mxu0
        %3931 = vdwg.mxu0
        %v3937 = vcombine.low %v3845, %v3847
        %v3938 = vcombine.low %v3886, %v3888
        %v3940 = vunpack.c.l.s4 1966171168
        %v3941 = vunpack.c.0.s8 %v3940
        %v3942 = vlaneseq
        %v3943 = vshrl.u32 %v3942, 7
        %v3944 = vsub.s32 %v3941, %v3943
        %v3945 = vrot.slane %v3937, %v3944
        %v3947 = vunpack.c.l.s4 1966171168
        %v3948 = vunpack.c.0.s8 %v3947
        %v3949 = vlaneseq
        %v3950 = vshrl.u32 %v3949, 7
        %v3951 = vsub.s32 %v3948, %v3950
        %v3952 = vrot.slane %v3938, %v3951
        %v3954 = vunpack.c.l.s4 1966171168
        %v3955 = vunpack.c.0.s8 %v3954
        %v3956 = vlaneseq
        %v3957 = vshrl.u32 %v3956, 7
        %v3958 = vsub.s32 %v3955, %v3957
        %v3959 = vrot.slane %v3927, %v3958
        %v3960 = vcombine.low %v3945, %v3952
        %v3962 = vunpack.c.l.s4 1966171168
        %v3963 = vunpack.c.0.s8 %v3962
        %v3964 = vlaneseq
        %v3965 = vshrl.u32 %v3964, 7
        %v3966 = vsub.s32 %v3963, %v3965
        %v3967 = vrot.slane %v3960, %v3966
        %v3969 = vunpack.c.l.s4 1966171168
        %v3970 = vunpack.c.0.s8 %v3969
        %v3971 = vlaneseq
        %v3972 = vshrl.u32 %v3971, 7
        %v3973 = vsub.s32 %v3970, %v3972
        %v3974 = vrot.slane %v3959, %v3973
        %v3975 = vcombine.low %v3967, %v3974
        %v3977 = vlaneseq
        %vm3978 = vcmp.ge.s32.totalorder %v3977, 0
        %vm3979 = vcmp.lt.s32.totalorder %v3977, 640
        %vm3980 = vmand %vm3978, %vm3979
        %3981 = vst.msk [vmem:[%s1365] sm:$0x1f] %vm3980, %v3975
        %s3982 = sand.u32 %s898, 1
        %s3983 = scalar_lea.sflag [#allocation7], %s3982
        %s3984 = sand.u32 %s898, 1
        %s3985 = smul.addr %s3984, 5
        %s3986 = scalar_lea.vmem [#allocation31], %s3985
        // Predicated region
        $region233: #{tpu_custom_call.1} parent=167 // pred_check
          %p3987 = pneg %p908
        $region234: #{tpu_custom_call.1} parent=167 // pred_check_branch
          %3989 = sbr.rel (%p3987) target = $region236
        $region235: #{tpu_custom_call.1} parent=167 // pred_region
          %s3991 = ssub.s32 80, 80
          %3992 = vsyncadd %s3983, %s3991
          %s3993 = smul.addr %s108, 5
          %s3994 = smul.addr %s3993, 16
          %s3995 = scalar_lea.hbm %s77, %s3994
          %s3997 = sshll.u32 %s3986, 4
          %s3998 = int_to_ptr.vmem [resolvable:$true] %s3997
          %4000 = dma.vmem_to_hbm [thread:$0]  %s3998, 80, %s3995, %s3983
        $region236: #{tpu_custom_call.1} parent=167 // pred_fallthru
          _
      $region168: #{tpu_custom_call.1} parent=5 // pred_fallthru
        _
      %p4001 = scmp.le.s32.totalorder 2, %s103
      // Predicated region
      $region237: #{tpu_custom_call.1} parent=5 // pred_check
        %p4002 = pneg %p4001
      $region238: #{tpu_custom_call.1} parent=5 // pred_check_branch
        %4004 = sbr.rel (%p4002) target = $region240
      $region239: #{tpu_custom_call.1} parent=5 // pred_region
        %s4005 = ssub.s32 %s103, 2
        // Predicated region
        $region241: #{tpu_custom_call.1} parent=239 // pred_check
          %p4006 = pneg %p914
        $region242: #{tpu_custom_call.1} parent=239 // pred_check_branch
          %4008 = sbr.rel (%p4006) target = $region244
        $region243: #{tpu_custom_call.1} parent=239 // pred_region
          %s4009 = sand.u32 %s899, 1
          %s4010 = scalar_lea.sflag [#allocation7], %s4009
          %s4011 = sand.u32 %s899, 1
          %s4012 = smul.addr %s4011, 5
          %s4013 = scalar_lea.vmem [#allocation31], %s4012
          %4014 = dma.done %s4010, 80
        $region244: #{tpu_custom_call.1} parent=239 // pred_fallthru
          _
      $region240: #{tpu_custom_call.1} parent=5 // pred_fallthru
        _
    $region6: #{tpu_custom_call.1} parent=1 // loop_footer
      %s107 = sadd.s32 1, %s103
    $region7: #{tpu_custom_call.1} parent=1 // loop_footer_branch
      %102 = sbr.rel target = $region3
    $region8: #{tpu_custom_call.1} parent=1 // loop_exit
      _
    %4015 = vsyncpa [#allocation6], 1
    %s4016 = scalar_lea.sflag [#allocation6], 1
    %4017 = vsyncpa %s4016, 1
    %4018 = vsyncpa [#allocation9], 1
    %4019 = vsyncpa [#allocation12], 1
    %4020 = vsyncpa [#allocation15], 1
    %4021 = vsyncpa [#allocation18], 1
    %4022 = vsyncpa [#allocation21], 1
    %4023 = vsyncpa [#allocation24], 1
    %4024 = vsyncpa [#allocation27], 1
    %4025 = vsyncpa [#allocation30], 1
    %4026 = vsyncpa [#allocation7], 1
    %s4027 = scalar_lea.sflag [#allocation7], 1
    %4028 = vsyncpa %s4027, 1

</llo_original>
